<compile_context>
chip_gen: v6e
topology: v6e:2x2x1
jax: 0.10.0
libtpu: 0.0.40
codegen_flags: <defaults>
</compile_context>

<pallas_src>
import functools

import jax
import jax.numpy as jnp
from jax.experimental import pallas as pl
from jax.experimental.pallas import tpu as pltpu

BN_EPS = 1e-5
LEAKY_SLOPE = 0.01
TN = 1024  # fc2 column tile (lane-dense, one tile per TC on v7x)


def color_kernel(x_ref, w1_ref, gamma_ref, beta_ref, w2_ref, b2_ref, out_ref):
    # x_ref:     (B, 512)    f32   (resident)
    # w1_ref:    (512, 1024) bf16  (resident)
    # gamma/beta:(1, 1024)   f32
    # w2_ref:    (1024, TN)  bf16  (streamed column tile)
    # b2_ref:    (1, TN)     f32
    # out_ref:   (B, TN)     f32
    #
    # fc1 (no bias): bf16 operands on the MXU, f32 accumulation.
    x_bf = x_ref[...].astype(jnp.bfloat16)
    h = jnp.dot(x_bf, w1_ref[...], preferred_element_type=jnp.float32)  # (B,1024)

    # BatchNorm1d (training-mode batch stats, biased variance), fused scale/shift.
    mean = jnp.mean(h, axis=0, keepdims=True)            # (1, 1024)
    c = h - mean
    var = jnp.mean(c * c, axis=0, keepdims=True)         # (1, 1024)
    scale = gamma_ref[...] * jax.lax.rsqrt(var + BN_EPS)
    h_bn = c * scale + beta_ref[...]

    # LeakyReLU (default negative_slope = 0.01).
    a = jnp.where(h_bn >= 0.0, h_bn, LEAKY_SLOPE * h_bn)

    # fc2 column tile (+ bias) and sigmoid — bf16 matmul inputs, f32 accum.
    y = jnp.dot(a.astype(jnp.bfloat16), w2_ref[...],
                preferred_element_type=jnp.float32) + b2_ref[...]
    out_ref[...] = jax.nn.sigmoid(y).astype(out_ref.dtype)


def prepare_params(params, num_vertices, tn=TN):
    """One-time parameter prep: pad fc2 columns to a lane/MXU-friendly
    multiple of `tn`.  Done once, NOT per forward call."""
    w1, gamma, beta, w2, b2 = params
    out_dim = num_vertices * 3
    padded = pl.cdiv(out_dim, tn) * tn                   # 1926 -> 2048
    w2p = jnp.pad(w2, ((0, 0), (0, padded - out_dim)))
    b2p = jnp.pad(b2, ((0, 0), (0, padded - out_dim)))
    return (w1, gamma, beta, w2p, b2p)


@functools.partial(jax.jit, static_argnames=("num_vertices", "tn"))
def color_forward(x, prepared_params, num_vertices, tn=TN):
    """x: (B, 512) float32 -> (B, num_vertices, 3) float32.
    `prepared_params` must come from `prepare_params` (pre-padded)."""
    w1, gamma, beta, w2p, b2p = prepared_params
    B = x.shape[0]
    out_dim = num_vertices * 3
    padded = w2p.shape[1]
    grid = (padded // tn,)                               # (2,) for 642 vertices

    flat = pl.pallas_call(
        color_kernel,
        out_shape=jax.ShapeDtypeStruct((B, padded), jnp.float32),
        grid=grid,
        in_specs=[
            pl.BlockSpec((B, 512), lambda j: (0, 0)),      # x (resident)
            pl.BlockSpec((512, 1024), lambda j: (0, 0)),   # w1 (resident)
            pl.BlockSpec((1, 1024), lambda j: (0, 0)),     # gamma
            pl.BlockSpec((1, 1024), lambda j: (0, 0)),     # beta
            pl.BlockSpec((1024, tn), lambda j: (0, j)),    # w2 column tile (streamed)
            pl.BlockSpec((1, tn), lambda j: (0, j)),       # b2 column tile
        ],
        out_specs=pl.BlockSpec((B, tn), lambda j: (0, j)),
        compiler_params=pltpu.CompilerParams(
            # Column tiles are fully independent (fc1/BN recomputed per tile),
            # so this axis is safely parallel -> one tile per TC on v7x.
            dimension_semantics=("parallel",),
        ),
    )(x, w1, gamma, beta, w2p, b2p)

    # Glue outside the kernel: drop padded columns, reshape to (B, V, 3).
    return flat[:, :out_dim].reshape((-1, num_vertices, 3))


def init_params(key, num_vertices):
    """Deterministic synthetic parameters (shapes match the PyTorch module)."""
    k1, k2, k3, k4, k5 = jax.random.split(key, 5)
    out_dim = num_vertices * 3
    # Weights stored as (in, out) — transposed vs. PyTorch's (out, in) — in bf16.
    w1 = (jax.random.normal(k1, (512, 1024), jnp.float32) * 0.02).astype(jnp.bfloat16)
    gamma = 1.0 + 0.01 * jax.random.normal(k2, (1, 1024), jnp.float32)
    beta = 0.01 * jax.random.normal(k3, (1, 1024), jnp.float32)
    w2 = (jax.random.normal(k4, (1024, out_dim), jnp.float32) * 0.02).astype(jnp.bfloat16)
    b2 = 0.01 * jax.random.normal(k5, (1, out_dim), jnp.float32)
    return (w1, gamma, beta, w2, b2)


if __name__ == "__main__":
    num_vertices = 642  # module default
    B = 8               # small batch (>1 so training-mode BatchNorm is well defined)

    key = jax.random.PRNGKey(0)
    kx, kp = jax.random.split(key)
    x = jax.random.normal(kx, (B, 512), jnp.float32)

    # One-time parameter prep (padding hoisted out of the forward path).
    params = init_params(kp, num_vertices)
    prepared = prepare_params(params, num_vertices)
    prepared = jax.block_until_ready(prepared)

    out = color_forward(x, prepared, num_vertices)
    out = jax.block_until_ready(out)

    assert out.shape == (B, num_vertices, 3), out.shape
    assert out.dtype == jnp.float32
    # sigmoid output must lie in (0, 1)
    assert bool(jnp.all(out > 0.0)) and bool(jnp.all(out < 1.0))

    print("KERNEL_OK")
</pallas_src>

<mosaic_0001>
module attributes {stable_mosaic.version = 11 : i64} {
  func.func @color_kernel(%arg0: i32, %arg1: memref<8x512xf32, #tpu.memory_space<vmem>>, %arg2: memref<512x1024xbf16, #tpu.memory_space<vmem>>, %arg3: memref<1x1024xf32, #tpu.memory_space<vmem>>, %arg4: memref<1x1024xf32, #tpu.memory_space<vmem>>, %arg5: memref<1024x1024xbf16, #tpu.memory_space<vmem>>, %arg6: memref<1x1024xf32, #tpu.memory_space<vmem>>, %arg7: memref<8x1024xf32, #tpu.memory_space<vmem>>) attributes {dimension_semantics = [#tpu.dimension_semantics<parallel>], iteration_bounds = array<i64: 2>, scalar_prefetch = 0 : i64, scratch_operands = 0 : i64, tpu.core_type = #tpu.core_type<tc>, window_params = [{pipeline_mode = #tpu.pipeline_mode<synchronous>, transform_indices = @transform_0, window_bounds = array<i64: 8, 512>}, {pipeline_mode = #tpu.pipeline_mode<synchronous>, transform_indices = @transform_1, window_bounds = array<i64: 512, 1024>}, {pipeline_mode = #tpu.pipeline_mode<synchronous>, transform_indices = @transform_2, window_bounds = array<i64: 1, 1024>}, {pipeline_mode = #tpu.pipeline_mode<synchronous>, transform_indices = @transform_3, window_bounds = array<i64: 1, 1024>}, {transform_indices = @transform_4, window_bounds = array<i64: 1024, 1024>}, {transform_indices = @transform_5, window_bounds = array<i64: 1, 1024>}, {transform_indices = @transform_6, window_bounds = array<i64: 8, 1024>}]} {
    %c0 = arith.constant 0 : index
    %c0_0 = arith.constant 0 : index
    %0 = vector.load %arg1[%c0, %c0_0] : memref<8x512xf32, #tpu.memory_space<vmem>>, vector<8x512xf32>
    %1 = arith.truncf %0 : vector<8x512xf32> to vector<8x512xbf16>
    %c0_1 = arith.constant 0 : index
    %c0_2 = arith.constant 0 : index
    %2 = vector.load %arg2[%c0_1, %c0_2] : memref<512x1024xbf16, #tpu.memory_space<vmem>>, vector<512x1024xbf16>
    %cst = arith.constant dense<0.000000e+00> : vector<8x1024xf32>
    %3 = tpu.matmul %1, %2, %cst {dimension_numbers = #tpu.dot_dimension_numbers<[1], [0], [0], [1], [0, 0, 1, 1], [], []>} : vector<8x512xbf16>, vector<512x1024xbf16>, vector<8x1024xf32> -> vector<8x1024xf32>
    %cst_3 = arith.constant dense<0.000000e+00> : vector<1024xf32>
    %4 = vector.multi_reduction <add>, %3, %cst_3 [0] : vector<8x1024xf32> to vector<1024xf32>
    %5 = vector.shape_cast %4 : vector<1024xf32> to vector<1x1024xf32>
    %cst_4 = arith.constant 8.000000e+00 : f32
    %6 = vector.broadcast %cst_4 : f32 to vector<1x1024xf32>
    %7 = arith.divf %5, %6 : vector<1x1024xf32>
    %8 = vector.broadcast %7 : vector<1x1024xf32> to vector<8x1024xf32>
    %9 = arith.subf %3, %8 : vector<8x1024xf32>
    %10 = arith.mulf %9, %9 : vector<8x1024xf32>
    %cst_5 = arith.constant dense<0.000000e+00> : vector<1024xf32>
    %11 = vector.multi_reduction <add>, %10, %cst_5 [0] : vector<8x1024xf32> to vector<1024xf32>
    %12 = vector.shape_cast %11 : vector<1024xf32> to vector<1x1024xf32>
    %cst_6 = arith.constant 8.000000e+00 : f32
    %13 = vector.broadcast %cst_6 : f32 to vector<1x1024xf32>
    %14 = arith.divf %12, %13 : vector<1x1024xf32>
    %c0_7 = arith.constant 0 : index
    %c0_8 = arith.constant 0 : index
    %15 = vector.load %arg3[%c0_7, %c0_8] : memref<1x1024xf32, #tpu.memory_space<vmem>>, vector<1x1024xf32>
    %cst_9 = arith.constant 9.99999974E-6 : f32
    %16 = vector.broadcast %cst_9 : f32 to vector<1x1024xf32>
    %17 = arith.addf %14, %16 : vector<1x1024xf32>
    %18 = math.rsqrt %17 : vector<1x1024xf32>
    %19 = arith.mulf %15, %18 : vector<1x1024xf32>
    %20 = vector.broadcast %19 : vector<1x1024xf32> to vector<8x1024xf32>
    %21 = arith.mulf %9, %20 : vector<8x1024xf32>
    %c0_10 = arith.constant 0 : index
    %c0_11 = arith.constant 0 : index
    %22 = vector.load %arg4[%c0_10, %c0_11] : memref<1x1024xf32, #tpu.memory_space<vmem>>, vector<1x1024xf32>
    %23 = vector.broadcast %22 : vector<1x1024xf32> to vector<8x1024xf32>
    %24 = arith.addf %21, %23 : vector<8x1024xf32>
    %cst_12 = arith.constant 0.000000e+00 : f32
    %25 = vector.broadcast %cst_12 : f32 to vector<8x1024xf32>
    %26 = arith.cmpf oge, %24, %25 : vector<8x1024xf32>
    %cst_13 = arith.constant 0.00999999977 : f32
    %27 = vector.broadcast %cst_13 : f32 to vector<8x1024xf32>
    %28 = arith.mulf %27, %24 : vector<8x1024xf32>
    %29 = arith.select %26, %24, %28 : vector<8x1024xi1>, vector<8x1024xf32>
    %30 = arith.truncf %29 : vector<8x1024xf32> to vector<8x1024xbf16>
    %c0_14 = arith.constant 0 : index
    %c0_15 = arith.constant 0 : index
    %31 = vector.load %arg5[%c0_14, %c0_15] : memref<1024x1024xbf16, #tpu.memory_space<vmem>>, vector<1024x1024xbf16>
    %cst_16 = arith.constant dense<0.000000e+00> : vector<8x1024xf32>
    %32 = tpu.matmul %30, %31, %cst_16 {dimension_numbers = #tpu.dot_dimension_numbers<[1], [0], [0], [1], [0, 0, 1, 1], [], []>} : vector<8x1024xbf16>, vector<1024x1024xbf16>, vector<8x1024xf32> -> vector<8x1024xf32>
    %c0_17 = arith.constant 0 : index
    %c0_18 = arith.constant 0 : index
    %33 = vector.load %arg6[%c0_17, %c0_18] : memref<1x1024xf32, #tpu.memory_space<vmem>>, vector<1x1024xf32>
    %34 = vector.broadcast %33 : vector<1x1024xf32> to vector<8x1024xf32>
    %35 = arith.addf %32, %34 : vector<8x1024xf32>
    %36 = arith.negf %35 : vector<8x1024xf32>
    %37 = math.exp %36 : vector<8x1024xf32>
    %cst_19 = arith.constant 1.000000e+00 : f32
    %38 = vector.broadcast %cst_19 : f32 to vector<8x1024xf32>
    %39 = arith.addf %38, %37 : vector<8x1024xf32>
    %40 = arith.divf %38, %39 : vector<8x1024xf32>
    %c0_20 = arith.constant 0 : index
    %c0_21 = arith.constant 0 : index
    %41 = vector.load %arg7[%c0_20, %c0_21] : memref<8x1024xf32, #tpu.memory_space<vmem>>, vector<8x1024xf32>
    tpu.vector_store %arg7[%c0_20, %c0_21], %40 {strides = array<i32>} : memref<8x1024xf32, #tpu.memory_space<vmem>>, vector<8x1024xf32>,
    return
  }
  func.func @transform_0(%arg0: i32) -> (i32, i32) {
    %c0_i32 = arith.constant 0 : i32
    %c0_i32_0 = arith.constant 0 : i32
    %c0_i32_1 = arith.constant 0 : i32
    return %c0_i32, %c0_i32_0 : i32, i32
  }
  func.func @transform_1(%arg0: i32) -> (i32, i32) {
    %c0_i32 = arith.constant 0 : i32
    %c0_i32_0 = arith.constant 0 : i32
    %c0_i32_1 = arith.constant 0 : i32
    return %c0_i32, %c0_i32_0 : i32, i32
  }
  func.func @transform_2(%arg0: i32) -> (i32, i32) {
    %c0_i32 = arith.constant 0 : i32
    %c0_i32_0 = arith.constant 0 : i32
    %c0_i32_1 = arith.constant 0 : i32
    return %c0_i32, %c0_i32_0 : i32, i32
  }
  func.func @transform_3(%arg0: i32) -> (i32, i32) {
    %c0_i32 = arith.constant 0 : i32
    %c0_i32_0 = arith.constant 0 : i32
    %c0_i32_1 = arith.constant 0 : i32
    return %c0_i32, %c0_i32_0 : i32, i32
  }
  func.func @transform_4(%arg0: i32) -> (i32, i32) {
    %c0_i32 = arith.constant 0 : i32
    %c0_i32_0 = arith.constant 0 : i32
    return %c0_i32, %arg0 : i32, i32
  }
  func.func @transform_5(%arg0: i32) -> (i32, i32) {
    %c0_i32 = arith.constant 0 : i32
    %c0_i32_0 = arith.constant 0 : i32
    return %c0_i32, %arg0 : i32, i32
  }
  func.func @transform_6(%arg0: i32) -> (i32, i32) {
    %c0_i32 = arith.constant 0 : i32
    %c0_i32_0 = arith.constant 0 : i32
    return %c0_i32, %arg0 : i32, i32
  }
}

</mosaic_0001>

<llo_original>
// kernel: color_forward.1
$region0: #{color_forward.1}
  #allocation0 [shape = 'u32[]', space=smem, size = 0x4, offset = 0x4, fixed_abs, tag = 'smem constant byte address 0x4 - core index']
  #allocation1 [shape = 'u32[144,128]{1,0:T(1,128)}', space=vmem, size = 0x12000, scoped, tag = 'internal scratch']
  %s0 = inlined_call_operand.hbm [shape: f32[8,512], index: 0, kind: input, shape index: {}]
  %s1 = inlined_call_operand.hbm [shape: bf16[512,1024], index: 1, kind: input, shape index: {}]
  %s2 = inlined_call_operand.hbm [shape: f32[1,1024], index: 2, kind: input, shape index: {}]
  %s3 = inlined_call_operand.hbm [shape: f32[1,1024], index: 3, kind: input, shape index: {}]
  %s4 = inlined_call_operand.hbm [shape: bf16[1024,2048], index: 4, kind: input, shape index: {}]
  %s5 = inlined_call_operand.hbm [shape: f32[1,2048], index: 5, kind: input, shape index: {}]
  %s6 = inlined_call_operand.vmem [shape: f32[8,2048], index: 6, kind: output, shape index: {}]
  %s7 = sld [smem:[#allocation0]]
  $region81: #{color_forward.1} parent=0
    _
  %s9 = ssub.s32 1, %s7
  %s10 = scalar_select 0, %s9, %s7
  $region1: #{color_forward.1} parent=0
    #allocation2 [shape = 'u8[16384]{0}', space=vmem, size = 0x4000, scoped, tag = 'input window, operand 0, single buffered']
    #allocation3 [shape = 's32[2]{0}', space=sflag, size = 0x8, scoped, tag = 'scoped memory for color_forward.1']
    #allocation4 [shape = 'u8[1048576]{0}', space=vmem, size = 0x100000, scoped, tag = 'input window, operand 1, single buffered']
    #allocation5 [shape = 's32[1]{0}', space=sflag, size = 0x4, scoped, tag = 'scoped memory for color_forward.1']
    #allocation6 [shape = 'u8[4096]{0}', space=vmem, size = 0x1000, scoped, tag = 'input window, operand 2, single buffered']
    #allocation7 [shape = 'u8[4096]{0}', space=vmem, size = 0x1000, scoped, tag = 'input window, operand 3, single buffered']
    #allocation8 [shape = 's32[1]{0}', space=sflag, size = 0x4, scoped, tag = 'scoped memory for color_forward.1']
    #allocation9 [shape = 'u8[4194304]{0}', space=vmem, size = 0x400000, scoped, tag = 'input window, operand 4']
    #allocation10 [shape = 'u8[8192]{0}', space=vmem, size = 0x2000, scoped, tag = 'input window, operand 5']
    %11 = vsyncpa [#allocation3], 0
    %12 = vsyncpa [#allocation5], 0
    %13 = vsyncpa [#allocation8], 0
    loop: start=0, step=1, limit=4
    $region2: #{color_forward.1} parent=1 // loop_pre_header
      _
    $region3: #{color_forward.1} parent=1 // loop_header
      %s15 = sphi 0, %s19
      %p16 = scmp.ge.s32.totalorder %s15, 4
      %s23 = sphi 0, %s23
      %s25 = sphi 0, %s23
      %s26 = sphi 0, %s25
      %s40 = sphi 0, %s26
      %s44 = sphi 0, %s44
      %s46 = sphi 0, %s44
      %s47 = sphi 0, %s46
      %s61 = sphi 0, %s47
      %s65 = sphi 0, %s65
      %s67 = sphi 0, %s65
      %s68 = sphi 0, %s67
      %s82 = sphi 0, %s68
      %s86 = sphi 0, %s86
      %s88 = sphi 0, %s86
      %s89 = sphi 0, %s88
      %s103 = sphi 0, %s89
      %s109 = sphi 0, %s111
      %s112 = sphi 0, %s109
      %s113 = sphi 0, %s112
      %s129 = sphi 0, %s113
      %s135 = sphi 0, %s137
      %s138 = sphi 0, %s135
      %s139 = sphi 0, %s138
      %s155 = sphi 0, %s139
      %s161 = sphi 0, %s163
      %s164 = sphi 0, %s161
      %s165 = sphi 0, %s164
      %s181 = sphi 0, %s165
    $region4: #{color_forward.1} parent=1 // loop_header_branch
      %18 = sbr.rel (%p16) target = $region8
    $region5: #{color_forward.1} parent=1 // loop_body
      %s20 = ssub.s32 %s15, 1
      %s21 = ssub.s32 %s15, 2
      %s22 = sadd.s32 %s15, 1
      %s24 = sadd.s32 %s23, 1
      %p27 = scmp.eq.s32.totalorder %s15, 1
      %p28 = scmp.ne.s32.totalorder %s23, %s25
      %p29 = scmp.eq.s32.totalorder %s15, 0
      %p30 = por %p28, %p29
      %p31 = scmp.ne.s32.totalorder %s23, %s25
      %p32 = scmp.eq.s32.totalorder %s20, 1
      %p33 = por %p31, %p32
      %p34 = scmp.ne.s32.totalorder %s25, %s26
      %p35 = scmp.eq.s32.totalorder %s20, 0
      %p36 = por %p34, %p35
      %p37 = scmp.ne.s32.totalorder %s25, %s26
      %p38 = scmp.eq.s32.totalorder %s21, 1
      %p39 = por %p37, %p38
      %p41 = scmp.ne.s32.totalorder %s26, %s40
      %p42 = scmp.eq.s32.totalorder %s21, 0
      %p43 = por %p41, %p42
      %s45 = sadd.s32 %s44, 1
      %p48 = scmp.eq.s32.totalorder %s15, 1
      %p49 = scmp.ne.s32.totalorder %s44, %s46
      %p50 = scmp.eq.s32.totalorder %s15, 0
      %p51 = por %p49, %p50
      %p52 = scmp.ne.s32.totalorder %s44, %s46
      %p53 = scmp.eq.s32.totalorder %s20, 1
      %p54 = por %p52, %p53
      %p55 = scmp.ne.s32.totalorder %s46, %s47
      %p56 = scmp.eq.s32.totalorder %s20, 0
      %p57 = por %p55, %p56
      %p58 = scmp.ne.s32.totalorder %s46, %s47
      %p59 = scmp.eq.s32.totalorder %s21, 1
      %p60 = por %p58, %p59
      %p62 = scmp.ne.s32.totalorder %s47, %s61
      %p63 = scmp.eq.s32.totalorder %s21, 0
      %p64 = por %p62, %p63
      %s66 = sadd.s32 %s65, 1
      %p69 = scmp.eq.s32.totalorder %s15, 1
      %p70 = scmp.ne.s32.totalorder %s65, %s67
      %p71 = scmp.eq.s32.totalorder %s15, 0
      %p72 = por %p70, %p71
      %p73 = scmp.ne.s32.totalorder %s65, %s67
      %p74 = scmp.eq.s32.totalorder %s20, 1
      %p75 = por %p73, %p74
      %p76 = scmp.ne.s32.totalorder %s67, %s68
      %p77 = scmp.eq.s32.totalorder %s20, 0
      %p78 = por %p76, %p77
      %p79 = scmp.ne.s32.totalorder %s67, %s68
      %p80 = scmp.eq.s32.totalorder %s21, 1
      %p81 = por %p79, %p80
      %p83 = scmp.ne.s32.totalorder %s68, %s82
      %p84 = scmp.eq.s32.totalorder %s21, 0
      %p85 = por %p83, %p84
      %s87 = sadd.s32 %s86, 1
      %p90 = scmp.eq.s32.totalorder %s15, 1
      %p91 = scmp.ne.s32.totalorder %s86, %s88
      %p92 = scmp.eq.s32.totalorder %s15, 0
      %p93 = por %p91, %p92
      %p94 = scmp.ne.s32.totalorder %s86, %s88
      %p95 = scmp.eq.s32.totalorder %s20, 1
      %p96 = por %p94, %p95
      %p97 = scmp.ne.s32.totalorder %s88, %s89
      %p98 = scmp.eq.s32.totalorder %s20, 0
      %p99 = por %p97, %p98
      %p100 = scmp.ne.s32.totalorder %s88, %s89
      %p101 = scmp.eq.s32.totalorder %s21, 1
      %p102 = por %p100, %p101
      %p104 = scmp.ne.s32.totalorder %s89, %s103
      %p105 = scmp.eq.s32.totalorder %s21, 0
      %p106 = por %p104, %p105
      %s107 = ssub.s32 %s15, %s22
      %p108 = scmp.eq.s32.totalorder %s107, 0
      %s110 = sadd.s32 %s109, 1
      %s111 = scalar_select %p108, %s109, %s110
      %p114 = pneg %p108
      %p115 = scmp.eq.s32.totalorder %s15, 1
      %p116 = por %p114, %p115
      %p117 = scmp.ne.s32.totalorder %s109, %s112
      %p118 = scmp.eq.s32.totalorder %s15, 0
      %p119 = por %p117, %p118
      %p120 = scmp.ne.s32.totalorder %s109, %s112
      %p121 = scmp.eq.s32.totalorder %s20, 1
      %p122 = por %p120, %p121
      %p123 = scmp.ne.s32.totalorder %s112, %s113
      %p124 = scmp.eq.s32.totalorder %s20, 0
      %p125 = por %p123, %p124
      %p126 = scmp.ne.s32.totalorder %s112, %s113
      %p127 = scmp.eq.s32.totalorder %s21, 1
      %p128 = por %p126, %p127
      %p130 = scmp.ne.s32.totalorder %s113, %s129
      %p131 = scmp.eq.s32.totalorder %s21, 0
      %p132 = por %p130, %p131
      %s133 = ssub.s32 %s15, %s22
      %p134 = scmp.eq.s32.totalorder %s133, 0
      %s136 = sadd.s32 %s135, 1
      %s137 = scalar_select %p134, %s135, %s136
      %p140 = pneg %p134
      %p141 = scmp.eq.s32.totalorder %s15, 1
      %p142 = por %p140, %p141
      %p143 = scmp.ne.s32.totalorder %s135, %s138
      %p144 = scmp.eq.s32.totalorder %s15, 0
      %p145 = por %p143, %p144
      %p146 = scmp.ne.s32.totalorder %s135, %s138
      %p147 = scmp.eq.s32.totalorder %s20, 1
      %p148 = por %p146, %p147
      %p149 = scmp.ne.s32.totalorder %s138, %s139
      %p150 = scmp.eq.s32.totalorder %s20, 0
      %p151 = por %p149, %p150
      %p152 = scmp.ne.s32.totalorder %s138, %s139
      %p153 = scmp.eq.s32.totalorder %s21, 1
      %p154 = por %p152, %p153
      %p156 = scmp.ne.s32.totalorder %s139, %s155
      %p157 = scmp.eq.s32.totalorder %s21, 0
      %p158 = por %p156, %p157
      %s159 = ssub.s32 %s15, %s22
      %p160 = scmp.eq.s32.totalorder %s159, 0
      %s162 = sadd.s32 %s161, 1
      %s163 = scalar_select %p160, %s161, %s162
      %p166 = pneg %p160
      %p167 = scmp.eq.s32.totalorder %s15, 1
      %p168 = por %p166, %p167
      %p169 = scmp.ne.s32.totalorder %s161, %s164
      %p170 = scmp.eq.s32.totalorder %s15, 0
      %p171 = por %p169, %p170
      %p172 = scmp.ne.s32.totalorder %s161, %s164
      %p173 = scmp.eq.s32.totalorder %s20, 1
      %p174 = por %p172, %p173
      %p175 = scmp.ne.s32.totalorder %s164, %s165
      %p176 = scmp.eq.s32.totalorder %s20, 0
      %p177 = por %p175, %p176
      %p178 = scmp.ne.s32.totalorder %s164, %s165
      %p179 = scmp.eq.s32.totalorder %s21, 1
      %p180 = por %p178, %p179
      %p182 = scmp.ne.s32.totalorder %s165, %s181
      %p183 = scmp.eq.s32.totalorder %s21, 0
      %p184 = por %p182, %p183
      %p185 = scmp.le.s32.totalorder 1, %s15
      %p186 = scmp.lt.s32.totalorder %s15, 3
      %p187 = pnand %p185, %p186
      %p188 = pneg %p187
      // Predicated region
      $region9: #{color_forward.1} parent=5 // pred_check
        _
      $region10: #{color_forward.1} parent=5 // pred_check_branch
        %190 = sbr.rel (%p187) target = $region12
      $region11: #{color_forward.1} parent=5 // pred_region
        %s191 = ssub.s32 %s15, 1
        // Predicated region
        $region13: #{color_forward.1} parent=11 // pred_check
          %p192 = pneg %p36
        $region14: #{color_forward.1} parent=11 // pred_check_branch
          %194 = sbr.rel (%p192) target = $region16
        $region15: #{color_forward.1} parent=11 // pred_region
          %s196 = ssub.s32 512, 512
          %197 = vsyncadd [#allocation3], %s196
          %s199 = sshll.u32 [#allocation2], 4
          %s200 = int_to_ptr.vmem [resolvable:$true] %s199
          %202 = dma.hbm_to_vmem [thread:$0]  %s0, 512, %s200, [#allocation3]
        $region16: #{color_forward.1} parent=11 // pred_fallthru
          _
        // Predicated region
        $region17: #{color_forward.1} parent=11 // pred_check
          %p203 = pneg %p57
        $region18: #{color_forward.1} parent=11 // pred_check_branch
          %205 = sbr.rel (%p203) target = $region20
        $region19: #{color_forward.1} parent=11 // pred_region
          %s207 = ssub.s32 32768, 32768
          %208 = vsyncadd [#allocation5], %s207
          %s209 = sshll.u32 [#allocation4], 4
          %s210 = int_to_ptr.vmem [resolvable:$true] %s209
          %215 = dma.hbm_to_vmem [thread:$0]  %s1, 32768, %s210, [#allocation5], 512, 512, 32
        $region20: #{color_forward.1} parent=11 // pred_fallthru
          _
        // Predicated region
        $region21: #{color_forward.1} parent=11 // pred_check
          %p216 = pneg %p78
        $region22: #{color_forward.1} parent=11 // pred_check_branch
          %218 = sbr.rel (%p216) target = $region24
        $region23: #{color_forward.1} parent=11 // pred_region
          %s220 = ssub.s32 128, 128
          %221 = vsyncadd [#allocation5], %s220
          %s223 = sshll.u32 [#allocation6], 4
          %s224 = int_to_ptr.vmem [resolvable:$true] %s223
          %226 = dma.hbm_to_vmem [thread:$0]  %s2, 128, %s224, [#allocation5]
        $region24: #{color_forward.1} parent=11 // pred_fallthru
          _
        // Predicated region
        $region25: #{color_forward.1} parent=11 // pred_check
          %p227 = pneg %p99
        $region26: #{color_forward.1} parent=11 // pred_check_branch
          %229 = sbr.rel (%p227) target = $region28
        $region27: #{color_forward.1} parent=11 // pred_region
          %s231 = ssub.s32 128, 128
          %232 = vsyncadd [#allocation8], %s231
          %s234 = sshll.u32 [#allocation7], 4
          %s235 = int_to_ptr.vmem [resolvable:$true] %s234
          %237 = dma.hbm_to_vmem [thread:$0]  %s3, 128, %s235, [#allocation8]
        $region28: #{color_forward.1} parent=11 // pred_fallthru
          _
      $region12: #{color_forward.1} parent=5 // pred_fallthru
        _
      %p238 = scmp.lt.s32.totalorder %s15, 2
      // Predicated region
      $region29: #{color_forward.1} parent=5 // pred_check
        %p239 = pneg %p238
      $region30: #{color_forward.1} parent=5 // pred_check_branch
        %241 = sbr.rel (%p239) target = $region32
      $region31: #{color_forward.1} parent=5 // pred_region
        // Predicated region
        $region33: #{color_forward.1} parent=31 // pred_check
          %p242 = pneg %p119
        $region34: #{color_forward.1} parent=31 // pred_check_branch
          %244 = sbr.rel (%p242) target = $region36
        $region35: #{color_forward.1} parent=31 // pred_region
          %s245 = sand.u32 %s15, 1
          %s246 = scalar_lea.sflag [#allocation3], %s245
          %s247 = sand.u32 %s109, 1
          %s248 = smul.addr %s247, 4096
          %s249 = scalar_lea.vmem [#allocation9], %s248
          %s250 = smul.u32 8, %s15
          %s252 = ssub.s32 65536, 65536
          %253 = vsyncadd %s246, %s252
          %s254 = smul.addr %s250, 64
          %s255 = scalar_lea.hbm %s4, %s254
          %s256 = sshll.u32 %s249, 4
          %s257 = int_to_ptr.vmem [resolvable:$true] %s256
          %262 = dma.hbm_to_vmem [thread:$0]  %s255, 65536, %s257, %s246, 1024, 512, 32
        $region36: #{color_forward.1} parent=31 // pred_fallthru
          _
        // Predicated region
        $region37: #{color_forward.1} parent=31 // pred_check
          %p263 = pneg %p145
        $region38: #{color_forward.1} parent=31 // pred_check_branch
          %265 = sbr.rel (%p263) target = $region40
        $region39: #{color_forward.1} parent=31 // pred_region
          %s266 = sand.u32 %s15, 1
          %s267 = scalar_lea.sflag [#allocation3], %s266
          %s268 = sand.u32 %s135, 1
          %s269 = smul.addr %s268, 8
          %s270 = scalar_lea.vmem [#allocation10], %s269
          %s271 = smul.u32 8, %s15
          %s273 = ssub.s32 128, 128
          %274 = vsyncadd %s267, %s273
          %s275 = smul.addr %s271, 16
          %s276 = scalar_lea.hbm %s5, %s275
          %s278 = sshll.u32 %s270, 4
          %s279 = int_to_ptr.vmem [resolvable:$true] %s278
          %281 = dma.hbm_to_vmem [thread:$0]  %s276, 128, %s279, %s267
        $region40: #{color_forward.1} parent=31 // pred_fallthru
          _
      $region32: #{color_forward.1} parent=5 // pred_fallthru
        _
      %p282 = scmp.le.s32.totalorder 1, %s15
      %p283 = scmp.lt.s32.totalorder %s15, 3
      %p284 = pnand %p282, %p283
      %p285 = pneg %p284
      // Predicated region
      $region41: #{color_forward.1} parent=5 // pred_check
        _
      $region42: #{color_forward.1} parent=5 // pred_check_branch
        %287 = sbr.rel (%p284) target = $region44
      $region43: #{color_forward.1} parent=5 // pred_region
        %s288 = ssub.s32 %s15, 1
        // Predicated region
        $region45: #{color_forward.1} parent=43 // pred_check
          %p289 = pneg %p36
        $region46: #{color_forward.1} parent=43 // pred_check_branch
          %291 = sbr.rel (%p289) target = $region48
        $region47: #{color_forward.1} parent=43 // pred_region
          %292 = dma.done [#allocation3], 512
        $region48: #{color_forward.1} parent=43 // pred_fallthru
          _
        // Predicated region
        $region49: #{color_forward.1} parent=43 // pred_check
          %p293 = pneg %p57
        $region50: #{color_forward.1} parent=43 // pred_check_branch
          %295 = sbr.rel (%p293) target = $region52
        $region51: #{color_forward.1} parent=43 // pred_region
          %296 = dma.done [#allocation5], 32768
        $region52: #{color_forward.1} parent=43 // pred_fallthru
          _
        // Predicated region
        $region53: #{color_forward.1} parent=43 // pred_check
          %p297 = pneg %p78
        $region54: #{color_forward.1} parent=43 // pred_check_branch
          %299 = sbr.rel (%p297) target = $region56
        $region55: #{color_forward.1} parent=43 // pred_region
          %300 = dma.done [#allocation5], 128
        $region56: #{color_forward.1} parent=43 // pred_fallthru
          _
        // Predicated region
        $region57: #{color_forward.1} parent=43 // pred_check
          %p301 = pneg %p99
        $region58: #{color_forward.1} parent=43 // pred_check_branch
          %303 = sbr.rel (%p301) target = $region60
        $region59: #{color_forward.1} parent=43 // pred_region
          %304 = dma.done [#allocation8], 128
        $region60: #{color_forward.1} parent=43 // pred_fallthru
          _
        %s305 = sand.u32 %s20, 1
        %s306 = scalar_lea.sflag [#allocation3], %s305
        %s307 = sand.u32 %s112, 1
        %s308 = smul.addr %s307, 4096
        %s309 = scalar_lea.vmem [#allocation9], %s308
        // Predicated region
        $region61: #{color_forward.1} parent=43 // pred_check
          %p310 = pneg %p125
        $region62: #{color_forward.1} parent=43 // pred_check_branch
          %312 = sbr.rel (%p310) target = $region64
        $region63: #{color_forward.1} parent=43 // pred_region
          %313 = dma.done %s306, 65536
        $region64: #{color_forward.1} parent=43 // pred_fallthru
          _
        %s314 = sand.u32 %s20, 1
        %s315 = scalar_lea.sflag [#allocation3], %s314
        %s316 = sand.u32 %s138, 1
        %s317 = smul.addr %s316, 8
        %s318 = scalar_lea.vmem [#allocation10], %s317
        // Predicated region
        $region65: #{color_forward.1} parent=43 // pred_check
          %p319 = pneg %p151
        $region66: #{color_forward.1} parent=43 // pred_check_branch
          %321 = sbr.rel (%p319) target = $region68
        $region67: #{color_forward.1} parent=43 // pred_region
          %322 = dma.done %s315, 128
        $region68: #{color_forward.1} parent=43 // pred_fallthru
          _
        %p323 = pneg %p36
        %p324 = pneg %p33
        %p325 = pneg %p57
        %p326 = pneg %p54
        %p327 = pneg %p78
        %p328 = pneg %p75
        %p329 = pneg %p99
        %p330 = pneg %p96
        %s331 = sand.u32 %s20, 1
        %s332 = scalar_lea.sflag [#allocation3], %s331
        %s333 = sand.u32 %s112, 1
        %s334 = smul.addr %s333, 4096
        %s335 = scalar_lea.vmem [#allocation9], %s334
        %p336 = pneg %p125
        %p337 = pneg %p122
        %s338 = sand.u32 %s20, 1
        %s339 = scalar_lea.sflag [#allocation3], %s338
        %s340 = sand.u32 %s138, 1
        %s341 = smul.addr %s340, 8
        %s342 = scalar_lea.vmem [#allocation10], %s341
        %p343 = pneg %p151
        %p344 = pneg %p148
        %p345 = pneg %p177
        %p346 = pneg %p174
        %s347 = smul.u32 8, %s20
        %p348 = scmp.lt.s32.totalorder %s347, 15
        %s349 = scalar_select %p348, %s347, 15
        %s350 = smul.addr %s349, 8
        %s351 = scalar_lea.vmem %s6, %s350
        %s352 = smul.u32 8, %s20
        %s353 = smul.u32 8, %s20
        %s354 = smul.u32 8, %s20
        %p355 = scmp.lt.s32.totalorder %s354, 15
        %s356 = scalar_select %p355, %s354, 15
        %s357 = smul.addr %s356, 8
        %s358 = scalar_lea.vmem %s6, %s357
        %s359 = smul.u32 8, %s20
        %v360 = vld [vmem:[#allocation2] sm:$0xff]
        %v361 = vld [vmem:[#allocation2 + $0x8] sm:$0xff]
        %v362 = vld [vmem:[#allocation2 + $0x10] sm:$0xff]
        %v363 = vld [vmem:[#allocation2 + $0x18] sm:$0xff]
        %v364 = vpack.c.bf16 %v360, %v360
        %v365 = vpack.c.bf16 %v361, %v361
        %v366 = vpack.c.bf16 %v362, %v362
        %v367 = vpack.c.bf16 %v363, %v363
        %v368 = vld [vmem:[#allocation4] sm:$0xff]
        %v369 = vld [vmem:[#allocation4 + $0x8] sm:$0xff]
        %v370 = vld [vmem:[#allocation4 + $0x10] sm:$0xff]
        %v371 = vld [vmem:[#allocation4 + $0x18] sm:$0xff]
        %v372 = vld [vmem:[#allocation4 + $0x20] sm:$0xff]
        %v373 = vld [vmem:[#allocation4 + $0x28] sm:$0xff]
        %v374 = vld [vmem:[#allocation4 + $0x30] sm:$0xff]
        %v375 = vld [vmem:[#allocation4 + $0x38] sm:$0xff]
        %v376 = vld [vmem:[#allocation4 + $0x40] sm:$0xff]
        %v377 = vld [vmem:[#allocation4 + $0x48] sm:$0xff]
        %v378 = vld [vmem:[#allocation4 + $0x50] sm:$0xff]
        %v379 = vld [vmem:[#allocation4 + $0x58] sm:$0xff]
        %v380 = vld [vmem:[#allocation4 + $0x60] sm:$0xff]
        %v381 = vld [vmem:[#allocation4 + $0x68] sm:$0xff]
        %v382 = vld [vmem:[#allocation4 + $0x70] sm:$0xff]
        %v383 = vld [vmem:[#allocation4 + $0x78] sm:$0xff]
        %v384 = vld [vmem:[#allocation4 + $0x80] sm:$0xff]
        %v385 = vld [vmem:[#allocation4 + $0x88] sm:$0xff]
        %v386 = vld [vmem:[#allocation4 + $0x90] sm:$0xff]
        %v387 = vld [vmem:[#allocation4 + $0x98] sm:$0xff]
        %v388 = vld [vmem:[#allocation4 + $0xa0] sm:$0xff]
        %v389 = vld [vmem:[#allocation4 + $0xa8] sm:$0xff]
        %v390 = vld [vmem:[#allocation4 + $0xb0] sm:$0xff]
        %v391 = vld [vmem:[#allocation4 + $0xb8] sm:$0xff]
        %v392 = vld [vmem:[#allocation4 + $0xc0] sm:$0xff]
        %v393 = vld [vmem:[#allocation4 + $0xc8] sm:$0xff]
        %v394 = vld [vmem:[#allocation4 + $0xd0] sm:$0xff]
        %v395 = vld [vmem:[#allocation4 + $0xd8] sm:$0xff]
        %v396 = vld [vmem:[#allocation4 + $0xe0] sm:$0xff]
        %v397 = vld [vmem:[#allocation4 + $0xe8] sm:$0xff]
        %v398 = vld [vmem:[#allocation4 + $0xf0] sm:$0xff]
        %v399 = vld [vmem:[#allocation4 + $0xf8] sm:$0xff]
        %v400 = vld [vmem:[#allocation4 + $0x100] sm:$0xff]
        %v401 = vld [vmem:[#allocation4 + $0x108] sm:$0xff]
        %v402 = vld [vmem:[#allocation4 + $0x110] sm:$0xff]
        %v403 = vld [vmem:[#allocation4 + $0x118] sm:$0xff]
        %v404 = vld [vmem:[#allocation4 + $0x120] sm:$0xff]
        %v405 = vld [vmem:[#allocation4 + $0x128] sm:$0xff]
        %v406 = vld [vmem:[#allocation4 + $0x130] sm:$0xff]
        %v407 = vld [vmem:[#allocation4 + $0x138] sm:$0xff]
        %v408 = vld [vmem:[#allocation4 + $0x140] sm:$0xff]
        %v409 = vld [vmem:[#allocation4 + $0x148] sm:$0xff]
        %v410 = vld [vmem:[#allocation4 + $0x150] sm:$0xff]
        %v411 = vld [vmem:[#allocation4 + $0x158] sm:$0xff]
        %v412 = vld [vmem:[#allocation4 + $0x160] sm:$0xff]
        %v413 = vld [vmem:[#allocation4 + $0x168] sm:$0xff]
        %v414 = vld [vmem:[#allocation4 + $0x170] sm:$0xff]
        %v415 = vld [vmem:[#allocation4 + $0x178] sm:$0xff]
        %v416 = vld [vmem:[#allocation4 + $0x180] sm:$0xff]
        %v417 = vld [vmem:[#allocation4 + $0x188] sm:$0xff]
        %v418 = vld [vmem:[#allocation4 + $0x190] sm:$0xff]
        %v419 = vld [vmem:[#allocation4 + $0x198] sm:$0xff]
        %v420 = vld [vmem:[#allocation4 + $0x1a0] sm:$0xff]
        %v421 = vld [vmem:[#allocation4 + $0x1a8] sm:$0xff]
        %v422 = vld [vmem:[#allocation4 + $0x1b0] sm:$0xff]
        %v423 = vld [vmem:[#allocation4 + $0x1b8] sm:$0xff]
        %v424 = vld [vmem:[#allocation4 + $0x1c0] sm:$0xff]
        %v425 = vld [vmem:[#allocation4 + $0x1c8] sm:$0xff]
        %v426 = vld [vmem:[#allocation4 + $0x1d0] sm:$0xff]
        %v427 = vld [vmem:[#allocation4 + $0x1d8] sm:$0xff]
        %v428 = vld [vmem:[#allocation4 + $0x1e0] sm:$0xff]
        %v429 = vld [vmem:[#allocation4 + $0x1e8] sm:$0xff]
        %v430 = vld [vmem:[#allocation4 + $0x1f0] sm:$0xff]
        %v431 = vld [vmem:[#allocation4 + $0x1f8] sm:$0xff]
        %v432 = vld [vmem:[#allocation4 + $0x200] sm:$0xff]
        %v433 = vld [vmem:[#allocation4 + $0x208] sm:$0xff]
        %v434 = vld [vmem:[#allocation4 + $0x210] sm:$0xff]
        %v435 = vld [vmem:[#allocation4 + $0x218] sm:$0xff]
        %v436 = vld [vmem:[#allocation4 + $0x220] sm:$0xff]
        %v437 = vld [vmem:[#allocation4 + $0x228] sm:$0xff]
        %v438 = vld [vmem:[#allocation4 + $0x230] sm:$0xff]
        %v439 = vld [vmem:[#allocation4 + $0x238] sm:$0xff]
        %v440 = vld [vmem:[#allocation4 + $0x240] sm:$0xff]
        %v441 = vld [vmem:[#allocation4 + $0x248] sm:$0xff]
        %v442 = vld [vmem:[#allocation4 + $0x250] sm:$0xff]
        %v443 = vld [vmem:[#allocation4 + $0x258] sm:$0xff]
        %v444 = vld [vmem:[#allocation4 + $0x260] sm:$0xff]
        %v445 = vld [vmem:[#allocation4 + $0x268] sm:$0xff]
        %v446 = vld [vmem:[#allocation4 + $0x270] sm:$0xff]
        %v447 = vld [vmem:[#allocation4 + $0x278] sm:$0xff]
        %v448 = vld [vmem:[#allocation4 + $0x280] sm:$0xff]
        %v449 = vld [vmem:[#allocation4 + $0x288] sm:$0xff]
        %v450 = vld [vmem:[#allocation4 + $0x290] sm:$0xff]
        %v451 = vld [vmem:[#allocation4 + $0x298] sm:$0xff]
        %v452 = vld [vmem:[#allocation4 + $0x2a0] sm:$0xff]
        %v453 = vld [vmem:[#allocation4 + $0x2a8] sm:$0xff]
        %v454 = vld [vmem:[#allocation4 + $0x2b0] sm:$0xff]
        %v455 = vld [vmem:[#allocation4 + $0x2b8] sm:$0xff]
        %v456 = vld [vmem:[#allocation4 + $0x2c0] sm:$0xff]
        %v457 = vld [vmem:[#allocation4 + $0x2c8] sm:$0xff]
        %v458 = vld [vmem:[#allocation4 + $0x2d0] sm:$0xff]
        %v459 = vld [vmem:[#allocation4 + $0x2d8] sm:$0xff]
        %v460 = vld [vmem:[#allocation4 + $0x2e0] sm:$0xff]
        %v461 = vld [vmem:[#allocation4 + $0x2e8] sm:$0xff]
        %v462 = vld [vmem:[#allocation4 + $0x2f0] sm:$0xff]
        %v463 = vld [vmem:[#allocation4 + $0x2f8] sm:$0xff]
        %v464 = vld [vmem:[#allocation4 + $0x300] sm:$0xff]
        %v465 = vld [vmem:[#allocation4 + $0x308] sm:$0xff]
        %v466 = vld [vmem:[#allocation4 + $0x310] sm:$0xff]
        %v467 = vld [vmem:[#allocation4 + $0x318] sm:$0xff]
        %v468 = vld [vmem:[#allocation4 + $0x320] sm:$0xff]
        %v469 = vld [vmem:[#allocation4 + $0x328] sm:$0xff]
        %v470 = vld [vmem:[#allocation4 + $0x330] sm:$0xff]
        %v471 = vld [vmem:[#allocation4 + $0x338] sm:$0xff]
        %v472 = vld [vmem:[#allocation4 + $0x340] sm:$0xff]
        %v473 = vld [vmem:[#allocation4 + $0x348] sm:$0xff]
        %v474 = vld [vmem:[#allocation4 + $0x350] sm:$0xff]
        %v475 = vld [vmem:[#allocation4 + $0x358] sm:$0xff]
        %v476 = vld [vmem:[#allocation4 + $0x360] sm:$0xff]
        %v477 = vld [vmem:[#allocation4 + $0x368] sm:$0xff]
        %v478 = vld [vmem:[#allocation4 + $0x370] sm:$0xff]
        %v479 = vld [vmem:[#allocation4 + $0x378] sm:$0xff]
        %v480 = vld [vmem:[#allocation4 + $0x380] sm:$0xff]
        %v481 = vld [vmem:[#allocation4 + $0x388] sm:$0xff]
        %v482 = vld [vmem:[#allocation4 + $0x390] sm:$0xff]
        %v483 = vld [vmem:[#allocation4 + $0x398] sm:$0xff]
        %v484 = vld [vmem:[#allocation4 + $0x3a0] sm:$0xff]
        %v485 = vld [vmem:[#allocation4 + $0x3a8] sm:$0xff]
        %v486 = vld [vmem:[#allocation4 + $0x3b0] sm:$0xff]
        %v487 = vld [vmem:[#allocation4 + $0x3b8] sm:$0xff]
        %v488 = vld [vmem:[#allocation4 + $0x3c0] sm:$0xff]
        %v489 = vld [vmem:[#allocation4 + $0x3c8] sm:$0xff]
        %v490 = vld [vmem:[#allocation4 + $0x3d0] sm:$0xff]
        %v491 = vld [vmem:[#allocation4 + $0x3d8] sm:$0xff]
        %v492 = vld [vmem:[#allocation4 + $0x3e0] sm:$0xff]
        %v493 = vld [vmem:[#allocation4 + $0x3e8] sm:$0xff]
        %v494 = vld [vmem:[#allocation4 + $0x3f0] sm:$0xff]
        %v495 = vld [vmem:[#allocation4 + $0x3f8] sm:$0xff]
        %v496 = vld [vmem:[#allocation4 + $0x400] sm:$0xff]
        %v497 = vld [vmem:[#allocation4 + $0x408] sm:$0xff]
        %v498 = vld [vmem:[#allocation4 + $0x410] sm:$0xff]
        %v499 = vld [vmem:[#allocation4 + $0x418] sm:$0xff]
        %v500 = vld [vmem:[#allocation4 + $0x420] sm:$0xff]
        %v501 = vld [vmem:[#allocation4 + $0x428] sm:$0xff]
        %v502 = vld [vmem:[#allocation4 + $0x430] sm:$0xff]
        %v503 = vld [vmem:[#allocation4 + $0x438] sm:$0xff]
        %v504 = vld [vmem:[#allocation4 + $0x440] sm:$0xff]
        %v505 = vld [vmem:[#allocation4 + $0x448] sm:$0xff]
        %v506 = vld [vmem:[#allocation4 + $0x450] sm:$0xff]
        %v507 = vld [vmem:[#allocation4 + $0x458] sm:$0xff]
        %v508 = vld [vmem:[#allocation4 + $0x460] sm:$0xff]
        %v509 = vld [vmem:[#allocation4 + $0x468] sm:$0xff]
        %v510 = vld [vmem:[#allocation4 + $0x470] sm:$0xff]
        %v511 = vld [vmem:[#allocation4 + $0x478] sm:$0xff]
        %v512 = vld [vmem:[#allocation4 + $0x480] sm:$0xff]
        %v513 = vld [vmem:[#allocation4 + $0x488] sm:$0xff]
        %v514 = vld [vmem:[#allocation4 + $0x490] sm:$0xff]
        %v515 = vld [vmem:[#allocation4 + $0x498] sm:$0xff]
        %v516 = vld [vmem:[#allocation4 + $0x4a0] sm:$0xff]
        %v517 = vld [vmem:[#allocation4 + $0x4a8] sm:$0xff]
        %v518 = vld [vmem:[#allocation4 + $0x4b0] sm:$0xff]
        %v519 = vld [vmem:[#allocation4 + $0x4b8] sm:$0xff]
        %v520 = vld [vmem:[#allocation4 + $0x4c0] sm:$0xff]
        %v521 = vld [vmem:[#allocation4 + $0x4c8] sm:$0xff]
        %v522 = vld [vmem:[#allocation4 + $0x4d0] sm:$0xff]
        %v523 = vld [vmem:[#allocation4 + $0x4d8] sm:$0xff]
        %v524 = vld [vmem:[#allocation4 + $0x4e0] sm:$0xff]
        %v525 = vld [vmem:[#allocation4 + $0x4e8] sm:$0xff]
        %v526 = vld [vmem:[#allocation4 + $0x4f0] sm:$0xff]
        %v527 = vld [vmem:[#allocation4 + $0x4f8] sm:$0xff]
        %v528 = vld [vmem:[#allocation4 + $0x500] sm:$0xff]
        %v529 = vld [vmem:[#allocation4 + $0x508] sm:$0xff]
        %v530 = vld [vmem:[#allocation4 + $0x510] sm:$0xff]
        %v531 = vld [vmem:[#allocation4 + $0x518] sm:$0xff]
        %v532 = vld [vmem:[#allocation4 + $0x520] sm:$0xff]
        %v533 = vld [vmem:[#allocation4 + $0x528] sm:$0xff]
        %v534 = vld [vmem:[#allocation4 + $0x530] sm:$0xff]
        %v535 = vld [vmem:[#allocation4 + $0x538] sm:$0xff]
        %v536 = vld [vmem:[#allocation4 + $0x540] sm:$0xff]
        %v537 = vld [vmem:[#allocation4 + $0x548] sm:$0xff]
        %v538 = vld [vmem:[#allocation4 + $0x550] sm:$0xff]
        %v539 = vld [vmem:[#allocation4 + $0x558] sm:$0xff]
        %v540 = vld [vmem:[#allocation4 + $0x560] sm:$0xff]
        %v541 = vld [vmem:[#allocation4 + $0x568] sm:$0xff]
        %v542 = vld [vmem:[#allocation4 + $0x570] sm:$0xff]
        %v543 = vld [vmem:[#allocation4 + $0x578] sm:$0xff]
        %v544 = vld [vmem:[#allocation4 + $0x580] sm:$0xff]
        %v545 = vld [vmem:[#allocation4 + $0x588] sm:$0xff]
        %v546 = vld [vmem:[#allocation4 + $0x590] sm:$0xff]
        %v547 = vld [vmem:[#allocation4 + $0x598] sm:$0xff]
        %v548 = vld [vmem:[#allocation4 + $0x5a0] sm:$0xff]
        %v549 = vld [vmem:[#allocation4 + $0x5a8] sm:$0xff]
        %v550 = vld [vmem:[#allocation4 + $0x5b0] sm:$0xff]
        %v551 = vld [vmem:[#allocation4 + $0x5b8] sm:$0xff]
        %v552 = vld [vmem:[#allocation4 + $0x5c0] sm:$0xff]
        %v553 = vld [vmem:[#allocation4 + $0x5c8] sm:$0xff]
        %v554 = vld [vmem:[#allocation4 + $0x5d0] sm:$0xff]
        %v555 = vld [vmem:[#allocation4 + $0x5d8] sm:$0xff]
        %v556 = vld [vmem:[#allocation4 + $0x5e0] sm:$0xff]
        %v557 = vld [vmem:[#allocation4 + $0x5e8] sm:$0xff]
        %v558 = vld [vmem:[#allocation4 + $0x5f0] sm:$0xff]
        %v559 = vld [vmem:[#allocation4 + $0x5f8] sm:$0xff]
        %v560 = vld [vmem:[#allocation4 + $0x600] sm:$0xff]
        %v561 = vld [vmem:[#allocation4 + $0x608] sm:$0xff]
        %v562 = vld [vmem:[#allocation4 + $0x610] sm:$0xff]
        %v563 = vld [vmem:[#allocation4 + $0x618] sm:$0xff]
        %v564 = vld [vmem:[#allocation4 + $0x620] sm:$0xff]
        %v565 = vld [vmem:[#allocation4 + $0x628] sm:$0xff]
        %v566 = vld [vmem:[#allocation4 + $0x630] sm:$0xff]
        %v567 = vld [vmem:[#allocation4 + $0x638] sm:$0xff]
        %v568 = vld [vmem:[#allocation4 + $0x640] sm:$0xff]
        %v569 = vld [vmem:[#allocation4 + $0x648] sm:$0xff]
        %v570 = vld [vmem:[#allocation4 + $0x650] sm:$0xff]
        %v571 = vld [vmem:[#allocation4 + $0x658] sm:$0xff]
        %v572 = vld [vmem:[#allocation4 + $0x660] sm:$0xff]
        %v573 = vld [vmem:[#allocation4 + $0x668] sm:$0xff]
        %v574 = vld [vmem:[#allocation4 + $0x670] sm:$0xff]
        %v575 = vld [vmem:[#allocation4 + $0x678] sm:$0xff]
        %v576 = vld [vmem:[#allocation4 + $0x680] sm:$0xff]
        %v577 = vld [vmem:[#allocation4 + $0x688] sm:$0xff]
        %v578 = vld [vmem:[#allocation4 + $0x690] sm:$0xff]
        %v579 = vld [vmem:[#allocation4 + $0x698] sm:$0xff]
        %v580 = vld [vmem:[#allocation4 + $0x6a0] sm:$0xff]
        %v581 = vld [vmem:[#allocation4 + $0x6a8] sm:$0xff]
        %v582 = vld [vmem:[#allocation4 + $0x6b0] sm:$0xff]
        %v583 = vld [vmem:[#allocation4 + $0x6b8] sm:$0xff]
        %v584 = vld [vmem:[#allocation4 + $0x6c0] sm:$0xff]
        %v585 = vld [vmem:[#allocation4 + $0x6c8] sm:$0xff]
        %v586 = vld [vmem:[#allocation4 + $0x6d0] sm:$0xff]
        %v587 = vld [vmem:[#allocation4 + $0x6d8] sm:$0xff]
        %v588 = vld [vmem:[#allocation4 + $0x6e0] sm:$0xff]
        %v589 = vld [vmem:[#allocation4 + $0x6e8] sm:$0xff]
        %v590 = vld [vmem:[#allocation4 + $0x6f0] sm:$0xff]
        %v591 = vld [vmem:[#allocation4 + $0x6f8] sm:$0xff]
        %v592 = vld [vmem:[#allocation4 + $0x700] sm:$0xff]
        %v593 = vld [vmem:[#allocation4 + $0x708] sm:$0xff]
        %v594 = vld [vmem:[#allocation4 + $0x710] sm:$0xff]
        %v595 = vld [vmem:[#allocation4 + $0x718] sm:$0xff]
        %v596 = vld [vmem:[#allocation4 + $0x720] sm:$0xff]
        %v597 = vld [vmem:[#allocation4 + $0x728] sm:$0xff]
        %v598 = vld [vmem:[#allocation4 + $0x730] sm:$0xff]
        %v599 = vld [vmem:[#allocation4 + $0x738] sm:$0xff]
        %v600 = vld [vmem:[#allocation4 + $0x740] sm:$0xff]
        %v601 = vld [vmem:[#allocation4 + $0x748] sm:$0xff]
        %v602 = vld [vmem:[#allocation4 + $0x750] sm:$0xff]
        %v603 = vld [vmem:[#allocation4 + $0x758] sm:$0xff]
        %v604 = vld [vmem:[#allocation4 + $0x760] sm:$0xff]
        %v605 = vld [vmem:[#allocation4 + $0x768] sm:$0xff]
        %v606 = vld [vmem:[#allocation4 + $0x770] sm:$0xff]
        %v607 = vld [vmem:[#allocation4 + $0x778] sm:$0xff]
        %v608 = vld [vmem:[#allocation4 + $0x780] sm:$0xff]
        %v609 = vld [vmem:[#allocation4 + $0x788] sm:$0xff]
        %v610 = vld [vmem:[#allocation4 + $0x790] sm:$0xff]
        %v611 = vld [vmem:[#allocation4 + $0x798] sm:$0xff]
        %v612 = vld [vmem:[#allocation4 + $0x7a0] sm:$0xff]
        %v613 = vld [vmem:[#allocation4 + $0x7a8] sm:$0xff]
        %v614 = vld [vmem:[#allocation4 + $0x7b0] sm:$0xff]
        %v615 = vld [vmem:[#allocation4 + $0x7b8] sm:$0xff]
        %v616 = vld [vmem:[#allocation4 + $0x7c0] sm:$0xff]
        %v617 = vld [vmem:[#allocation4 + $0x7c8] sm:$0xff]
        %v618 = vld [vmem:[#allocation4 + $0x7d0] sm:$0xff]
        %v619 = vld [vmem:[#allocation4 + $0x7d8] sm:$0xff]
        %v620 = vld [vmem:[#allocation4 + $0x7e0] sm:$0xff]
        %v621 = vld [vmem:[#allocation4 + $0x7e8] sm:$0xff]
        %v622 = vld [vmem:[#allocation4 + $0x7f0] sm:$0xff]
        %v623 = vld [vmem:[#allocation4 + $0x7f8] sm:$0xff]
        %v880 = vunpack.c.l.b16 %v368
        %v881 = vunpack.c.h.b16 %v368
        %v882 = vunpack.c.l.b16 %v369
        %v883 = vunpack.c.h.b16 %v369
        %v884 = vunpack.c.l.b16 %v370
        %v885 = vunpack.c.h.b16 %v370
        %v886 = vunpack.c.l.b16 %v371
        %v887 = vunpack.c.h.b16 %v371
        %v888 = vunpack.c.l.b16 %v372
        %v889 = vunpack.c.h.b16 %v372
        %v890 = vunpack.c.l.b16 %v373
        %v891 = vunpack.c.h.b16 %v373
        %v892 = vunpack.c.l.b16 %v374
        %v893 = vunpack.c.h.b16 %v374
        %v894 = vunpack.c.l.b16 %v375
        %v895 = vunpack.c.h.b16 %v375
        %v896 = vunpack.c.l.b16 %v376
        %v897 = vunpack.c.h.b16 %v376
        %v898 = vunpack.c.l.b16 %v377
        %v899 = vunpack.c.h.b16 %v377
        %v900 = vunpack.c.l.b16 %v378
        %v901 = vunpack.c.h.b16 %v378
        %v902 = vunpack.c.l.b16 %v379
        %v903 = vunpack.c.h.b16 %v379
        %v904 = vunpack.c.l.b16 %v380
        %v905 = vunpack.c.h.b16 %v380
        %v906 = vunpack.c.l.b16 %v381
        %v907 = vunpack.c.h.b16 %v381
        %v908 = vunpack.c.l.b16 %v382
        %v909 = vunpack.c.h.b16 %v382
        %v910 = vunpack.c.l.b16 %v383
        %v911 = vunpack.c.h.b16 %v383
        %v912 = vunpack.c.l.b16 %v384
        %v913 = vunpack.c.h.b16 %v384
        %v914 = vunpack.c.l.b16 %v385
        %v915 = vunpack.c.h.b16 %v385
        %v916 = vunpack.c.l.b16 %v386
        %v917 = vunpack.c.h.b16 %v386
        %v918 = vunpack.c.l.b16 %v387
        %v919 = vunpack.c.h.b16 %v387
        %v920 = vunpack.c.l.b16 %v388
        %v921 = vunpack.c.h.b16 %v388
        %v922 = vunpack.c.l.b16 %v389
        %v923 = vunpack.c.h.b16 %v389
        %v924 = vunpack.c.l.b16 %v390
        %v925 = vunpack.c.h.b16 %v390
        %v926 = vunpack.c.l.b16 %v391
        %v927 = vunpack.c.h.b16 %v391
        %v928 = vunpack.c.l.b16 %v392
        %v929 = vunpack.c.h.b16 %v392
        %v930 = vunpack.c.l.b16 %v393
        %v931 = vunpack.c.h.b16 %v393
        %v932 = vunpack.c.l.b16 %v394
        %v933 = vunpack.c.h.b16 %v394
        %v934 = vunpack.c.l.b16 %v395
        %v935 = vunpack.c.h.b16 %v395
        %v936 = vunpack.c.l.b16 %v396
        %v937 = vunpack.c.h.b16 %v396
        %v938 = vunpack.c.l.b16 %v397
        %v939 = vunpack.c.h.b16 %v397
        %v940 = vunpack.c.l.b16 %v398
        %v941 = vunpack.c.h.b16 %v398
        %v942 = vunpack.c.l.b16 %v399
        %v943 = vunpack.c.h.b16 %v399
        %v944 = vunpack.c.l.b16 %v400
        %v945 = vunpack.c.h.b16 %v400
        %v946 = vunpack.c.l.b16 %v401
        %v947 = vunpack.c.h.b16 %v401
        %v948 = vunpack.c.l.b16 %v402
        %v949 = vunpack.c.h.b16 %v402
        %v950 = vunpack.c.l.b16 %v403
        %v951 = vunpack.c.h.b16 %v403
        %v952 = vunpack.c.l.b16 %v404
        %v953 = vunpack.c.h.b16 %v404
        %v954 = vunpack.c.l.b16 %v405
        %v955 = vunpack.c.h.b16 %v405
        %v956 = vunpack.c.l.b16 %v406
        %v957 = vunpack.c.h.b16 %v406
        %v958 = vunpack.c.l.b16 %v407
        %v959 = vunpack.c.h.b16 %v407
        %v960 = vunpack.c.l.b16 %v408
        %v961 = vunpack.c.h.b16 %v408
        %v962 = vunpack.c.l.b16 %v409
        %v963 = vunpack.c.h.b16 %v409
        %v964 = vunpack.c.l.b16 %v410
        %v965 = vunpack.c.h.b16 %v410
        %v966 = vunpack.c.l.b16 %v411
        %v967 = vunpack.c.h.b16 %v411
        %v968 = vunpack.c.l.b16 %v412
        %v969 = vunpack.c.h.b16 %v412
        %v970 = vunpack.c.l.b16 %v413
        %v971 = vunpack.c.h.b16 %v413
        %v972 = vunpack.c.l.b16 %v414
        %v973 = vunpack.c.h.b16 %v414
        %v974 = vunpack.c.l.b16 %v415
        %v975 = vunpack.c.h.b16 %v415
        %v976 = vunpack.c.l.b16 %v416
        %v977 = vunpack.c.h.b16 %v416
        %v978 = vunpack.c.l.b16 %v417
        %v979 = vunpack.c.h.b16 %v417
        %v980 = vunpack.c.l.b16 %v418
        %v981 = vunpack.c.h.b16 %v418
        %v982 = vunpack.c.l.b16 %v419
        %v983 = vunpack.c.h.b16 %v419
        %v984 = vunpack.c.l.b16 %v420
        %v985 = vunpack.c.h.b16 %v420
        %v986 = vunpack.c.l.b16 %v421
        %v987 = vunpack.c.h.b16 %v421
        %v988 = vunpack.c.l.b16 %v422
        %v989 = vunpack.c.h.b16 %v422
        %v990 = vunpack.c.l.b16 %v423
        %v991 = vunpack.c.h.b16 %v423
        %v992 = vunpack.c.l.b16 %v424
        %v993 = vunpack.c.h.b16 %v424
        %v994 = vunpack.c.l.b16 %v425
        %v995 = vunpack.c.h.b16 %v425
        %v996 = vunpack.c.l.b16 %v426
        %v997 = vunpack.c.h.b16 %v426
        %v998 = vunpack.c.l.b16 %v427
        %v999 = vunpack.c.h.b16 %v427
        %v1000 = vunpack.c.l.b16 %v428
        %v1001 = vunpack.c.h.b16 %v428
        %v1002 = vunpack.c.l.b16 %v429
        %v1003 = vunpack.c.h.b16 %v429
        %v1004 = vunpack.c.l.b16 %v430
        %v1005 = vunpack.c.h.b16 %v430
        %v1006 = vunpack.c.l.b16 %v431
        %v1007 = vunpack.c.h.b16 %v431
        %v1008 = vunpack.c.l.b16 %v432
        %v1009 = vunpack.c.h.b16 %v432
        %v1010 = vunpack.c.l.b16 %v433
        %v1011 = vunpack.c.h.b16 %v433
        %v1012 = vunpack.c.l.b16 %v434
        %v1013 = vunpack.c.h.b16 %v434
        %v1014 = vunpack.c.l.b16 %v435
        %v1015 = vunpack.c.h.b16 %v435
        %v1016 = vunpack.c.l.b16 %v436
        %v1017 = vunpack.c.h.b16 %v436
        %v1018 = vunpack.c.l.b16 %v437
        %v1019 = vunpack.c.h.b16 %v437
        %v1020 = vunpack.c.l.b16 %v438
        %v1021 = vunpack.c.h.b16 %v438
        %v1022 = vunpack.c.l.b16 %v439
        %v1023 = vunpack.c.h.b16 %v439
        %v1024 = vunpack.c.l.b16 %v440
        %v1025 = vunpack.c.h.b16 %v440
        %v1026 = vunpack.c.l.b16 %v441
        %v1027 = vunpack.c.h.b16 %v441
        %v1028 = vunpack.c.l.b16 %v442
        %v1029 = vunpack.c.h.b16 %v442
        %v1030 = vunpack.c.l.b16 %v443
        %v1031 = vunpack.c.h.b16 %v443
        %v1032 = vunpack.c.l.b16 %v444
        %v1033 = vunpack.c.h.b16 %v444
        %v1034 = vunpack.c.l.b16 %v445
        %v1035 = vunpack.c.h.b16 %v445
        %v1036 = vunpack.c.l.b16 %v446
        %v1037 = vunpack.c.h.b16 %v446
        %v1038 = vunpack.c.l.b16 %v447
        %v1039 = vunpack.c.h.b16 %v447
        %v1040 = vunpack.c.l.b16 %v448
        %v1041 = vunpack.c.h.b16 %v448
        %v1042 = vunpack.c.l.b16 %v449
        %v1043 = vunpack.c.h.b16 %v449
        %v1044 = vunpack.c.l.b16 %v450
        %v1045 = vunpack.c.h.b16 %v450
        %v1046 = vunpack.c.l.b16 %v451
        %v1047 = vunpack.c.h.b16 %v451
        %v1048 = vunpack.c.l.b16 %v452
        %v1049 = vunpack.c.h.b16 %v452
        %v1050 = vunpack.c.l.b16 %v453
        %v1051 = vunpack.c.h.b16 %v453
        %v1052 = vunpack.c.l.b16 %v454
        %v1053 = vunpack.c.h.b16 %v454
        %v1054 = vunpack.c.l.b16 %v455
        %v1055 = vunpack.c.h.b16 %v455
        %v1056 = vunpack.c.l.b16 %v456
        %v1057 = vunpack.c.h.b16 %v456
        %v1058 = vunpack.c.l.b16 %v457
        %v1059 = vunpack.c.h.b16 %v457
        %v1060 = vunpack.c.l.b16 %v458
        %v1061 = vunpack.c.h.b16 %v458
        %v1062 = vunpack.c.l.b16 %v459
        %v1063 = vunpack.c.h.b16 %v459
        %v1064 = vunpack.c.l.b16 %v460
        %v1065 = vunpack.c.h.b16 %v460
        %v1066 = vunpack.c.l.b16 %v461
        %v1067 = vunpack.c.h.b16 %v461
        %v1068 = vunpack.c.l.b16 %v462
        %v1069 = vunpack.c.h.b16 %v462
        %v1070 = vunpack.c.l.b16 %v463
        %v1071 = vunpack.c.h.b16 %v463
        %v1072 = vunpack.c.l.b16 %v464
        %v1073 = vunpack.c.h.b16 %v464
        %v1074 = vunpack.c.l.b16 %v465
        %v1075 = vunpack.c.h.b16 %v465
        %v1076 = vunpack.c.l.b16 %v466
        %v1077 = vunpack.c.h.b16 %v466
        %v1078 = vunpack.c.l.b16 %v467
        %v1079 = vunpack.c.h.b16 %v467
        %v1080 = vunpack.c.l.b16 %v468
        %v1081 = vunpack.c.h.b16 %v468
        %v1082 = vunpack.c.l.b16 %v469
        %v1083 = vunpack.c.h.b16 %v469
        %v1084 = vunpack.c.l.b16 %v470
        %v1085 = vunpack.c.h.b16 %v470
        %v1086 = vunpack.c.l.b16 %v471
        %v1087 = vunpack.c.h.b16 %v471
        %v1088 = vunpack.c.l.b16 %v472
        %v1089 = vunpack.c.h.b16 %v472
        %v1090 = vunpack.c.l.b16 %v473
        %v1091 = vunpack.c.h.b16 %v473
        %v1092 = vunpack.c.l.b16 %v474
        %v1093 = vunpack.c.h.b16 %v474
        %v1094 = vunpack.c.l.b16 %v475
        %v1095 = vunpack.c.h.b16 %v475
        %v1096 = vunpack.c.l.b16 %v476
        %v1097 = vunpack.c.h.b16 %v476
        %v1098 = vunpack.c.l.b16 %v477
        %v1099 = vunpack.c.h.b16 %v477
        %v1100 = vunpack.c.l.b16 %v478
        %v1101 = vunpack.c.h.b16 %v478
        %v1102 = vunpack.c.l.b16 %v479
        %v1103 = vunpack.c.h.b16 %v479
        %v1104 = vunpack.c.l.b16 %v480
        %v1105 = vunpack.c.h.b16 %v480
        %v1106 = vunpack.c.l.b16 %v481
        %v1107 = vunpack.c.h.b16 %v481
        %v1108 = vunpack.c.l.b16 %v482
        %v1109 = vunpack.c.h.b16 %v482
        %v1110 = vunpack.c.l.b16 %v483
        %v1111 = vunpack.c.h.b16 %v483
        %v1112 = vunpack.c.l.b16 %v484
        %v1113 = vunpack.c.h.b16 %v484
        %v1114 = vunpack.c.l.b16 %v485
        %v1115 = vunpack.c.h.b16 %v485
        %v1116 = vunpack.c.l.b16 %v486
        %v1117 = vunpack.c.h.b16 %v486
        %v1118 = vunpack.c.l.b16 %v487
        %v1119 = vunpack.c.h.b16 %v487
        %v1120 = vunpack.c.l.b16 %v488
        %v1121 = vunpack.c.h.b16 %v488
        %v1122 = vunpack.c.l.b16 %v489
        %v1123 = vunpack.c.h.b16 %v489
        %v1124 = vunpack.c.l.b16 %v490
        %v1125 = vunpack.c.h.b16 %v490
        %v1126 = vunpack.c.l.b16 %v491
        %v1127 = vunpack.c.h.b16 %v491
        %v1128 = vunpack.c.l.b16 %v492
        %v1129 = vunpack.c.h.b16 %v492
        %v1130 = vunpack.c.l.b16 %v493
        %v1131 = vunpack.c.h.b16 %v493
        %v1132 = vunpack.c.l.b16 %v494
        %v1133 = vunpack.c.h.b16 %v494
        %v1134 = vunpack.c.l.b16 %v495
        %v1135 = vunpack.c.h.b16 %v495
        %v1136 = vunpack.c.l.b16 %v496
        %v1137 = vunpack.c.h.b16 %v496
        %v1138 = vunpack.c.l.b16 %v497
        %v1139 = vunpack.c.h.b16 %v497
        %v1140 = vunpack.c.l.b16 %v498
        %v1141 = vunpack.c.h.b16 %v498
        %v1142 = vunpack.c.l.b16 %v499
        %v1143 = vunpack.c.h.b16 %v499
        %v1144 = vunpack.c.l.b16 %v500
        %v1145 = vunpack.c.h.b16 %v500
        %v1146 = vunpack.c.l.b16 %v501
        %v1147 = vunpack.c.h.b16 %v501
        %v1148 = vunpack.c.l.b16 %v502
        %v1149 = vunpack.c.h.b16 %v502
        %v1150 = vunpack.c.l.b16 %v503
        %v1151 = vunpack.c.h.b16 %v503
        %v1152 = vunpack.c.l.b16 %v504
        %v1153 = vunpack.c.h.b16 %v504
        %v1154 = vunpack.c.l.b16 %v505
        %v1155 = vunpack.c.h.b16 %v505
        %v1156 = vunpack.c.l.b16 %v506
        %v1157 = vunpack.c.h.b16 %v506
        %v1158 = vunpack.c.l.b16 %v507
        %v1159 = vunpack.c.h.b16 %v507
        %v1160 = vunpack.c.l.b16 %v508
        %v1161 = vunpack.c.h.b16 %v508
        %v1162 = vunpack.c.l.b16 %v509
        %v1163 = vunpack.c.h.b16 %v509
        %v1164 = vunpack.c.l.b16 %v510
        %v1165 = vunpack.c.h.b16 %v510
        %v1166 = vunpack.c.l.b16 %v511
        %v1167 = vunpack.c.h.b16 %v511
        %v1168 = vunpack.c.l.b16 %v512
        %v1169 = vunpack.c.h.b16 %v512
        %v1170 = vunpack.c.l.b16 %v513
        %v1171 = vunpack.c.h.b16 %v513
        %v1172 = vunpack.c.l.b16 %v514
        %v1173 = vunpack.c.h.b16 %v514
        %v1174 = vunpack.c.l.b16 %v515
        %v1175 = vunpack.c.h.b16 %v515
        %v1176 = vunpack.c.l.b16 %v516
        %v1177 = vunpack.c.h.b16 %v516
        %v1178 = vunpack.c.l.b16 %v517
        %v1179 = vunpack.c.h.b16 %v517
        %v1180 = vunpack.c.l.b16 %v518
        %v1181 = vunpack.c.h.b16 %v518
        %v1182 = vunpack.c.l.b16 %v519
        %v1183 = vunpack.c.h.b16 %v519
        %v1184 = vunpack.c.l.b16 %v520
        %v1185 = vunpack.c.h.b16 %v520
        %v1186 = vunpack.c.l.b16 %v521
        %v1187 = vunpack.c.h.b16 %v521
        %v1188 = vunpack.c.l.b16 %v522
        %v1189 = vunpack.c.h.b16 %v522
        %v1190 = vunpack.c.l.b16 %v523
        %v1191 = vunpack.c.h.b16 %v523
        %v1192 = vunpack.c.l.b16 %v524
        %v1193 = vunpack.c.h.b16 %v524
        %v1194 = vunpack.c.l.b16 %v525
        %v1195 = vunpack.c.h.b16 %v525
        %v1196 = vunpack.c.l.b16 %v526
        %v1197 = vunpack.c.h.b16 %v526
        %v1198 = vunpack.c.l.b16 %v527
        %v1199 = vunpack.c.h.b16 %v527
        %v1200 = vunpack.c.l.b16 %v528
        %v1201 = vunpack.c.h.b16 %v528
        %v1202 = vunpack.c.l.b16 %v529
        %v1203 = vunpack.c.h.b16 %v529
        %v1204 = vunpack.c.l.b16 %v530
        %v1205 = vunpack.c.h.b16 %v530
        %v1206 = vunpack.c.l.b16 %v531
        %v1207 = vunpack.c.h.b16 %v531
        %v1208 = vunpack.c.l.b16 %v532
        %v1209 = vunpack.c.h.b16 %v532
        %v1210 = vunpack.c.l.b16 %v533
        %v1211 = vunpack.c.h.b16 %v533
        %v1212 = vunpack.c.l.b16 %v534
        %v1213 = vunpack.c.h.b16 %v534
        %v1214 = vunpack.c.l.b16 %v535
        %v1215 = vunpack.c.h.b16 %v535
        %v1216 = vunpack.c.l.b16 %v536
        %v1217 = vunpack.c.h.b16 %v536
        %v1218 = vunpack.c.l.b16 %v537
        %v1219 = vunpack.c.h.b16 %v537
        %v1220 = vunpack.c.l.b16 %v538
        %v1221 = vunpack.c.h.b16 %v538
        %v1222 = vunpack.c.l.b16 %v539
        %v1223 = vunpack.c.h.b16 %v539
        %v1224 = vunpack.c.l.b16 %v540
        %v1225 = vunpack.c.h.b16 %v540
        %v1226 = vunpack.c.l.b16 %v541
        %v1227 = vunpack.c.h.b16 %v541
        %v1228 = vunpack.c.l.b16 %v542
        %v1229 = vunpack.c.h.b16 %v542
        %v1230 = vunpack.c.l.b16 %v543
        %v1231 = vunpack.c.h.b16 %v543
        %v1232 = vunpack.c.l.b16 %v544
        %v1233 = vunpack.c.h.b16 %v544
        %v1234 = vunpack.c.l.b16 %v545
        %v1235 = vunpack.c.h.b16 %v545
        %v1236 = vunpack.c.l.b16 %v546
        %v1237 = vunpack.c.h.b16 %v546
        %v1238 = vunpack.c.l.b16 %v547
        %v1239 = vunpack.c.h.b16 %v547
        %v1240 = vunpack.c.l.b16 %v548
        %v1241 = vunpack.c.h.b16 %v548
        %v1242 = vunpack.c.l.b16 %v549
        %v1243 = vunpack.c.h.b16 %v549
        %v1244 = vunpack.c.l.b16 %v550
        %v1245 = vunpack.c.h.b16 %v550
        %v1246 = vunpack.c.l.b16 %v551
        %v1247 = vunpack.c.h.b16 %v551
        %v1248 = vunpack.c.l.b16 %v552
        %v1249 = vunpack.c.h.b16 %v552
        %v1250 = vunpack.c.l.b16 %v553
        %v1251 = vunpack.c.h.b16 %v553
        %v1252 = vunpack.c.l.b16 %v554
        %v1253 = vunpack.c.h.b16 %v554
        %v1254 = vunpack.c.l.b16 %v555
        %v1255 = vunpack.c.h.b16 %v555
        %v1256 = vunpack.c.l.b16 %v556
        %v1257 = vunpack.c.h.b16 %v556
        %v1258 = vunpack.c.l.b16 %v557
        %v1259 = vunpack.c.h.b16 %v557
        %v1260 = vunpack.c.l.b16 %v558
        %v1261 = vunpack.c.h.b16 %v558
        %v1262 = vunpack.c.l.b16 %v559
        %v1263 = vunpack.c.h.b16 %v559
        %v1264 = vunpack.c.l.b16 %v560
        %v1265 = vunpack.c.h.b16 %v560
        %v1266 = vunpack.c.l.b16 %v561
        %v1267 = vunpack.c.h.b16 %v561
        %v1268 = vunpack.c.l.b16 %v562
        %v1269 = vunpack.c.h.b16 %v562
        %v1270 = vunpack.c.l.b16 %v563
        %v1271 = vunpack.c.h.b16 %v563
        %v1272 = vunpack.c.l.b16 %v564
        %v1273 = vunpack.c.h.b16 %v564
        %v1274 = vunpack.c.l.b16 %v565
        %v1275 = vunpack.c.h.b16 %v565
        %v1276 = vunpack.c.l.b16 %v566
        %v1277 = vunpack.c.h.b16 %v566
        %v1278 = vunpack.c.l.b16 %v567
        %v1279 = vunpack.c.h.b16 %v567
        %v1280 = vunpack.c.l.b16 %v568
        %v1281 = vunpack.c.h.b16 %v568
        %v1282 = vunpack.c.l.b16 %v569
        %v1283 = vunpack.c.h.b16 %v569
        %v1284 = vunpack.c.l.b16 %v570
        %v1285 = vunpack.c.h.b16 %v570
        %v1286 = vunpack.c.l.b16 %v571
        %v1287 = vunpack.c.h.b16 %v571
        %v1288 = vunpack.c.l.b16 %v572
        %v1289 = vunpack.c.h.b16 %v572
        %v1290 = vunpack.c.l.b16 %v573
        %v1291 = vunpack.c.h.b16 %v573
        %v1292 = vunpack.c.l.b16 %v574
        %v1293 = vunpack.c.h.b16 %v574
        %v1294 = vunpack.c.l.b16 %v575
        %v1295 = vunpack.c.h.b16 %v575
        %v1296 = vunpack.c.l.b16 %v576
        %v1297 = vunpack.c.h.b16 %v576
        %v1298 = vunpack.c.l.b16 %v577
        %v1299 = vunpack.c.h.b16 %v577
        %v1300 = vunpack.c.l.b16 %v578
        %v1301 = vunpack.c.h.b16 %v578
        %v1302 = vunpack.c.l.b16 %v579
        %v1303 = vunpack.c.h.b16 %v579
        %v1304 = vunpack.c.l.b16 %v580
        %v1305 = vunpack.c.h.b16 %v580
        %v1306 = vunpack.c.l.b16 %v581
        %v1307 = vunpack.c.h.b16 %v581
        %v1308 = vunpack.c.l.b16 %v582
        %v1309 = vunpack.c.h.b16 %v582
        %v1310 = vunpack.c.l.b16 %v583
        %v1311 = vunpack.c.h.b16 %v583
        %v1312 = vunpack.c.l.b16 %v584
        %v1313 = vunpack.c.h.b16 %v584
        %v1314 = vunpack.c.l.b16 %v585
        %v1315 = vunpack.c.h.b16 %v585
        %v1316 = vunpack.c.l.b16 %v586
        %v1317 = vunpack.c.h.b16 %v586
        %v1318 = vunpack.c.l.b16 %v587
        %v1319 = vunpack.c.h.b16 %v587
        %v1320 = vunpack.c.l.b16 %v588
        %v1321 = vunpack.c.h.b16 %v588
        %v1322 = vunpack.c.l.b16 %v589
        %v1323 = vunpack.c.h.b16 %v589
        %v1324 = vunpack.c.l.b16 %v590
        %v1325 = vunpack.c.h.b16 %v590
        %v1326 = vunpack.c.l.b16 %v591
        %v1327 = vunpack.c.h.b16 %v591
        %v1328 = vunpack.c.l.b16 %v592
        %v1329 = vunpack.c.h.b16 %v592
        %v1330 = vunpack.c.l.b16 %v593
        %v1331 = vunpack.c.h.b16 %v593
        %v1332 = vunpack.c.l.b16 %v594
        %v1333 = vunpack.c.h.b16 %v594
        %v1334 = vunpack.c.l.b16 %v595
        %v1335 = vunpack.c.h.b16 %v595
        %v1336 = vunpack.c.l.b16 %v596
        %v1337 = vunpack.c.h.b16 %v596
        %v1338 = vunpack.c.l.b16 %v597
        %v1339 = vunpack.c.h.b16 %v597
        %v1340 = vunpack.c.l.b16 %v598
        %v1341 = vunpack.c.h.b16 %v598
        %v1342 = vunpack.c.l.b16 %v599
        %v1343 = vunpack.c.h.b16 %v599
        %v1344 = vunpack.c.l.b16 %v600
        %v1345 = vunpack.c.h.b16 %v600
        %v1346 = vunpack.c.l.b16 %v601
        %v1347 = vunpack.c.h.b16 %v601
        %v1348 = vunpack.c.l.b16 %v602
        %v1349 = vunpack.c.h.b16 %v602
        %v1350 = vunpack.c.l.b16 %v603
        %v1351 = vunpack.c.h.b16 %v603
        %v1352 = vunpack.c.l.b16 %v604
        %v1353 = vunpack.c.h.b16 %v604
        %v1354 = vunpack.c.l.b16 %v605
        %v1355 = vunpack.c.h.b16 %v605
        %v1356 = vunpack.c.l.b16 %v606
        %v1357 = vunpack.c.h.b16 %v606
        %v1358 = vunpack.c.l.b16 %v607
        %v1359 = vunpack.c.h.b16 %v607
        %v1360 = vunpack.c.l.b16 %v608
        %v1361 = vunpack.c.h.b16 %v608
        %v1362 = vunpack.c.l.b16 %v609
        %v1363 = vunpack.c.h.b16 %v609
        %v1364 = vunpack.c.l.b16 %v610
        %v1365 = vunpack.c.h.b16 %v610
        %v1366 = vunpack.c.l.b16 %v611
        %v1367 = vunpack.c.h.b16 %v611
        %v1368 = vunpack.c.l.b16 %v612
        %v1369 = vunpack.c.h.b16 %v612
        %v1370 = vunpack.c.l.b16 %v613
        %v1371 = vunpack.c.h.b16 %v613
        %v1372 = vunpack.c.l.b16 %v614
        %v1373 = vunpack.c.h.b16 %v614
        %v1374 = vunpack.c.l.b16 %v615
        %v1375 = vunpack.c.h.b16 %v615
        %v1376 = vunpack.c.l.b16 %v616
        %v1377 = vunpack.c.h.b16 %v616
        %v1378 = vunpack.c.l.b16 %v617
        %v1379 = vunpack.c.h.b16 %v617
        %v1380 = vunpack.c.l.b16 %v618
        %v1381 = vunpack.c.h.b16 %v618
        %v1382 = vunpack.c.l.b16 %v619
        %v1383 = vunpack.c.h.b16 %v619
        %v1384 = vunpack.c.l.b16 %v620
        %v1385 = vunpack.c.h.b16 %v620
        %v1386 = vunpack.c.l.b16 %v621
        %v1387 = vunpack.c.h.b16 %v621
        %v1388 = vunpack.c.l.b16 %v622
        %v1389 = vunpack.c.h.b16 %v622
        %v1390 = vunpack.c.l.b16 %v623
        %v1391 = vunpack.c.h.b16 %v623
        %v1392 = vpack.c.b16 %v888, %v880
        %v1393 = vpack.c.b16 %v889, %v881
        %v1394 = vpack.c.b16 %v890, %v882
        %v1395 = vpack.c.b16 %v891, %v883
        %v1396 = vpack.c.b16 %v892, %v884
        %v1397 = vpack.c.b16 %v893, %v885
        %v1398 = vpack.c.b16 %v894, %v886
        %v1399 = vpack.c.b16 %v895, %v887
        %v1400 = vpack.c.b16 %v904, %v896
        %v1401 = vpack.c.b16 %v905, %v897
        %v1402 = vpack.c.b16 %v906, %v898
        %v1403 = vpack.c.b16 %v907, %v899
        %v1404 = vpack.c.b16 %v908, %v900
        %v1405 = vpack.c.b16 %v909, %v901
        %v1406 = vpack.c.b16 %v910, %v902
        %v1407 = vpack.c.b16 %v911, %v903
        %v1408 = vpack.c.b16 %v920, %v912
        %v1409 = vpack.c.b16 %v921, %v913
        %v1410 = vpack.c.b16 %v922, %v914
        %v1411 = vpack.c.b16 %v923, %v915
        %v1412 = vpack.c.b16 %v924, %v916
        %v1413 = vpack.c.b16 %v925, %v917
        %v1414 = vpack.c.b16 %v926, %v918
        %v1415 = vpack.c.b16 %v927, %v919
        %v1416 = vpack.c.b16 %v936, %v928
        %v1417 = vpack.c.b16 %v937, %v929
        %v1418 = vpack.c.b16 %v938, %v930
        %v1419 = vpack.c.b16 %v939, %v931
        %v1420 = vpack.c.b16 %v940, %v932
        %v1421 = vpack.c.b16 %v941, %v933
        %v1422 = vpack.c.b16 %v942, %v934
        %v1423 = vpack.c.b16 %v943, %v935
        %v1424 = vpack.c.b16 %v952, %v944
        %v1425 = vpack.c.b16 %v953, %v945
        %v1426 = vpack.c.b16 %v954, %v946
        %v1427 = vpack.c.b16 %v955, %v947
        %v1428 = vpack.c.b16 %v956, %v948
        %v1429 = vpack.c.b16 %v957, %v949
        %v1430 = vpack.c.b16 %v958, %v950
        %v1431 = vpack.c.b16 %v959, %v951
        %v1432 = vpack.c.b16 %v968, %v960
        %v1433 = vpack.c.b16 %v969, %v961
        %v1434 = vpack.c.b16 %v970, %v962
        %v1435 = vpack.c.b16 %v971, %v963
        %v1436 = vpack.c.b16 %v972, %v964
        %v1437 = vpack.c.b16 %v973, %v965
        %v1438 = vpack.c.b16 %v974, %v966
        %v1439 = vpack.c.b16 %v975, %v967
        %v1440 = vpack.c.b16 %v984, %v976
        %v1441 = vpack.c.b16 %v985, %v977
        %v1442 = vpack.c.b16 %v986, %v978
        %v1443 = vpack.c.b16 %v987, %v979
        %v1444 = vpack.c.b16 %v988, %v980
        %v1445 = vpack.c.b16 %v989, %v981
        %v1446 = vpack.c.b16 %v990, %v982
        %v1447 = vpack.c.b16 %v991, %v983
        %v1448 = vpack.c.b16 %v1000, %v992
        %v1449 = vpack.c.b16 %v1001, %v993
        %v1450 = vpack.c.b16 %v1002, %v994
        %v1451 = vpack.c.b16 %v1003, %v995
        %v1452 = vpack.c.b16 %v1004, %v996
        %v1453 = vpack.c.b16 %v1005, %v997
        %v1454 = vpack.c.b16 %v1006, %v998
        %v1455 = vpack.c.b16 %v1007, %v999
        %v1456 = vpack.c.b16 %v1016, %v1008
        %v1457 = vpack.c.b16 %v1017, %v1009
        %v1458 = vpack.c.b16 %v1018, %v1010
        %v1459 = vpack.c.b16 %v1019, %v1011
        %v1460 = vpack.c.b16 %v1020, %v1012
        %v1461 = vpack.c.b16 %v1021, %v1013
        %v1462 = vpack.c.b16 %v1022, %v1014
        %v1463 = vpack.c.b16 %v1023, %v1015
        %v1464 = vpack.c.b16 %v1032, %v1024
        %v1465 = vpack.c.b16 %v1033, %v1025
        %v1466 = vpack.c.b16 %v1034, %v1026
        %v1467 = vpack.c.b16 %v1035, %v1027
        %v1468 = vpack.c.b16 %v1036, %v1028
        %v1469 = vpack.c.b16 %v1037, %v1029
        %v1470 = vpack.c.b16 %v1038, %v1030
        %v1471 = vpack.c.b16 %v1039, %v1031
        %v1472 = vpack.c.b16 %v1048, %v1040
        %v1473 = vpack.c.b16 %v1049, %v1041
        %v1474 = vpack.c.b16 %v1050, %v1042
        %v1475 = vpack.c.b16 %v1051, %v1043
        %v1476 = vpack.c.b16 %v1052, %v1044
        %v1477 = vpack.c.b16 %v1053, %v1045
        %v1478 = vpack.c.b16 %v1054, %v1046
        %v1479 = vpack.c.b16 %v1055, %v1047
        %v1480 = vpack.c.b16 %v1064, %v1056
        %v1481 = vpack.c.b16 %v1065, %v1057
        %v1482 = vpack.c.b16 %v1066, %v1058
        %v1483 = vpack.c.b16 %v1067, %v1059
        %v1484 = vpack.c.b16 %v1068, %v1060
        %v1485 = vpack.c.b16 %v1069, %v1061
        %v1486 = vpack.c.b16 %v1070, %v1062
        %v1487 = vpack.c.b16 %v1071, %v1063
        %v1488 = vpack.c.b16 %v1080, %v1072
        %v1489 = vpack.c.b16 %v1081, %v1073
        %v1490 = vpack.c.b16 %v1082, %v1074
        %v1491 = vpack.c.b16 %v1083, %v1075
        %v1492 = vpack.c.b16 %v1084, %v1076
        %v1493 = vpack.c.b16 %v1085, %v1077
        %v1494 = vpack.c.b16 %v1086, %v1078
        %v1495 = vpack.c.b16 %v1087, %v1079
        %v1496 = vpack.c.b16 %v1096, %v1088
        %v1497 = vpack.c.b16 %v1097, %v1089
        %v1498 = vpack.c.b16 %v1098, %v1090
        %v1499 = vpack.c.b16 %v1099, %v1091
        %v1500 = vpack.c.b16 %v1100, %v1092
        %v1501 = vpack.c.b16 %v1101, %v1093
        %v1502 = vpack.c.b16 %v1102, %v1094
        %v1503 = vpack.c.b16 %v1103, %v1095
        %v1504 = vpack.c.b16 %v1112, %v1104
        %v1505 = vpack.c.b16 %v1113, %v1105
        %v1506 = vpack.c.b16 %v1114, %v1106
        %v1507 = vpack.c.b16 %v1115, %v1107
        %v1508 = vpack.c.b16 %v1116, %v1108
        %v1509 = vpack.c.b16 %v1117, %v1109
        %v1510 = vpack.c.b16 %v1118, %v1110
        %v1511 = vpack.c.b16 %v1119, %v1111
        %v1512 = vpack.c.b16 %v1128, %v1120
        %v1513 = vpack.c.b16 %v1129, %v1121
        %v1514 = vpack.c.b16 %v1130, %v1122
        %v1515 = vpack.c.b16 %v1131, %v1123
        %v1516 = vpack.c.b16 %v1132, %v1124
        %v1517 = vpack.c.b16 %v1133, %v1125
        %v1518 = vpack.c.b16 %v1134, %v1126
        %v1519 = vpack.c.b16 %v1135, %v1127
        %v1520 = vpack.c.b16 %v1144, %v1136
        %v1521 = vpack.c.b16 %v1145, %v1137
        %v1522 = vpack.c.b16 %v1146, %v1138
        %v1523 = vpack.c.b16 %v1147, %v1139
        %v1524 = vpack.c.b16 %v1148, %v1140
        %v1525 = vpack.c.b16 %v1149, %v1141
        %v1526 = vpack.c.b16 %v1150, %v1142
        %v1527 = vpack.c.b16 %v1151, %v1143
        %v1528 = vpack.c.b16 %v1160, %v1152
        %v1529 = vpack.c.b16 %v1161, %v1153
        %v1530 = vpack.c.b16 %v1162, %v1154
        %v1531 = vpack.c.b16 %v1163, %v1155
        %v1532 = vpack.c.b16 %v1164, %v1156
        %v1533 = vpack.c.b16 %v1165, %v1157
        %v1534 = vpack.c.b16 %v1166, %v1158
        %v1535 = vpack.c.b16 %v1167, %v1159
        %v1536 = vpack.c.b16 %v1176, %v1168
        %v1537 = vpack.c.b16 %v1177, %v1169
        %v1538 = vpack.c.b16 %v1178, %v1170
        %v1539 = vpack.c.b16 %v1179, %v1171
        %v1540 = vpack.c.b16 %v1180, %v1172
        %v1541 = vpack.c.b16 %v1181, %v1173
        %v1542 = vpack.c.b16 %v1182, %v1174
        %v1543 = vpack.c.b16 %v1183, %v1175
        %v1544 = vpack.c.b16 %v1192, %v1184
        %v1545 = vpack.c.b16 %v1193, %v1185
        %v1546 = vpack.c.b16 %v1194, %v1186
        %v1547 = vpack.c.b16 %v1195, %v1187
        %v1548 = vpack.c.b16 %v1196, %v1188
        %v1549 = vpack.c.b16 %v1197, %v1189
        %v1550 = vpack.c.b16 %v1198, %v1190
        %v1551 = vpack.c.b16 %v1199, %v1191
        %v1552 = vpack.c.b16 %v1208, %v1200
        %v1553 = vpack.c.b16 %v1209, %v1201
        %v1554 = vpack.c.b16 %v1210, %v1202
        %v1555 = vpack.c.b16 %v1211, %v1203
        %v1556 = vpack.c.b16 %v1212, %v1204
        %v1557 = vpack.c.b16 %v1213, %v1205
        %v1558 = vpack.c.b16 %v1214, %v1206
        %v1559 = vpack.c.b16 %v1215, %v1207
        %v1560 = vpack.c.b16 %v1224, %v1216
        %v1561 = vpack.c.b16 %v1225, %v1217
        %v1562 = vpack.c.b16 %v1226, %v1218
        %v1563 = vpack.c.b16 %v1227, %v1219
        %v1564 = vpack.c.b16 %v1228, %v1220
        %v1565 = vpack.c.b16 %v1229, %v1221
        %v1566 = vpack.c.b16 %v1230, %v1222
        %v1567 = vpack.c.b16 %v1231, %v1223
        %v1568 = vpack.c.b16 %v1240, %v1232
        %v1569 = vpack.c.b16 %v1241, %v1233
        %v1570 = vpack.c.b16 %v1242, %v1234
        %v1571 = vpack.c.b16 %v1243, %v1235
        %v1572 = vpack.c.b16 %v1244, %v1236
        %v1573 = vpack.c.b16 %v1245, %v1237
        %v1574 = vpack.c.b16 %v1246, %v1238
        %v1575 = vpack.c.b16 %v1247, %v1239
        %v1576 = vpack.c.b16 %v1256, %v1248
        %v1577 = vpack.c.b16 %v1257, %v1249
        %v1578 = vpack.c.b16 %v1258, %v1250
        %v1579 = vpack.c.b16 %v1259, %v1251
        %v1580 = vpack.c.b16 %v1260, %v1252
        %v1581 = vpack.c.b16 %v1261, %v1253
        %v1582 = vpack.c.b16 %v1262, %v1254
        %v1583 = vpack.c.b16 %v1263, %v1255
        %v1584 = vpack.c.b16 %v1272, %v1264
        %v1585 = vpack.c.b16 %v1273, %v1265
        %v1586 = vpack.c.b16 %v1274, %v1266
        %v1587 = vpack.c.b16 %v1275, %v1267
        %v1588 = vpack.c.b16 %v1276, %v1268
        %v1589 = vpack.c.b16 %v1277, %v1269
        %v1590 = vpack.c.b16 %v1278, %v1270
        %v1591 = vpack.c.b16 %v1279, %v1271
        %v1592 = vpack.c.b16 %v1288, %v1280
        %v1593 = vpack.c.b16 %v1289, %v1281
        %v1594 = vpack.c.b16 %v1290, %v1282
        %v1595 = vpack.c.b16 %v1291, %v1283
        %v1596 = vpack.c.b16 %v1292, %v1284
        %v1597 = vpack.c.b16 %v1293, %v1285
        %v1598 = vpack.c.b16 %v1294, %v1286
        %v1599 = vpack.c.b16 %v1295, %v1287
        %v1600 = vpack.c.b16 %v1304, %v1296
        %v1601 = vpack.c.b16 %v1305, %v1297
        %v1602 = vpack.c.b16 %v1306, %v1298
        %v1603 = vpack.c.b16 %v1307, %v1299
        %v1604 = vpack.c.b16 %v1308, %v1300
        %v1605 = vpack.c.b16 %v1309, %v1301
        %v1606 = vpack.c.b16 %v1310, %v1302
        %v1607 = vpack.c.b16 %v1311, %v1303
        %v1608 = vpack.c.b16 %v1320, %v1312
        %v1609 = vpack.c.b16 %v1321, %v1313
        %v1610 = vpack.c.b16 %v1322, %v1314
        %v1611 = vpack.c.b16 %v1323, %v1315
        %v1612 = vpack.c.b16 %v1324, %v1316
        %v1613 = vpack.c.b16 %v1325, %v1317
        %v1614 = vpack.c.b16 %v1326, %v1318
        %v1615 = vpack.c.b16 %v1327, %v1319
        %v1616 = vpack.c.b16 %v1336, %v1328
        %v1617 = vpack.c.b16 %v1337, %v1329
        %v1618 = vpack.c.b16 %v1338, %v1330
        %v1619 = vpack.c.b16 %v1339, %v1331
        %v1620 = vpack.c.b16 %v1340, %v1332
        %v1621 = vpack.c.b16 %v1341, %v1333
        %v1622 = vpack.c.b16 %v1342, %v1334
        %v1623 = vpack.c.b16 %v1343, %v1335
        %v1624 = vpack.c.b16 %v1352, %v1344
        %v1625 = vpack.c.b16 %v1353, %v1345
        %v1626 = vpack.c.b16 %v1354, %v1346
        %v1627 = vpack.c.b16 %v1355, %v1347
        %v1628 = vpack.c.b16 %v1356, %v1348
        %v1629 = vpack.c.b16 %v1357, %v1349
        %v1630 = vpack.c.b16 %v1358, %v1350
        %v1631 = vpack.c.b16 %v1359, %v1351
        %v1632 = vpack.c.b16 %v1368, %v1360
        %v1633 = vpack.c.b16 %v1369, %v1361
        %v1634 = vpack.c.b16 %v1370, %v1362
        %v1635 = vpack.c.b16 %v1371, %v1363
        %v1636 = vpack.c.b16 %v1372, %v1364
        %v1637 = vpack.c.b16 %v1373, %v1365
        %v1638 = vpack.c.b16 %v1374, %v1366
        %v1639 = vpack.c.b16 %v1375, %v1367
        %v1640 = vpack.c.b16 %v1384, %v1376
        %v1641 = vpack.c.b16 %v1385, %v1377
        %v1642 = vpack.c.b16 %v1386, %v1378
        %v1643 = vpack.c.b16 %v1387, %v1379
        %v1644 = vpack.c.b16 %v1388, %v1380
        %v1645 = vpack.c.b16 %v1389, %v1381
        %v1646 = vpack.c.b16 %v1390, %v1382
        %v1647 = vpack.c.b16 %v1391, %v1383
        %1904 = vmatprep.subr.bf16.mxu0 %v1449
        %1905 = vmatpush1.bf16.msra.mxu0 %v1448
        %1906 = vmatprep.subr.bf16.mxu0 %v1441
        %1907 = vmatpush1.bf16.msra.mxu0 %v1440
        %1908 = vmatprep.subr.bf16.mxu0 %v1433
        %1909 = vmatpush1.bf16.msra.mxu0 %v1432
        %1910 = vmatprep.subr.bf16.mxu0 %v1425
        %1911 = vmatpush1.bf16.msra.mxu0 %v1424
        %1912 = vmatprep.subr.bf16.mxu0 %v1417
        %1913 = vmatpush1.bf16.msra.mxu0 %v1416
        %1914 = vmatprep.subr.bf16.mxu0 %v1409
        %1915 = vmatpush1.bf16.msra.mxu0 %v1408
        %1916 = vmatprep.subr.bf16.mxu0 %v1401
        %1917 = vmatpush1.bf16.msra.mxu0 %v1400
        %1918 = vmatprep.subr.bf16.mxu0 %v1393
        %1919 = vmatpush1.bf16.msra.mxu0 %v1392
        %1920 = vmatprep.subr.bf16.mxu0 %v1513
        %1921 = vmatpush2.bf16.msra.mxu0 %v1512
        %1922 = vmatprep.subr.bf16.mxu0 %v1505
        %1923 = vmatpush2.bf16.msra.mxu0 %v1504
        %1924 = vmatprep.subr.bf16.mxu0 %v1497
        %1925 = vmatpush2.bf16.msra.mxu0 %v1496
        %1926 = vmatprep.subr.bf16.mxu0 %v1489
        %1927 = vmatpush2.bf16.msra.mxu0 %v1488
        %1928 = vmatprep.subr.bf16.mxu0 %v1481
        %1929 = vmatpush2.bf16.msra.mxu0 %v1480
        %1930 = vmatprep.subr.bf16.mxu0 %v1473
        %1931 = vmatpush2.bf16.msra.mxu0 %v1472
        %1932 = vmatprep.subr.bf16.mxu0 %v1465
        %1933 = vmatpush2.bf16.msra.mxu0 %v1464
        %1934 = vmatprep.subr.bf16.mxu0 %v1457
        %1935 = vmatpush2.bf16.msra.mxu0 %v1456
        %1936 = vmatprep.mubr.bf16.mxu0 %v365
        %1937 = vmatmul.mubr.bf16.gmra.mxu0 %v364
        %v1938 = vpop.f32.mrf.mxu0
        %v1939 = vadd.f32 0.0, %v1938
        %v1940 = vpop.f32.mrf.mxu0
        %v1941 = vadd.f32 0.0, %v1940
        %v1942 = vpop.f32.mrf.mxu0
        %v1943 = vpop.f32.mrf.mxu0
        %1944 = vdwg.mxu0
        %1945 = vmatprep.subr.bf16.mxu0 %v1577
        %1946 = vmatpush1.bf16.msra.mxu0 %v1576
        %1947 = vmatprep.subr.bf16.mxu0 %v1569
        %1948 = vmatpush1.bf16.msra.mxu0 %v1568
        %1949 = vmatprep.subr.bf16.mxu0 %v1561
        %1950 = vmatpush1.bf16.msra.mxu0 %v1560
        %1951 = vmatprep.subr.bf16.mxu0 %v1553
        %1952 = vmatpush1.bf16.msra.mxu0 %v1552
        %1953 = vmatprep.subr.bf16.mxu0 %v1545
        %1954 = vmatpush1.bf16.msra.mxu0 %v1544
        %1955 = vmatprep.subr.bf16.mxu0 %v1537
        %1956 = vmatpush1.bf16.msra.mxu0 %v1536
        %1957 = vmatprep.subr.bf16.mxu0 %v1529
        %1958 = vmatpush1.bf16.msra.mxu0 %v1528
        %1959 = vmatprep.subr.bf16.mxu0 %v1521
        %1960 = vmatpush1.bf16.msra.mxu0 %v1520
        %1961 = vmatprep.subr.bf16.mxu0 %v1641
        %1962 = vmatpush2.bf16.msra.mxu0 %v1640
        %1963 = vmatprep.subr.bf16.mxu0 %v1633
        %1964 = vmatpush2.bf16.msra.mxu0 %v1632
        %1965 = vmatprep.subr.bf16.mxu0 %v1625
        %1966 = vmatpush2.bf16.msra.mxu0 %v1624
        %1967 = vmatprep.subr.bf16.mxu0 %v1617
        %1968 = vmatpush2.bf16.msra.mxu0 %v1616
        %1969 = vmatprep.subr.bf16.mxu0 %v1609
        %1970 = vmatpush2.bf16.msra.mxu0 %v1608
        %1971 = vmatprep.subr.bf16.mxu0 %v1601
        %1972 = vmatpush2.bf16.msra.mxu0 %v1600
        %1973 = vmatprep.subr.bf16.mxu0 %v1593
        %1974 = vmatpush2.bf16.msra.mxu0 %v1592
        %1975 = vmatprep.subr.bf16.mxu0 %v1585
        %1976 = vmatpush2.bf16.msra.mxu0 %v1584
        %1977 = vmatprep.mubr.bf16.mxu0 %v367
        %1978 = vmatmul.mubr.bf16.gmra.mxu0 %v366
        %v1979 = vpop.f32.mrf.mxu0
        %v1980 = vadd.f32 %v1939, %v1979
        %v1981 = vpop.f32.mrf.mxu0
        %v1982 = vadd.f32 %v1941, %v1981
        %v1983 = vpop.f32.mrf.mxu0
        %v1984 = vpop.f32.mrf.mxu0
        %1985 = vdwg.mxu0
        %1986 = vmatprep.subr.bf16.mxu0 %v1451
        %1987 = vmatpush1.bf16.msra.mxu0 %v1450
        %1988 = vmatprep.subr.bf16.mxu0 %v1443
        %1989 = vmatpush1.bf16.msra.mxu0 %v1442
        %1990 = vmatprep.subr.bf16.mxu0 %v1435
        %1991 = vmatpush1.bf16.msra.mxu0 %v1434
        %1992 = vmatprep.subr.bf16.mxu0 %v1427
        %1993 = vmatpush1.bf16.msra.mxu0 %v1426
        %1994 = vmatprep.subr.bf16.mxu0 %v1419
        %1995 = vmatpush1.bf16.msra.mxu0 %v1418
        %1996 = vmatprep.subr.bf16.mxu0 %v1411
        %1997 = vmatpush1.bf16.msra.mxu0 %v1410
        %1998 = vmatprep.subr.bf16.mxu0 %v1403
        %1999 = vmatpush1.bf16.msra.mxu0 %v1402
        %2000 = vmatprep.subr.bf16.mxu0 %v1395
        %2001 = vmatpush1.bf16.msra.mxu0 %v1394
        %2002 = vmatprep.subr.bf16.mxu0 %v1515
        %2003 = vmatpush2.bf16.msra.mxu0 %v1514
        %2004 = vmatprep.subr.bf16.mxu0 %v1507
        %2005 = vmatpush2.bf16.msra.mxu0 %v1506
        %2006 = vmatprep.subr.bf16.mxu0 %v1499
        %2007 = vmatpush2.bf16.msra.mxu0 %v1498
        %2008 = vmatprep.subr.bf16.mxu0 %v1491
        %2009 = vmatpush2.bf16.msra.mxu0 %v1490
        %2010 = vmatprep.subr.bf16.mxu0 %v1483
        %2011 = vmatpush2.bf16.msra.mxu0 %v1482
        %2012 = vmatprep.subr.bf16.mxu0 %v1475
        %2013 = vmatpush2.bf16.msra.mxu0 %v1474
        %2014 = vmatprep.subr.bf16.mxu0 %v1467
        %2015 = vmatpush2.bf16.msra.mxu0 %v1466
        %2016 = vmatprep.subr.bf16.mxu0 %v1459
        %2017 = vmatpush2.bf16.msra.mxu0 %v1458
        %2018 = vmatprep.mubr.bf16.mxu0 %v365
        %2019 = vmatmul.mubr.bf16.gmra.mxu0 %v364
        %v2020 = vpop.f32.mrf.mxu0
        %v2021 = vadd.f32 0.0, %v2020
        %v2022 = vpop.f32.mrf.mxu0
        %v2023 = vadd.f32 0.0, %v2022
        %v2024 = vpop.f32.mrf.mxu0
        %v2025 = vpop.f32.mrf.mxu0
        %2026 = vdwg.mxu0
        %2027 = vmatprep.subr.bf16.mxu0 %v1579
        %2028 = vmatpush1.bf16.msra.mxu0 %v1578
        %2029 = vmatprep.subr.bf16.mxu0 %v1571
        %2030 = vmatpush1.bf16.msra.mxu0 %v1570
        %2031 = vmatprep.subr.bf16.mxu0 %v1563
        %2032 = vmatpush1.bf16.msra.mxu0 %v1562
        %2033 = vmatprep.subr.bf16.mxu0 %v1555
        %2034 = vmatpush1.bf16.msra.mxu0 %v1554
        %2035 = vmatprep.subr.bf16.mxu0 %v1547
        %2036 = vmatpush1.bf16.msra.mxu0 %v1546
        %2037 = vmatprep.subr.bf16.mxu0 %v1539
        %2038 = vmatpush1.bf16.msra.mxu0 %v1538
        %2039 = vmatprep.subr.bf16.mxu0 %v1531
        %2040 = vmatpush1.bf16.msra.mxu0 %v1530
        %2041 = vmatprep.subr.bf16.mxu0 %v1523
        %2042 = vmatpush1.bf16.msra.mxu0 %v1522
        %2043 = vmatprep.subr.bf16.mxu0 %v1643
        %2044 = vmatpush2.bf16.msra.mxu0 %v1642
        %2045 = vmatprep.subr.bf16.mxu0 %v1635
        %2046 = vmatpush2.bf16.msra.mxu0 %v1634
        %2047 = vmatprep.subr.bf16.mxu0 %v1627
        %2048 = vmatpush2.bf16.msra.mxu0 %v1626
        %2049 = vmatprep.subr.bf16.mxu0 %v1619
        %2050 = vmatpush2.bf16.msra.mxu0 %v1618
        %2051 = vmatprep.subr.bf16.mxu0 %v1611
        %2052 = vmatpush2.bf16.msra.mxu0 %v1610
        %2053 = vmatprep.subr.bf16.mxu0 %v1603
        %2054 = vmatpush2.bf16.msra.mxu0 %v1602
        %2055 = vmatprep.subr.bf16.mxu0 %v1595
        %2056 = vmatpush2.bf16.msra.mxu0 %v1594
        %2057 = vmatprep.subr.bf16.mxu0 %v1587
        %2058 = vmatpush2.bf16.msra.mxu0 %v1586
        %2059 = vmatprep.mubr.bf16.mxu0 %v367
        %2060 = vmatmul.mubr.bf16.gmra.mxu0 %v366
        %v2061 = vpop.f32.mrf.mxu0
        %v2062 = vadd.f32 %v2021, %v2061
        %v2063 = vpop.f32.mrf.mxu0
        %v2064 = vadd.f32 %v2023, %v2063
        %v2065 = vpop.f32.mrf.mxu0
        %v2066 = vpop.f32.mrf.mxu0
        %2067 = vdwg.mxu0
        %2068 = vmatprep.subr.bf16.mxu0 %v1453
        %2069 = vmatpush1.bf16.msra.mxu0 %v1452
        %2070 = vmatprep.subr.bf16.mxu0 %v1445
        %2071 = vmatpush1.bf16.msra.mxu0 %v1444
        %2072 = vmatprep.subr.bf16.mxu0 %v1437
        %2073 = vmatpush1.bf16.msra.mxu0 %v1436
        %2074 = vmatprep.subr.bf16.mxu0 %v1429
        %2075 = vmatpush1.bf16.msra.mxu0 %v1428
        %2076 = vmatprep.subr.bf16.mxu0 %v1421
        %2077 = vmatpush1.bf16.msra.mxu0 %v1420
        %2078 = vmatprep.subr.bf16.mxu0 %v1413
        %2079 = vmatpush1.bf16.msra.mxu0 %v1412
        %2080 = vmatprep.subr.bf16.mxu0 %v1405
        %2081 = vmatpush1.bf16.msra.mxu0 %v1404
        %2082 = vmatprep.subr.bf16.mxu0 %v1397
        %2083 = vmatpush1.bf16.msra.mxu0 %v1396
        %2084 = vmatprep.subr.bf16.mxu0 %v1517
        %2085 = vmatpush2.bf16.msra.mxu0 %v1516
        %2086 = vmatprep.subr.bf16.mxu0 %v1509
        %2087 = vmatpush2.bf16.msra.mxu0 %v1508
        %2088 = vmatprep.subr.bf16.mxu0 %v1501
        %2089 = vmatpush2.bf16.msra.mxu0 %v1500
        %2090 = vmatprep.subr.bf16.mxu0 %v1493
        %2091 = vmatpush2.bf16.msra.mxu0 %v1492
        %2092 = vmatprep.subr.bf16.mxu0 %v1485
        %2093 = vmatpush2.bf16.msra.mxu0 %v1484
        %2094 = vmatprep.subr.bf16.mxu0 %v1477
        %2095 = vmatpush2.bf16.msra.mxu0 %v1476
        %2096 = vmatprep.subr.bf16.mxu0 %v1469
        %2097 = vmatpush2.bf16.msra.mxu0 %v1468
        %2098 = vmatprep.subr.bf16.mxu0 %v1461
        %2099 = vmatpush2.bf16.msra.mxu0 %v1460
        %2100 = vmatprep.mubr.bf16.mxu0 %v365
        %2101 = vmatmul.mubr.bf16.gmra.mxu0 %v364
        %v2102 = vpop.f32.mrf.mxu0
        %v2103 = vadd.f32 0.0, %v2102
        %v2104 = vpop.f32.mrf.mxu0
        %v2105 = vadd.f32 0.0, %v2104
        %v2106 = vpop.f32.mrf.mxu0
        %v2107 = vpop.f32.mrf.mxu0
        %2108 = vdwg.mxu0
        %2109 = vmatprep.subr.bf16.mxu0 %v1581
        %2110 = vmatpush1.bf16.msra.mxu0 %v1580
        %2111 = vmatprep.subr.bf16.mxu0 %v1573
        %2112 = vmatpush1.bf16.msra.mxu0 %v1572
        %2113 = vmatprep.subr.bf16.mxu0 %v1565
        %2114 = vmatpush1.bf16.msra.mxu0 %v1564
        %2115 = vmatprep.subr.bf16.mxu0 %v1557
        %2116 = vmatpush1.bf16.msra.mxu0 %v1556
        %2117 = vmatprep.subr.bf16.mxu0 %v1549
        %2118 = vmatpush1.bf16.msra.mxu0 %v1548
        %2119 = vmatprep.subr.bf16.mxu0 %v1541
        %2120 = vmatpush1.bf16.msra.mxu0 %v1540
        %2121 = vmatprep.subr.bf16.mxu0 %v1533
        %2122 = vmatpush1.bf16.msra.mxu0 %v1532
        %2123 = vmatprep.subr.bf16.mxu0 %v1525
        %2124 = vmatpush1.bf16.msra.mxu0 %v1524
        %2125 = vmatprep.subr.bf16.mxu0 %v1645
        %2126 = vmatpush2.bf16.msra.mxu0 %v1644
        %2127 = vmatprep.subr.bf16.mxu0 %v1637
        %2128 = vmatpush2.bf16.msra.mxu0 %v1636
        %2129 = vmatprep.subr.bf16.mxu0 %v1629
        %2130 = vmatpush2.bf16.msra.mxu0 %v1628
        %2131 = vmatprep.subr.bf16.mxu0 %v1621
        %2132 = vmatpush2.bf16.msra.mxu0 %v1620
        %2133 = vmatprep.subr.bf16.mxu0 %v1613
        %2134 = vmatpush2.bf16.msra.mxu0 %v1612
        %2135 = vmatprep.subr.bf16.mxu0 %v1605
        %2136 = vmatpush2.bf16.msra.mxu0 %v1604
        %2137 = vmatprep.subr.bf16.mxu0 %v1597
        %2138 = vmatpush2.bf16.msra.mxu0 %v1596
        %2139 = vmatprep.subr.bf16.mxu0 %v1589
        %2140 = vmatpush2.bf16.msra.mxu0 %v1588
        %2141 = vmatprep.mubr.bf16.mxu0 %v367
        %2142 = vmatmul.mubr.bf16.gmra.mxu0 %v366
        %v2143 = vpop.f32.mrf.mxu0
        %v2144 = vadd.f32 %v2103, %v2143
        %v2145 = vpop.f32.mrf.mxu0
        %v2146 = vadd.f32 %v2105, %v2145
        %v2147 = vpop.f32.mrf.mxu0
        %v2148 = vpop.f32.mrf.mxu0
        %2149 = vdwg.mxu0
        %2150 = vmatprep.subr.bf16.mxu0 %v1455
        %2151 = vmatpush1.bf16.msra.mxu0 %v1454
        %2152 = vmatprep.subr.bf16.mxu0 %v1447
        %2153 = vmatpush1.bf16.msra.mxu0 %v1446
        %2154 = vmatprep.subr.bf16.mxu0 %v1439
        %2155 = vmatpush1.bf16.msra.mxu0 %v1438
        %2156 = vmatprep.subr.bf16.mxu0 %v1431
        %2157 = vmatpush1.bf16.msra.mxu0 %v1430
        %2158 = vmatprep.subr.bf16.mxu0 %v1423
        %2159 = vmatpush1.bf16.msra.mxu0 %v1422
        %2160 = vmatprep.subr.bf16.mxu0 %v1415
        %2161 = vmatpush1.bf16.msra.mxu0 %v1414
        %2162 = vmatprep.subr.bf16.mxu0 %v1407
        %2163 = vmatpush1.bf16.msra.mxu0 %v1406
        %2164 = vmatprep.subr.bf16.mxu0 %v1399
        %2165 = vmatpush1.bf16.msra.mxu0 %v1398
        %2166 = vmatprep.subr.bf16.mxu0 %v1519
        %2167 = vmatpush2.bf16.msra.mxu0 %v1518
        %2168 = vmatprep.subr.bf16.mxu0 %v1511
        %2169 = vmatpush2.bf16.msra.mxu0 %v1510
        %2170 = vmatprep.subr.bf16.mxu0 %v1503
        %2171 = vmatpush2.bf16.msra.mxu0 %v1502
        %2172 = vmatprep.subr.bf16.mxu0 %v1495
        %2173 = vmatpush2.bf16.msra.mxu0 %v1494
        %2174 = vmatprep.subr.bf16.mxu0 %v1487
        %2175 = vmatpush2.bf16.msra.mxu0 %v1486
        %2176 = vmatprep.subr.bf16.mxu0 %v1479
        %2177 = vmatpush2.bf16.msra.mxu0 %v1478
        %2178 = vmatprep.subr.bf16.mxu0 %v1471
        %2179 = vmatpush2.bf16.msra.mxu0 %v1470
        %2180 = vmatprep.subr.bf16.mxu0 %v1463
        %2181 = vmatpush2.bf16.msra.mxu0 %v1462
        %2182 = vmatprep.mubr.bf16.mxu0 %v365
        %2183 = vmatmul.mubr.bf16.gmra.mxu0 %v364
        %v2184 = vpop.f32.mrf.mxu0
        %v2185 = vadd.f32 0.0, %v2184
        %v2186 = vpop.f32.mrf.mxu0
        %v2187 = vadd.f32 0.0, %v2186
        %v2188 = vpop.f32.mrf.mxu0
        %v2189 = vpop.f32.mrf.mxu0
        %2190 = vdwg.mxu0
        %2191 = vmatprep.subr.bf16.mxu0 %v1583
        %2192 = vmatpush1.bf16.msra.mxu0 %v1582
        %2193 = vmatprep.subr.bf16.mxu0 %v1575
        %2194 = vmatpush1.bf16.msra.mxu0 %v1574
        %2195 = vmatprep.subr.bf16.mxu0 %v1567
        %2196 = vmatpush1.bf16.msra.mxu0 %v1566
        %2197 = vmatprep.subr.bf16.mxu0 %v1559
        %2198 = vmatpush1.bf16.msra.mxu0 %v1558
        %2199 = vmatprep.subr.bf16.mxu0 %v1551
        %2200 = vmatpush1.bf16.msra.mxu0 %v1550
        %2201 = vmatprep.subr.bf16.mxu0 %v1543
        %2202 = vmatpush1.bf16.msra.mxu0 %v1542
        %2203 = vmatprep.subr.bf16.mxu0 %v1535
        %2204 = vmatpush1.bf16.msra.mxu0 %v1534
        %2205 = vmatprep.subr.bf16.mxu0 %v1527
        %2206 = vmatpush1.bf16.msra.mxu0 %v1526
        %2207 = vmatprep.subr.bf16.mxu0 %v1647
        %2208 = vmatpush2.bf16.msra.mxu0 %v1646
        %2209 = vmatprep.subr.bf16.mxu0 %v1639
        %2210 = vmatpush2.bf16.msra.mxu0 %v1638
        %2211 = vmatprep.subr.bf16.mxu0 %v1631
        %2212 = vmatpush2.bf16.msra.mxu0 %v1630
        %2213 = vmatprep.subr.bf16.mxu0 %v1623
        %2214 = vmatpush2.bf16.msra.mxu0 %v1622
        %2215 = vmatprep.subr.bf16.mxu0 %v1615
        %2216 = vmatpush2.bf16.msra.mxu0 %v1614
        %2217 = vmatprep.subr.bf16.mxu0 %v1607
        %2218 = vmatpush2.bf16.msra.mxu0 %v1606
        %2219 = vmatprep.subr.bf16.mxu0 %v1599
        %2220 = vmatpush2.bf16.msra.mxu0 %v1598
        %2221 = vmatprep.subr.bf16.mxu0 %v1591
        %2222 = vmatpush2.bf16.msra.mxu0 %v1590
        %2223 = vmatprep.mubr.bf16.mxu0 %v367
        %2224 = vmatmul.mubr.bf16.gmra.mxu0 %v366
        %v2225 = vpop.f32.mrf.mxu0
        %v2226 = vadd.f32 %v2185, %v2225
        %v2227 = vpop.f32.mrf.mxu0
        %v2228 = vadd.f32 %v2187, %v2227
        %v2229 = vpop.f32.mrf.mxu0
        %v2230 = vpop.f32.mrf.mxu0
        %2231 = vdwg.mxu0
        %v2232 = vrot.slane %v1980, 4
        %v2233 = vadd.f32 %v1980, %v2232
        %v2234 = vrot.slane %v2233, 2
        %v2235 = vadd.f32 %v2233, %v2234
        %v2236 = vrot.slane %v2235, 1
        %v2237 = vadd.f32 %v2235, %v2236
        %v2238 = vrot.slane %v1982, 4
        %v2239 = vadd.f32 %v1982, %v2238
        %v2240 = vrot.slane %v2239, 2
        %v2241 = vadd.f32 %v2239, %v2240
        %v2242 = vrot.slane %v2241, 1
        %v2243 = vadd.f32 %v2241, %v2242
        %v2244 = vrot.slane %v2062, 4
        %v2245 = vadd.f32 %v2062, %v2244
        %v2246 = vrot.slane %v2245, 2
        %v2247 = vadd.f32 %v2245, %v2246
        %v2248 = vrot.slane %v2247, 1
        %v2249 = vadd.f32 %v2247, %v2248
        %v2250 = vrot.slane %v2064, 4
        %v2251 = vadd.f32 %v2064, %v2250
        %v2252 = vrot.slane %v2251, 2
        %v2253 = vadd.f32 %v2251, %v2252
        %v2254 = vrot.slane %v2253, 1
        %v2255 = vadd.f32 %v2253, %v2254
        %v2256 = vrot.slane %v2144, 4
        %v2257 = vadd.f32 %v2144, %v2256
        %v2258 = vrot.slane %v2257, 2
        %v2259 = vadd.f32 %v2257, %v2258
        %v2260 = vrot.slane %v2259, 1
        %v2261 = vadd.f32 %v2259, %v2260
        %v2262 = vrot.slane %v2146, 4
        %v2263 = vadd.f32 %v2146, %v2262
        %v2264 = vrot.slane %v2263, 2
        %v2265 = vadd.f32 %v2263, %v2264
        %v2266 = vrot.slane %v2265, 1
        %v2267 = vadd.f32 %v2265, %v2266
        %v2268 = vrot.slane %v2226, 4
        %v2269 = vadd.f32 %v2226, %v2268
        %v2270 = vrot.slane %v2269, 2
        %v2271 = vadd.f32 %v2269, %v2270
        %v2272 = vrot.slane %v2271, 1
        %v2273 = vadd.f32 %v2271, %v2272
        %v2274 = vrot.slane %v2228, 4
        %v2275 = vadd.f32 %v2228, %v2274
        %v2276 = vrot.slane %v2275, 2
        %v2277 = vadd.f32 %v2275, %v2276
        %v2278 = vrot.slane %v2277, 1
        %v2279 = vadd.f32 %v2277, %v2278
        %v2280 = vrcp.pop 8.0
        %v2281 = vmul.f32 %v2237, %v2280
        %v2282 = vmul.f32 %v2243, %v2280
        %v2283 = vmul.f32 %v2249, %v2280
        %v2284 = vmul.f32 %v2255, %v2280
        %v2285 = vmul.f32 %v2261, %v2280
        %v2286 = vmul.f32 %v2267, %v2280
        %v2287 = vmul.f32 %v2273, %v2280
        %v2288 = vmul.f32 %v2279, %v2280
        %v2289 = vsub.f32 %v1980, %v2281
        %v2290 = vsub.f32 %v1982, %v2282
        %v2291 = vsub.f32 %v2062, %v2283
        %v2292 = vsub.f32 %v2064, %v2284
        %v2293 = vsub.f32 %v2144, %v2285
        %v2294 = vsub.f32 %v2146, %v2286
        %v2295 = vsub.f32 %v2226, %v2287
        %v2296 = vsub.f32 %v2228, %v2288
        %v2297 = vmul.f32 %v2289, %v2289
        %v2298 = vmul.f32 %v2290, %v2290
        %v2299 = vmul.f32 %v2291, %v2291
        %v2300 = vmul.f32 %v2292, %v2292
        %v2301 = vmul.f32 %v2293, %v2293
        %v2302 = vmul.f32 %v2294, %v2294
        %v2303 = vmul.f32 %v2295, %v2295
        %v2304 = vmul.f32 %v2296, %v2296
        %v2305 = vrot.slane %v2297, 4
        %v2306 = vadd.f32 %v2297, %v2305
        %v2307 = vrot.slane %v2306, 2
        %v2308 = vadd.f32 %v2306, %v2307
        %v2309 = vrot.slane %v2308, 1
        %v2310 = vadd.f32 %v2308, %v2309
        %v2311 = vrot.slane %v2298, 4
        %v2312 = vadd.f32 %v2298, %v2311
        %v2313 = vrot.slane %v2312, 2
        %v2314 = vadd.f32 %v2312, %v2313
        %v2315 = vrot.slane %v2314, 1
        %v2316 = vadd.f32 %v2314, %v2315
        %v2317 = vrot.slane %v2299, 4
        %v2318 = vadd.f32 %v2299, %v2317
        %v2319 = vrot.slane %v2318, 2
        %v2320 = vadd.f32 %v2318, %v2319
        %v2321 = vrot.slane %v2320, 1
        %v2322 = vadd.f32 %v2320, %v2321
        %v2323 = vrot.slane %v2300, 4
        %v2324 = vadd.f32 %v2300, %v2323
        %v2325 = vrot.slane %v2324, 2
        %v2326 = vadd.f32 %v2324, %v2325
        %v2327 = vrot.slane %v2326, 1
        %v2328 = vadd.f32 %v2326, %v2327
        %v2329 = vrot.slane %v2301, 4
        %v2330 = vadd.f32 %v2301, %v2329
        %v2331 = vrot.slane %v2330, 2
        %v2332 = vadd.f32 %v2330, %v2331
        %v2333 = vrot.slane %v2332, 1
        %v2334 = vadd.f32 %v2332, %v2333
        %v2335 = vrot.slane %v2302, 4
        %v2336 = vadd.f32 %v2302, %v2335
        %v2337 = vrot.slane %v2336, 2
        %v2338 = vadd.f32 %v2336, %v2337
        %v2339 = vrot.slane %v2338, 1
        %v2340 = vadd.f32 %v2338, %v2339
        %v2341 = vrot.slane %v2303, 4
        %v2342 = vadd.f32 %v2303, %v2341
        %v2343 = vrot.slane %v2342, 2
        %v2344 = vadd.f32 %v2342, %v2343
        %v2345 = vrot.slane %v2344, 1
        %v2346 = vadd.f32 %v2344, %v2345
        %v2347 = vrot.slane %v2304, 4
        %v2348 = vadd.f32 %v2304, %v2347
        %v2349 = vrot.slane %v2348, 2
        %v2350 = vadd.f32 %v2348, %v2349
        %v2351 = vrot.slane %v2350, 1
        %v2352 = vadd.f32 %v2350, %v2351
        %v2353 = vmul.f32 %v2310, %v2280
        %v2354 = vmul.f32 %v2316, %v2280
        %v2355 = vmul.f32 %v2322, %v2280
        %v2356 = vmul.f32 %v2328, %v2280
        %v2357 = vmul.f32 %v2334, %v2280
        %v2358 = vmul.f32 %v2340, %v2280
        %v2359 = vmul.f32 %v2346, %v2280
        %v2360 = vmul.f32 %v2352, %v2280
        %v2361 = vld [vmem:[#allocation6] sm:$0xff]
        %v2362 = vadd.f32 %v2353, 1e-05
        %v2363 = vadd.f32 %v2354, 1e-05
        %v2364 = vadd.f32 %v2355, 1e-05
        %v2365 = vadd.f32 %v2356, 1e-05
        %v2366 = vadd.f32 %v2357, 1e-05
        %v2367 = vadd.f32 %v2358, 1e-05
        %v2368 = vadd.f32 %v2359, 1e-05
        %v2369 = vadd.f32 %v2360, 1e-05
        %v2370 = vrsqrt.pop %v2362
        %v2371 = vrsqrt.pop %v2363
        %v2372 = vrsqrt.pop %v2364
        %v2373 = vrsqrt.pop %v2365
        %v2374 = vrsqrt.pop %v2366
        %v2375 = vrsqrt.pop %v2367
        %v2376 = vrsqrt.pop %v2368
        %v2377 = vrsqrt.pop %v2369
        %v2386 = vcombine.low %v2370, %v2371
        %v2387 = vcombine.low %v2372, %v2373
        %v2388 = vcombine.low %v2374, %v2375
        %v2389 = vcombine.low %v2376, %v2377
        %v2391 = vunpack.c.l.s4 1966171168
        %v2392 = vunpack.c.0.s8 %v2391
        %v2393 = vlaneseq
        %v2394 = vshrl.u32 %v2393, 7
        %v2395 = vsub.s32 %v2392, %v2394
        %v2396 = vrot.slane %v2386, %v2395
        %v2398 = vunpack.c.l.s4 1966171168
        %v2399 = vunpack.c.0.s8 %v2398
        %v2400 = vlaneseq
        %v2401 = vshrl.u32 %v2400, 7
        %v2402 = vsub.s32 %v2399, %v2401
        %v2403 = vrot.slane %v2387, %v2402
        %v2405 = vunpack.c.l.s4 1966171168
        %v2406 = vunpack.c.0.s8 %v2405
        %v2407 = vlaneseq
        %v2408 = vshrl.u32 %v2407, 7
        %v2409 = vsub.s32 %v2406, %v2408
        %v2410 = vrot.slane %v2388, %v2409
        %v2412 = vunpack.c.l.s4 1966171168
        %v2413 = vunpack.c.0.s8 %v2412
        %v2414 = vlaneseq
        %v2415 = vshrl.u32 %v2414, 7
        %v2416 = vsub.s32 %v2413, %v2415
        %v2417 = vrot.slane %v2389, %v2416
        %v2418 = vcombine.low %v2396, %v2403
        %v2419 = vcombine.low %v2410, %v2417
        %v2421 = vunpack.c.l.s4 1966171168
        %v2422 = vunpack.c.0.s8 %v2421
        %v2423 = vlaneseq
        %v2424 = vshrl.u32 %v2423, 7
        %v2425 = vsub.s32 %v2422, %v2424
        %v2426 = vrot.slane %v2418, %v2425
        %v2428 = vunpack.c.l.s4 1966171168
        %v2429 = vunpack.c.0.s8 %v2428
        %v2430 = vlaneseq
        %v2431 = vshrl.u32 %v2430, 7
        %v2432 = vsub.s32 %v2429, %v2431
        %v2433 = vrot.slane %v2419, %v2432
        %v2434 = vcombine.low %v2426, %v2433
        %v2436 = vmul.f32 %v2361, %v2434
        %v2438 = vlaneseq
        %v2439 = vshrl.u32 %v2438, 7
        %v2440 = vsub.s32 0, %v2439
        %v2441 = vrot.slane %v2436, %v2440
        %v2442 = vlaneseq
        %v2443 = vshrl.u32 %v2442, 7
        %v2444 = vsub.s32 1, %v2443
        %v2445 = vrot.slane %v2436, %v2444
        %v2446 = vlaneseq
        %v2447 = vshrl.u32 %v2446, 7
        %v2448 = vsub.s32 2, %v2447
        %v2449 = vrot.slane %v2436, %v2448
        %v2450 = vlaneseq
        %v2451 = vshrl.u32 %v2450, 7
        %v2452 = vsub.s32 3, %v2451
        %v2453 = vrot.slane %v2436, %v2452
        %v2454 = vlaneseq
        %v2455 = vshrl.u32 %v2454, 7
        %v2456 = vsub.s32 4, %v2455
        %v2457 = vrot.slane %v2436, %v2456
        %v2458 = vlaneseq
        %v2459 = vshrl.u32 %v2458, 7
        %v2460 = vsub.s32 5, %v2459
        %v2461 = vrot.slane %v2436, %v2460
        %v2462 = vlaneseq
        %v2463 = vshrl.u32 %v2462, 7
        %v2464 = vsub.s32 6, %v2463
        %v2465 = vrot.slane %v2436, %v2464
        %v2466 = vlaneseq
        %v2467 = vshrl.u32 %v2466, 7
        %v2468 = vsub.s32 7, %v2467
        %v2469 = vrot.slane %v2436, %v2468
        %v2478 = vmul.f32 %v2289, %v2441
        %v2479 = vmul.f32 %v2290, %v2445
        %v2480 = vmul.f32 %v2291, %v2449
        %v2481 = vmul.f32 %v2292, %v2453
        %v2482 = vmul.f32 %v2293, %v2457
        %v2483 = vmul.f32 %v2294, %v2461
        %v2484 = vmul.f32 %v2295, %v2465
        %v2485 = vmul.f32 %v2296, %v2469
        %v2486 = vld [vmem:[#allocation7] sm:$0xff]
        %v2488 = vlaneseq
        %v2489 = vshrl.u32 %v2488, 7
        %v2490 = vsub.s32 0, %v2489
        %v2491 = vrot.slane %v2486, %v2490
        %v2492 = vlaneseq
        %v2493 = vshrl.u32 %v2492, 7
        %v2494 = vsub.s32 1, %v2493
        %v2495 = vrot.slane %v2486, %v2494
        %v2496 = vlaneseq
        %v2497 = vshrl.u32 %v2496, 7
        %v2498 = vsub.s32 2, %v2497
        %v2499 = vrot.slane %v2486, %v2498
        %v2500 = vlaneseq
        %v2501 = vshrl.u32 %v2500, 7
        %v2502 = vsub.s32 3, %v2501
        %v2503 = vrot.slane %v2486, %v2502
        %v2504 = vlaneseq
        %v2505 = vshrl.u32 %v2504, 7
        %v2506 = vsub.s32 4, %v2505
        %v2507 = vrot.slane %v2486, %v2506
        %v2508 = vlaneseq
        %v2509 = vshrl.u32 %v2508, 7
        %v2510 = vsub.s32 5, %v2509
        %v2511 = vrot.slane %v2486, %v2510
        %v2512 = vlaneseq
        %v2513 = vshrl.u32 %v2512, 7
        %v2514 = vsub.s32 6, %v2513
        %v2515 = vrot.slane %v2486, %v2514
        %v2516 = vlaneseq
        %v2517 = vshrl.u32 %v2516, 7
        %v2518 = vsub.s32 7, %v2517
        %v2519 = vrot.slane %v2486, %v2518
        %v2528 = vadd.f32 %v2478, %v2491
        %v2529 = vadd.f32 %v2479, %v2495
        %v2530 = vadd.f32 %v2480, %v2499
        %v2531 = vadd.f32 %v2481, %v2503
        %v2532 = vadd.f32 %v2482, %v2507
        %v2533 = vadd.f32 %v2483, %v2511
        %v2534 = vadd.f32 %v2484, %v2515
        %v2535 = vadd.f32 %v2485, %v2519
        %vm2536 = vcmp.ge.f32.partialorder %v2528, 0.0
        %vm2537 = vcmp.ge.f32.partialorder %v2529, 0.0
        %vm2538 = vcmp.ge.f32.partialorder %v2530, 0.0
        %vm2539 = vcmp.ge.f32.partialorder %v2531, 0.0
        %vm2540 = vcmp.ge.f32.partialorder %v2532, 0.0
        %vm2541 = vcmp.ge.f32.partialorder %v2533, 0.0
        %vm2542 = vcmp.ge.f32.partialorder %v2534, 0.0
        %vm2543 = vcmp.ge.f32.partialorder %v2535, 0.0
        %v2544 = vmul.f32 %v2528, 0.01
        %v2545 = vmul.f32 %v2529, 0.01
        %v2546 = vmul.f32 %v2530, 0.01
        %v2547 = vmul.f32 %v2531, 0.01
        %v2548 = vmul.f32 %v2532, 0.01
        %v2549 = vmul.f32 %v2533, 0.01
        %v2550 = vmul.f32 %v2534, 0.01
        %v2551 = vmul.f32 %v2535, 0.01
        %v2552 = vsel %vm2536, %v2528, %v2544
        %v2553 = vsel %vm2537, %v2529, %v2545
        %v2554 = vsel %vm2538, %v2530, %v2546
        %v2555 = vsel %vm2539, %v2531, %v2547
        %v2556 = vsel %vm2540, %v2532, %v2548
        %v2557 = vsel %vm2541, %v2533, %v2549
        %v2558 = vsel %vm2542, %v2534, %v2550
        %v2559 = vsel %vm2543, %v2535, %v2551
        %v2560 = vpack.c.bf16 %v2552, %v2552
        %v2561 = vpack.c.bf16 %v2553, %v2553
        %v2562 = vpack.c.bf16 %v2554, %v2554
        %v2563 = vpack.c.bf16 %v2555, %v2555
        %v2564 = vpack.c.bf16 %v2556, %v2556
        %v2565 = vpack.c.bf16 %v2557, %v2557
        %v2566 = vpack.c.bf16 %v2558, %v2558
        %v2567 = vpack.c.bf16 %v2559, %v2559
        %v2568 = vld [vmem:[%s309] sm:$0xff]
        %v2569 = vld [vmem:[%s309 + $0x8] sm:$0xff]
        %v2570 = vld [vmem:[%s309 + $0x10] sm:$0xff]
        %v2571 = vld [vmem:[%s309 + $0x18] sm:$0xff]
        %v2572 = vld [vmem:[%s309 + $0x20] sm:$0xff]
        %v2573 = vld [vmem:[%s309 + $0x28] sm:$0xff]
        %v2574 = vld [vmem:[%s309 + $0x30] sm:$0xff]
        %v2575 = vld [vmem:[%s309 + $0x38] sm:$0xff]
        %v2576 = vld [vmem:[%s309 + $0x40] sm:$0xff]
        %v2577 = vld [vmem:[%s309 + $0x48] sm:$0xff]
        %v2578 = vld [vmem:[%s309 + $0x50] sm:$0xff]
        %v2579 = vld [vmem:[%s309 + $0x58] sm:$0xff]
        %v2580 = vld [vmem:[%s309 + $0x60] sm:$0xff]
        %v2581 = vld [vmem:[%s309 + $0x68] sm:$0xff]
        %v2582 = vld [vmem:[%s309 + $0x70] sm:$0xff]
        %v2583 = vld [vmem:[%s309 + $0x78] sm:$0xff]
        %v2584 = vld [vmem:[%s309 + $0x80] sm:$0xff]
        %v2585 = vld [vmem:[%s309 + $0x88] sm:$0xff]
        %v2586 = vld [vmem:[%s309 + $0x90] sm:$0xff]
        %v2587 = vld [vmem:[%s309 + $0x98] sm:$0xff]
        %v2588 = vld [vmem:[%s309 + $0xa0] sm:$0xff]
        %v2589 = vld [vmem:[%s309 + $0xa8] sm:$0xff]
        %v2590 = vld [vmem:[%s309 + $0xb0] sm:$0xff]
        %v2591 = vld [vmem:[%s309 + $0xb8] sm:$0xff]
        %v2592 = vld [vmem:[%s309 + $0xc0] sm:$0xff]
        %v2593 = vld [vmem:[%s309 + $0xc8] sm:$0xff]
        %v2594 = vld [vmem:[%s309 + $0xd0] sm:$0xff]
        %v2595 = vld [vmem:[%s309 + $0xd8] sm:$0xff]
        %v2596 = vld [vmem:[%s309 + $0xe0] sm:$0xff]
        %v2597 = vld [vmem:[%s309 + $0xe8] sm:$0xff]
        %v2598 = vld [vmem:[%s309 + $0xf0] sm:$0xff]
        %v2599 = vld [vmem:[%s309 + $0xf8] sm:$0xff]
        %v2600 = vld [vmem:[%s309 + $0x100] sm:$0xff]
        %v2601 = vld [vmem:[%s309 + $0x108] sm:$0xff]
        %v2602 = vld [vmem:[%s309 + $0x110] sm:$0xff]
        %v2603 = vld [vmem:[%s309 + $0x118] sm:$0xff]
        %v2604 = vld [vmem:[%s309 + $0x120] sm:$0xff]
        %v2605 = vld [vmem:[%s309 + $0x128] sm:$0xff]
        %v2606 = vld [vmem:[%s309 + $0x130] sm:$0xff]
        %v2607 = vld [vmem:[%s309 + $0x138] sm:$0xff]
        %v2608 = vld [vmem:[%s309 + $0x140] sm:$0xff]
        %v2609 = vld [vmem:[%s309 + $0x148] sm:$0xff]
        %v2610 = vld [vmem:[%s309 + $0x150] sm:$0xff]
        %v2611 = vld [vmem:[%s309 + $0x158] sm:$0xff]
        %v2612 = vld [vmem:[%s309 + $0x160] sm:$0xff]
        %v2613 = vld [vmem:[%s309 + $0x168] sm:$0xff]
        %v2614 = vld [vmem:[%s309 + $0x170] sm:$0xff]
        %v2615 = vld [vmem:[%s309 + $0x178] sm:$0xff]
        %v2616 = vld [vmem:[%s309 + $0x180] sm:$0xff]
        %v2617 = vld [vmem:[%s309 + $0x188] sm:$0xff]
        %v2618 = vld [vmem:[%s309 + $0x190] sm:$0xff]
        %v2619 = vld [vmem:[%s309 + $0x198] sm:$0xff]
        %v2620 = vld [vmem:[%s309 + $0x1a0] sm:$0xff]
        %v2621 = vld [vmem:[%s309 + $0x1a8] sm:$0xff]
        %v2622 = vld [vmem:[%s309 + $0x1b0] sm:$0xff]
        %v2623 = vld [vmem:[%s309 + $0x1b8] sm:$0xff]
        %v2624 = vld [vmem:[%s309 + $0x1c0] sm:$0xff]
        %v2625 = vld [vmem:[%s309 + $0x1c8] sm:$0xff]
        %v2626 = vld [vmem:[%s309 + $0x1d0] sm:$0xff]
        %v2627 = vld [vmem:[%s309 + $0x1d8] sm:$0xff]
        %v2628 = vld [vmem:[%s309 + $0x1e0] sm:$0xff]
        %v2629 = vld [vmem:[%s309 + $0x1e8] sm:$0xff]
        %v2630 = vld [vmem:[%s309 + $0x1f0] sm:$0xff]
        %v2631 = vld [vmem:[%s309 + $0x1f8] sm:$0xff]
        %v2632 = vld [vmem:[%s309 + $0x200] sm:$0xff]
        %v2633 = vld [vmem:[%s309 + $0x208] sm:$0xff]
        %v2634 = vld [vmem:[%s309 + $0x210] sm:$0xff]
        %v2635 = vld [vmem:[%s309 + $0x218] sm:$0xff]
        %v2636 = vld [vmem:[%s309 + $0x220] sm:$0xff]
        %v2637 = vld [vmem:[%s309 + $0x228] sm:$0xff]
        %v2638 = vld [vmem:[%s309 + $0x230] sm:$0xff]
        %v2639 = vld [vmem:[%s309 + $0x238] sm:$0xff]
        %v2640 = vld [vmem:[%s309 + $0x240] sm:$0xff]
        %v2641 = vld [vmem:[%s309 + $0x248] sm:$0xff]
        %v2642 = vld [vmem:[%s309 + $0x250] sm:$0xff]
        %v2643 = vld [vmem:[%s309 + $0x258] sm:$0xff]
        %v2644 = vld [vmem:[%s309 + $0x260] sm:$0xff]
        %v2645 = vld [vmem:[%s309 + $0x268] sm:$0xff]
        %v2646 = vld [vmem:[%s309 + $0x270] sm:$0xff]
        %v2647 = vld [vmem:[%s309 + $0x278] sm:$0xff]
        %v2648 = vld [vmem:[%s309 + $0x280] sm:$0xff]
        %v2649 = vld [vmem:[%s309 + $0x288] sm:$0xff]
        %v2650 = vld [vmem:[%s309 + $0x290] sm:$0xff]
        %v2651 = vld [vmem:[%s309 + $0x298] sm:$0xff]
        %v2652 = vld [vmem:[%s309 + $0x2a0] sm:$0xff]
        %v2653 = vld [vmem:[%s309 + $0x2a8] sm:$0xff]
        %v2654 = vld [vmem:[%s309 + $0x2b0] sm:$0xff]
        %v2655 = vld [vmem:[%s309 + $0x2b8] sm:$0xff]
        %v2656 = vld [vmem:[%s309 + $0x2c0] sm:$0xff]
        %v2657 = vld [vmem:[%s309 + $0x2c8] sm:$0xff]
        %v2658 = vld [vmem:[%s309 + $0x2d0] sm:$0xff]
        %v2659 = vld [vmem:[%s309 + $0x2d8] sm:$0xff]
        %v2660 = vld [vmem:[%s309 + $0x2e0] sm:$0xff]
        %v2661 = vld [vmem:[%s309 + $0x2e8] sm:$0xff]
        %v2662 = vld [vmem:[%s309 + $0x2f0] sm:$0xff]
        %v2663 = vld [vmem:[%s309 + $0x2f8] sm:$0xff]
        %v2664 = vld [vmem:[%s309 + $0x300] sm:$0xff]
        %v2665 = vld [vmem:[%s309 + $0x308] sm:$0xff]
        %v2666 = vld [vmem:[%s309 + $0x310] sm:$0xff]
        %v2667 = vld [vmem:[%s309 + $0x318] sm:$0xff]
        %v2668 = vld [vmem:[%s309 + $0x320] sm:$0xff]
        %v2669 = vld [vmem:[%s309 + $0x328] sm:$0xff]
        %v2670 = vld [vmem:[%s309 + $0x330] sm:$0xff]
        %v2671 = vld [vmem:[%s309 + $0x338] sm:$0xff]
        %v2672 = vld [vmem:[%s309 + $0x340] sm:$0xff]
        %v2673 = vld [vmem:[%s309 + $0x348] sm:$0xff]
        %v2674 = vld [vmem:[%s309 + $0x350] sm:$0xff]
        %v2675 = vld [vmem:[%s309 + $0x358] sm:$0xff]
        %v2676 = vld [vmem:[%s309 + $0x360] sm:$0xff]
        %v2677 = vld [vmem:[%s309 + $0x368] sm:$0xff]
        %v2678 = vld [vmem:[%s309 + $0x370] sm:$0xff]
        %v2679 = vld [vmem:[%s309 + $0x378] sm:$0xff]
        %v2680 = vld [vmem:[%s309 + $0x380] sm:$0xff]
        %v2681 = vld [vmem:[%s309 + $0x388] sm:$0xff]
        %v2682 = vld [vmem:[%s309 + $0x390] sm:$0xff]
        %v2683 = vld [vmem:[%s309 + $0x398] sm:$0xff]
        %v2684 = vld [vmem:[%s309 + $0x3a0] sm:$0xff]
        %v2685 = vld [vmem:[%s309 + $0x3a8] sm:$0xff]
        %v2686 = vld [vmem:[%s309 + $0x3b0] sm:$0xff]
        %v2687 = vld [vmem:[%s309 + $0x3b8] sm:$0xff]
        %v2688 = vld [vmem:[%s309 + $0x3c0] sm:$0xff]
        %v2689 = vld [vmem:[%s309 + $0x3c8] sm:$0xff]
        %v2690 = vld [vmem:[%s309 + $0x3d0] sm:$0xff]
        %v2691 = vld [vmem:[%s309 + $0x3d8] sm:$0xff]
        %v2692 = vld [vmem:[%s309 + $0x3e0] sm:$0xff]
        %v2693 = vld [vmem:[%s309 + $0x3e8] sm:$0xff]
        %v2694 = vld [vmem:[%s309 + $0x3f0] sm:$0xff]
        %v2695 = vld [vmem:[%s309 + $0x3f8] sm:$0xff]
        %v2696 = vld [vmem:[%s309 + $0x400] sm:$0xff]
        %v2697 = vld [vmem:[%s309 + $0x408] sm:$0xff]
        %v2698 = vld [vmem:[%s309 + $0x410] sm:$0xff]
        %v2699 = vld [vmem:[%s309 + $0x418] sm:$0xff]
        %v2700 = vld [vmem:[%s309 + $0x420] sm:$0xff]
        %v2701 = vld [vmem:[%s309 + $0x428] sm:$0xff]
        %v2702 = vld [vmem:[%s309 + $0x430] sm:$0xff]
        %v2703 = vld [vmem:[%s309 + $0x438] sm:$0xff]
        %v2704 = vld [vmem:[%s309 + $0x440] sm:$0xff]
        %v2705 = vld [vmem:[%s309 + $0x448] sm:$0xff]
        %v2706 = vld [vmem:[%s309 + $0x450] sm:$0xff]
        %v2707 = vld [vmem:[%s309 + $0x458] sm:$0xff]
        %v2708 = vld [vmem:[%s309 + $0x460] sm:$0xff]
        %v2709 = vld [vmem:[%s309 + $0x468] sm:$0xff]
        %v2710 = vld [vmem:[%s309 + $0x470] sm:$0xff]
        %v2711 = vld [vmem:[%s309 + $0x478] sm:$0xff]
        %v2712 = vld [vmem:[%s309 + $0x480] sm:$0xff]
        %v2713 = vld [vmem:[%s309 + $0x488] sm:$0xff]
        %v2714 = vld [vmem:[%s309 + $0x490] sm:$0xff]
        %v2715 = vld [vmem:[%s309 + $0x498] sm:$0xff]
        %v2716 = vld [vmem:[%s309 + $0x4a0] sm:$0xff]
        %v2717 = vld [vmem:[%s309 + $0x4a8] sm:$0xff]
        %v2718 = vld [vmem:[%s309 + $0x4b0] sm:$0xff]
        %v2719 = vld [vmem:[%s309 + $0x4b8] sm:$0xff]
        %v2720 = vld [vmem:[%s309 + $0x4c0] sm:$0xff]
        %v2721 = vld [vmem:[%s309 + $0x4c8] sm:$0xff]
        %v2722 = vld [vmem:[%s309 + $0x4d0] sm:$0xff]
        %v2723 = vld [vmem:[%s309 + $0x4d8] sm:$0xff]
        %v2724 = vld [vmem:[%s309 + $0x4e0] sm:$0xff]
        %v2725 = vld [vmem:[%s309 + $0x4e8] sm:$0xff]
        %v2726 = vld [vmem:[%s309 + $0x4f0] sm:$0xff]
        %v2727 = vld [vmem:[%s309 + $0x4f8] sm:$0xff]
        %v2728 = vld [vmem:[%s309 + $0x500] sm:$0xff]
        %v2729 = vld [vmem:[%s309 + $0x508] sm:$0xff]
        %v2730 = vld [vmem:[%s309 + $0x510] sm:$0xff]
        %v2731 = vld [vmem:[%s309 + $0x518] sm:$0xff]
        %v2732 = vld [vmem:[%s309 + $0x520] sm:$0xff]
        %v2733 = vld [vmem:[%s309 + $0x528] sm:$0xff]
        %v2734 = vld [vmem:[%s309 + $0x530] sm:$0xff]
        %v2735 = vld [vmem:[%s309 + $0x538] sm:$0xff]
        %v2736 = vld [vmem:[%s309 + $0x540] sm:$0xff]
        %v2737 = vld [vmem:[%s309 + $0x548] sm:$0xff]
        %v2738 = vld [vmem:[%s309 + $0x550] sm:$0xff]
        %v2739 = vld [vmem:[%s309 + $0x558] sm:$0xff]
        %v2740 = vld [vmem:[%s309 + $0x560] sm:$0xff]
        %v2741 = vld [vmem:[%s309 + $0x568] sm:$0xff]
        %v2742 = vld [vmem:[%s309 + $0x570] sm:$0xff]
        %v2743 = vld [vmem:[%s309 + $0x578] sm:$0xff]
        %v2744 = vld [vmem:[%s309 + $0x580] sm:$0xff]
        %v2745 = vld [vmem:[%s309 + $0x588] sm:$0xff]
        %v2746 = vld [vmem:[%s309 + $0x590] sm:$0xff]
        %v2747 = vld [vmem:[%s309 + $0x598] sm:$0xff]
        %v2748 = vld [vmem:[%s309 + $0x5a0] sm:$0xff]
        %v2749 = vld [vmem:[%s309 + $0x5a8] sm:$0xff]
        %v2750 = vld [vmem:[%s309 + $0x5b0] sm:$0xff]
        %v2751 = vld [vmem:[%s309 + $0x5b8] sm:$0xff]
        %v2752 = vld [vmem:[%s309 + $0x5c0] sm:$0xff]
        %v2753 = vld [vmem:[%s309 + $0x5c8] sm:$0xff]
        %v2754 = vld [vmem:[%s309 + $0x5d0] sm:$0xff]
        %v2755 = vld [vmem:[%s309 + $0x5d8] sm:$0xff]
        %v2756 = vld [vmem:[%s309 + $0x5e0] sm:$0xff]
        %v2757 = vld [vmem:[%s309 + $0x5e8] sm:$0xff]
        %v2758 = vld [vmem:[%s309 + $0x5f0] sm:$0xff]
        %v2759 = vld [vmem:[%s309 + $0x5f8] sm:$0xff]
        %v2760 = vld [vmem:[%s309 + $0x600] sm:$0xff]
        %v2761 = vld [vmem:[%s309 + $0x608] sm:$0xff]
        %v2762 = vld [vmem:[%s309 + $0x610] sm:$0xff]
        %v2763 = vld [vmem:[%s309 + $0x618] sm:$0xff]
        %v2764 = vld [vmem:[%s309 + $0x620] sm:$0xff]
        %v2765 = vld [vmem:[%s309 + $0x628] sm:$0xff]
        %v2766 = vld [vmem:[%s309 + $0x630] sm:$0xff]
        %v2767 = vld [vmem:[%s309 + $0x638] sm:$0xff]
        %v2768 = vld [vmem:[%s309 + $0x640] sm:$0xff]
        %v2769 = vld [vmem:[%s309 + $0x648] sm:$0xff]
        %v2770 = vld [vmem:[%s309 + $0x650] sm:$0xff]
        %v2771 = vld [vmem:[%s309 + $0x658] sm:$0xff]
        %v2772 = vld [vmem:[%s309 + $0x660] sm:$0xff]
        %v2773 = vld [vmem:[%s309 + $0x668] sm:$0xff]
        %v2774 = vld [vmem:[%s309 + $0x670] sm:$0xff]
        %v2775 = vld [vmem:[%s309 + $0x678] sm:$0xff]
        %v2776 = vld [vmem:[%s309 + $0x680] sm:$0xff]
        %v2777 = vld [vmem:[%s309 + $0x688] sm:$0xff]
        %v2778 = vld [vmem:[%s309 + $0x690] sm:$0xff]
        %v2779 = vld [vmem:[%s309 + $0x698] sm:$0xff]
        %v2780 = vld [vmem:[%s309 + $0x6a0] sm:$0xff]
        %v2781 = vld [vmem:[%s309 + $0x6a8] sm:$0xff]
        %v2782 = vld [vmem:[%s309 + $0x6b0] sm:$0xff]
        %v2783 = vld [vmem:[%s309 + $0x6b8] sm:$0xff]
        %v2784 = vld [vmem:[%s309 + $0x6c0] sm:$0xff]
        %v2785 = vld [vmem:[%s309 + $0x6c8] sm:$0xff]
        %v2786 = vld [vmem:[%s309 + $0x6d0] sm:$0xff]
        %v2787 = vld [vmem:[%s309 + $0x6d8] sm:$0xff]
        %v2788 = vld [vmem:[%s309 + $0x6e0] sm:$0xff]
        %v2789 = vld [vmem:[%s309 + $0x6e8] sm:$0xff]
        %v2790 = vld [vmem:[%s309 + $0x6f0] sm:$0xff]
        %v2791 = vld [vmem:[%s309 + $0x6f8] sm:$0xff]
        %v2792 = vld [vmem:[%s309 + $0x700] sm:$0xff]
        %v2793 = vld [vmem:[%s309 + $0x708] sm:$0xff]
        %v2794 = vld [vmem:[%s309 + $0x710] sm:$0xff]
        %v2795 = vld [vmem:[%s309 + $0x718] sm:$0xff]
        %v2796 = vld [vmem:[%s309 + $0x720] sm:$0xff]
        %v2797 = vld [vmem:[%s309 + $0x728] sm:$0xff]
        %v2798 = vld [vmem:[%s309 + $0x730] sm:$0xff]
        %v2799 = vld [vmem:[%s309 + $0x738] sm:$0xff]
        %v2800 = vld [vmem:[%s309 + $0x740] sm:$0xff]
        %v2801 = vld [vmem:[%s309 + $0x748] sm:$0xff]
        %v2802 = vld [vmem:[%s309 + $0x750] sm:$0xff]
        %v2803 = vld [vmem:[%s309 + $0x758] sm:$0xff]
        %v2804 = vld [vmem:[%s309 + $0x760] sm:$0xff]
        %v2805 = vld [vmem:[%s309 + $0x768] sm:$0xff]
        %v2806 = vld [vmem:[%s309 + $0x770] sm:$0xff]
        %v2807 = vld [vmem:[%s309 + $0x778] sm:$0xff]
        %v2808 = vld [vmem:[%s309 + $0x780] sm:$0xff]
        %v2809 = vld [vmem:[%s309 + $0x788] sm:$0xff]
        %v2810 = vld [vmem:[%s309 + $0x790] sm:$0xff]
        %v2811 = vld [vmem:[%s309 + $0x798] sm:$0xff]
        %v2812 = vld [vmem:[%s309 + $0x7a0] sm:$0xff]
        %v2813 = vld [vmem:[%s309 + $0x7a8] sm:$0xff]
        %v2814 = vld [vmem:[%s309 + $0x7b0] sm:$0xff]
        %v2815 = vld [vmem:[%s309 + $0x7b8] sm:$0xff]
        %v2816 = vld [vmem:[%s309 + $0x7c0] sm:$0xff]
        %v2817 = vld [vmem:[%s309 + $0x7c8] sm:$0xff]
        %v2818 = vld [vmem:[%s309 + $0x7d0] sm:$0xff]
        %v2819 = vld [vmem:[%s309 + $0x7d8] sm:$0xff]
        %v2820 = vld [vmem:[%s309 + $0x7e0] sm:$0xff]
        %v2821 = vld [vmem:[%s309 + $0x7e8] sm:$0xff]
        %v2822 = vld [vmem:[%s309 + $0x7f0] sm:$0xff]
        %v2823 = vld [vmem:[%s309 + $0x7f8] sm:$0xff]
        %v2824 = vld [vmem:[%s309 + $0x800] sm:$0xff]
        %v2825 = vld [vmem:[%s309 + $0x808] sm:$0xff]
        %v2826 = vld [vmem:[%s309 + $0x810] sm:$0xff]
        %v2827 = vld [vmem:[%s309 + $0x818] sm:$0xff]
        %v2828 = vld [vmem:[%s309 + $0x820] sm:$0xff]
        %v2829 = vld [vmem:[%s309 + $0x828] sm:$0xff]
        %v2830 = vld [vmem:[%s309 + $0x830] sm:$0xff]
        %v2831 = vld [vmem:[%s309 + $0x838] sm:$0xff]
        %v2832 = vld [vmem:[%s309 + $0x840] sm:$0xff]
        %v2833 = vld [vmem:[%s309 + $0x848] sm:$0xff]
        %v2834 = vld [vmem:[%s309 + $0x850] sm:$0xff]
        %v2835 = vld [vmem:[%s309 + $0x858] sm:$0xff]
        %v2836 = vld [vmem:[%s309 + $0x860] sm:$0xff]
        %v2837 = vld [vmem:[%s309 + $0x868] sm:$0xff]
        %v2838 = vld [vmem:[%s309 + $0x870] sm:$0xff]
        %v2839 = vld [vmem:[%s309 + $0x878] sm:$0xff]
        %v2840 = vld [vmem:[%s309 + $0x880] sm:$0xff]
        %v2841 = vld [vmem:[%s309 + $0x888] sm:$0xff]
        %v2842 = vld [vmem:[%s309 + $0x890] sm:$0xff]
        %v2843 = vld [vmem:[%s309 + $0x898] sm:$0xff]
        %v2844 = vld [vmem:[%s309 + $0x8a0] sm:$0xff]
        %v2845 = vld [vmem:[%s309 + $0x8a8] sm:$0xff]
        %v2846 = vld [vmem:[%s309 + $0x8b0] sm:$0xff]
        %v2847 = vld [vmem:[%s309 + $0x8b8] sm:$0xff]
        %v2848 = vld [vmem:[%s309 + $0x8c0] sm:$0xff]
        %v2849 = vld [vmem:[%s309 + $0x8c8] sm:$0xff]
        %v2850 = vld [vmem:[%s309 + $0x8d0] sm:$0xff]
        %v2851 = vld [vmem:[%s309 + $0x8d8] sm:$0xff]
        %v2852 = vld [vmem:[%s309 + $0x8e0] sm:$0xff]
        %v2853 = vld [vmem:[%s309 + $0x8e8] sm:$0xff]
        %v2854 = vld [vmem:[%s309 + $0x8f0] sm:$0xff]
        %v2855 = vld [vmem:[%s309 + $0x8f8] sm:$0xff]
        %v2856 = vld [vmem:[%s309 + $0x900] sm:$0xff]
        %v2857 = vld [vmem:[%s309 + $0x908] sm:$0xff]
        %v2858 = vld [vmem:[%s309 + $0x910] sm:$0xff]
        %v2859 = vld [vmem:[%s309 + $0x918] sm:$0xff]
        %v2860 = vld [vmem:[%s309 + $0x920] sm:$0xff]
        %v2861 = vld [vmem:[%s309 + $0x928] sm:$0xff]
        %v2862 = vld [vmem:[%s309 + $0x930] sm:$0xff]
        %v2863 = vld [vmem:[%s309 + $0x938] sm:$0xff]
        %v2864 = vld [vmem:[%s309 + $0x940] sm:$0xff]
        %v2865 = vld [vmem:[%s309 + $0x948] sm:$0xff]
        %v2866 = vld [vmem:[%s309 + $0x950] sm:$0xff]
        %v2867 = vld [vmem:[%s309 + $0x958] sm:$0xff]
        %v2868 = vld [vmem:[%s309 + $0x960] sm:$0xff]
        %v2869 = vld [vmem:[%s309 + $0x968] sm:$0xff]
        %v2870 = vld [vmem:[%s309 + $0x970] sm:$0xff]
        %v2871 = vld [vmem:[%s309 + $0x978] sm:$0xff]
        %v2872 = vld [vmem:[%s309 + $0x980] sm:$0xff]
        %v2873 = vld [vmem:[%s309 + $0x988] sm:$0xff]
        %v2874 = vld [vmem:[%s309 + $0x990] sm:$0xff]
        %v2875 = vld [vmem:[%s309 + $0x998] sm:$0xff]
        %v2876 = vld [vmem:[%s309 + $0x9a0] sm:$0xff]
        %v2877 = vld [vmem:[%s309 + $0x9a8] sm:$0xff]
        %v2878 = vld [vmem:[%s309 + $0x9b0] sm:$0xff]
        %v2879 = vld [vmem:[%s309 + $0x9b8] sm:$0xff]
        %v2880 = vld [vmem:[%s309 + $0x9c0] sm:$0xff]
        %v2881 = vld [vmem:[%s309 + $0x9c8] sm:$0xff]
        %v2882 = vld [vmem:[%s309 + $0x9d0] sm:$0xff]
        %v2883 = vld [vmem:[%s309 + $0x9d8] sm:$0xff]
        %v2884 = vld [vmem:[%s309 + $0x9e0] sm:$0xff]
        %v2885 = vld [vmem:[%s309 + $0x9e8] sm:$0xff]
        %v2886 = vld [vmem:[%s309 + $0x9f0] sm:$0xff]
        %v2887 = vld [vmem:[%s309 + $0x9f8] sm:$0xff]
        %v2888 = vld [vmem:[%s309 + $0xa00] sm:$0xff]
        %v2889 = vld [vmem:[%s309 + $0xa08] sm:$0xff]
        %v2890 = vld [vmem:[%s309 + $0xa10] sm:$0xff]
        %v2891 = vld [vmem:[%s309 + $0xa18] sm:$0xff]
        %v2892 = vld [vmem:[%s309 + $0xa20] sm:$0xff]
        %v2893 = vld [vmem:[%s309 + $0xa28] sm:$0xff]
        %v2894 = vld [vmem:[%s309 + $0xa30] sm:$0xff]
        %v2895 = vld [vmem:[%s309 + $0xa38] sm:$0xff]
        %v2896 = vld [vmem:[%s309 + $0xa40] sm:$0xff]
        %v2897 = vld [vmem:[%s309 + $0xa48] sm:$0xff]
        %v2898 = vld [vmem:[%s309 + $0xa50] sm:$0xff]
        %v2899 = vld [vmem:[%s309 + $0xa58] sm:$0xff]
        %v2900 = vld [vmem:[%s309 + $0xa60] sm:$0xff]
        %v2901 = vld [vmem:[%s309 + $0xa68] sm:$0xff]
        %v2902 = vld [vmem:[%s309 + $0xa70] sm:$0xff]
        %v2903 = vld [vmem:[%s309 + $0xa78] sm:$0xff]
        %v2904 = vld [vmem:[%s309 + $0xa80] sm:$0xff]
        %v2905 = vld [vmem:[%s309 + $0xa88] sm:$0xff]
        %v2906 = vld [vmem:[%s309 + $0xa90] sm:$0xff]
        %v2907 = vld [vmem:[%s309 + $0xa98] sm:$0xff]
        %v2908 = vld [vmem:[%s309 + $0xaa0] sm:$0xff]
        %v2909 = vld [vmem:[%s309 + $0xaa8] sm:$0xff]
        %v2910 = vld [vmem:[%s309 + $0xab0] sm:$0xff]
        %v2911 = vld [vmem:[%s309 + $0xab8] sm:$0xff]
        %v2912 = vld [vmem:[%s309 + $0xac0] sm:$0xff]
        %v2913 = vld [vmem:[%s309 + $0xac8] sm:$0xff]
        %v2914 = vld [vmem:[%s309 + $0xad0] sm:$0xff]
        %v2915 = vld [vmem:[%s309 + $0xad8] sm:$0xff]
        %v2916 = vld [vmem:[%s309 + $0xae0] sm:$0xff]
        %v2917 = vld [vmem:[%s309 + $0xae8] sm:$0xff]
        %v2918 = vld [vmem:[%s309 + $0xaf0] sm:$0xff]
        %v2919 = vld [vmem:[%s309 + $0xaf8] sm:$0xff]
        %v2920 = vld [vmem:[%s309 + $0xb00] sm:$0xff]
        %v2921 = vld [vmem:[%s309 + $0xb08] sm:$0xff]
        %v2922 = vld [vmem:[%s309 + $0xb10] sm:$0xff]
        %v2923 = vld [vmem:[%s309 + $0xb18] sm:$0xff]
        %v2924 = vld [vmem:[%s309 + $0xb20] sm:$0xff]
        %v2925 = vld [vmem:[%s309 + $0xb28] sm:$0xff]
        %v2926 = vld [vmem:[%s309 + $0xb30] sm:$0xff]
        %v2927 = vld [vmem:[%s309 + $0xb38] sm:$0xff]
        %v2928 = vld [vmem:[%s309 + $0xb40] sm:$0xff]
        %v2929 = vld [vmem:[%s309 + $0xb48] sm:$0xff]
        %v2930 = vld [vmem:[%s309 + $0xb50] sm:$0xff]
        %v2931 = vld [vmem:[%s309 + $0xb58] sm:$0xff]
        %v2932 = vld [vmem:[%s309 + $0xb60] sm:$0xff]
        %v2933 = vld [vmem:[%s309 + $0xb68] sm:$0xff]
        %v2934 = vld [vmem:[%s309 + $0xb70] sm:$0xff]
        %v2935 = vld [vmem:[%s309 + $0xb78] sm:$0xff]
        %v2936 = vld [vmem:[%s309 + $0xb80] sm:$0xff]
        %v2937 = vld [vmem:[%s309 + $0xb88] sm:$0xff]
        %v2938 = vld [vmem:[%s309 + $0xb90] sm:$0xff]
        %v2939 = vld [vmem:[%s309 + $0xb98] sm:$0xff]
        %v2940 = vld [vmem:[%s309 + $0xba0] sm:$0xff]
        %v2941 = vld [vmem:[%s309 + $0xba8] sm:$0xff]
        %v2942 = vld [vmem:[%s309 + $0xbb0] sm:$0xff]
        %v2943 = vld [vmem:[%s309 + $0xbb8] sm:$0xff]
        %v2944 = vld [vmem:[%s309 + $0xbc0] sm:$0xff]
        %v2945 = vld [vmem:[%s309 + $0xbc8] sm:$0xff]
        %v2946 = vld [vmem:[%s309 + $0xbd0] sm:$0xff]
        %v2947 = vld [vmem:[%s309 + $0xbd8] sm:$0xff]
        %v2948 = vld [vmem:[%s309 + $0xbe0] sm:$0xff]
        %v2949 = vld [vmem:[%s309 + $0xbe8] sm:$0xff]
        %v2950 = vld [vmem:[%s309 + $0xbf0] sm:$0xff]
        %v2951 = vld [vmem:[%s309 + $0xbf8] sm:$0xff]
        %v2952 = vld [vmem:[%s309 + $0xc00] sm:$0xff]
        %v2953 = vld [vmem:[%s309 + $0xc08] sm:$0xff]
        %v2954 = vld [vmem:[%s309 + $0xc10] sm:$0xff]
        %v2955 = vld [vmem:[%s309 + $0xc18] sm:$0xff]
        %v2956 = vld [vmem:[%s309 + $0xc20] sm:$0xff]
        %v2957 = vld [vmem:[%s309 + $0xc28] sm:$0xff]
        %v2958 = vld [vmem:[%s309 + $0xc30] sm:$0xff]
        %v2959 = vld [vmem:[%s309 + $0xc38] sm:$0xff]
        %v2960 = vld [vmem:[%s309 + $0xc40] sm:$0xff]
        %v2961 = vld [vmem:[%s309 + $0xc48] sm:$0xff]
        %v2962 = vld [vmem:[%s309 + $0xc50] sm:$0xff]
        %v2963 = vld [vmem:[%s309 + $0xc58] sm:$0xff]
        %v2964 = vld [vmem:[%s309 + $0xc60] sm:$0xff]
        %v2965 = vld [vmem:[%s309 + $0xc68] sm:$0xff]
        %v2966 = vld [vmem:[%s309 + $0xc70] sm:$0xff]
        %v2967 = vld [vmem:[%s309 + $0xc78] sm:$0xff]
        %v2968 = vld [vmem:[%s309 + $0xc80] sm:$0xff]
        %v2969 = vld [vmem:[%s309 + $0xc88] sm:$0xff]
        %v2970 = vld [vmem:[%s309 + $0xc90] sm:$0xff]
        %v2971 = vld [vmem:[%s309 + $0xc98] sm:$0xff]
        %v2972 = vld [vmem:[%s309 + $0xca0] sm:$0xff]
        %v2973 = vld [vmem:[%s309 + $0xca8] sm:$0xff]
        %v2974 = vld [vmem:[%s309 + $0xcb0] sm:$0xff]
        %v2975 = vld [vmem:[%s309 + $0xcb8] sm:$0xff]
        %v2976 = vld [vmem:[%s309 + $0xcc0] sm:$0xff]
        %v2977 = vld [vmem:[%s309 + $0xcc8] sm:$0xff]
        %v2978 = vld [vmem:[%s309 + $0xcd0] sm:$0xff]
        %v2979 = vld [vmem:[%s309 + $0xcd8] sm:$0xff]
        %v2980 = vld [vmem:[%s309 + $0xce0] sm:$0xff]
        %v2981 = vld [vmem:[%s309 + $0xce8] sm:$0xff]
        %v2982 = vld [vmem:[%s309 + $0xcf0] sm:$0xff]
        %v2983 = vld [vmem:[%s309 + $0xcf8] sm:$0xff]
        %v2984 = vld [vmem:[%s309 + $0xd00] sm:$0xff]
        %v2985 = vld [vmem:[%s309 + $0xd08] sm:$0xff]
        %v2986 = vld [vmem:[%s309 + $0xd10] sm:$0xff]
        %v2987 = vld [vmem:[%s309 + $0xd18] sm:$0xff]
        %v2988 = vld [vmem:[%s309 + $0xd20] sm:$0xff]
        %v2989 = vld [vmem:[%s309 + $0xd28] sm:$0xff]
        %v2990 = vld [vmem:[%s309 + $0xd30] sm:$0xff]
        %v2991 = vld [vmem:[%s309 + $0xd38] sm:$0xff]
        %v2992 = vld [vmem:[%s309 + $0xd40] sm:$0xff]
        %v2993 = vld [vmem:[%s309 + $0xd48] sm:$0xff]
        %v2994 = vld [vmem:[%s309 + $0xd50] sm:$0xff]
        %v2995 = vld [vmem:[%s309 + $0xd58] sm:$0xff]
        %v2996 = vld [vmem:[%s309 + $0xd60] sm:$0xff]
        %v2997 = vld [vmem:[%s309 + $0xd68] sm:$0xff]
        %v2998 = vld [vmem:[%s309 + $0xd70] sm:$0xff]
        %v2999 = vld [vmem:[%s309 + $0xd78] sm:$0xff]
        %v3000 = vld [vmem:[%s309 + $0xd80] sm:$0xff]
        %v3001 = vld [vmem:[%s309 + $0xd88] sm:$0xff]
        %v3002 = vld [vmem:[%s309 + $0xd90] sm:$0xff]
        %v3003 = vld [vmem:[%s309 + $0xd98] sm:$0xff]
        %v3004 = vld [vmem:[%s309 + $0xda0] sm:$0xff]
        %v3005 = vld [vmem:[%s309 + $0xda8] sm:$0xff]
        %v3006 = vld [vmem:[%s309 + $0xdb0] sm:$0xff]
        %v3007 = vld [vmem:[%s309 + $0xdb8] sm:$0xff]
        %v3008 = vld [vmem:[%s309 + $0xdc0] sm:$0xff]
        %v3009 = vld [vmem:[%s309 + $0xdc8] sm:$0xff]
        %v3010 = vld [vmem:[%s309 + $0xdd0] sm:$0xff]
        %v3011 = vld [vmem:[%s309 + $0xdd8] sm:$0xff]
        %v3012 = vld [vmem:[%s309 + $0xde0] sm:$0xff]
        %v3013 = vld [vmem:[%s309 + $0xde8] sm:$0xff]
        %v3014 = vld [vmem:[%s309 + $0xdf0] sm:$0xff]
        %v3015 = vld [vmem:[%s309 + $0xdf8] sm:$0xff]
        %v3016 = vld [vmem:[%s309 + $0xe00] sm:$0xff]
        %v3017 = vld [vmem:[%s309 + $0xe08] sm:$0xff]
        %v3018 = vld [vmem:[%s309 + $0xe10] sm:$0xff]
        %v3019 = vld [vmem:[%s309 + $0xe18] sm:$0xff]
        %v3020 = vld [vmem:[%s309 + $0xe20] sm:$0xff]
        %v3021 = vld [vmem:[%s309 + $0xe28] sm:$0xff]
        %v3022 = vld [vmem:[%s309 + $0xe30] sm:$0xff]
        %v3023 = vld [vmem:[%s309 + $0xe38] sm:$0xff]
        %v3024 = vld [vmem:[%s309 + $0xe40] sm:$0xff]
        %v3025 = vld [vmem:[%s309 + $0xe48] sm:$0xff]
        %v3026 = vld [vmem:[%s309 + $0xe50] sm:$0xff]
        %v3027 = vld [vmem:[%s309 + $0xe58] sm:$0xff]
        %v3028 = vld [vmem:[%s309 + $0xe60] sm:$0xff]
        %v3029 = vld [vmem:[%s309 + $0xe68] sm:$0xff]
        %v3030 = vld [vmem:[%s309 + $0xe70] sm:$0xff]
        %v3031 = vld [vmem:[%s309 + $0xe78] sm:$0xff]
        %v3032 = vld [vmem:[%s309 + $0xe80] sm:$0xff]
        %v3033 = vld [vmem:[%s309 + $0xe88] sm:$0xff]
        %v3034 = vld [vmem:[%s309 + $0xe90] sm:$0xff]
        %v3035 = vld [vmem:[%s309 + $0xe98] sm:$0xff]
        %v3036 = vld [vmem:[%s309 + $0xea0] sm:$0xff]
        %v3037 = vld [vmem:[%s309 + $0xea8] sm:$0xff]
        %v3038 = vld [vmem:[%s309 + $0xeb0] sm:$0xff]
        %v3039 = vld [vmem:[%s309 + $0xeb8] sm:$0xff]
        %v3040 = vld [vmem:[%s309 + $0xec0] sm:$0xff]
        %v3041 = vld [vmem:[%s309 + $0xec8] sm:$0xff]
        %v3042 = vld [vmem:[%s309 + $0xed0] sm:$0xff]
        %v3043 = vld [vmem:[%s309 + $0xed8] sm:$0xff]
        %v3044 = vld [vmem:[%s309 + $0xee0] sm:$0xff]
        %v3045 = vld [vmem:[%s309 + $0xee8] sm:$0xff]
        %v3046 = vld [vmem:[%s309 + $0xef0] sm:$0xff]
        %v3047 = vld [vmem:[%s309 + $0xef8] sm:$0xff]
        %v3048 = vld [vmem:[%s309 + $0xf00] sm:$0xff]
        %v3049 = vld [vmem:[%s309 + $0xf08] sm:$0xff]
        %v3050 = vld [vmem:[%s309 + $0xf10] sm:$0xff]
        %v3051 = vld [vmem:[%s309 + $0xf18] sm:$0xff]
        %v3052 = vld [vmem:[%s309 + $0xf20] sm:$0xff]
        %v3053 = vld [vmem:[%s309 + $0xf28] sm:$0xff]
        %v3054 = vld [vmem:[%s309 + $0xf30] sm:$0xff]
        %v3055 = vld [vmem:[%s309 + $0xf38] sm:$0xff]
        %v3056 = vld [vmem:[%s309 + $0xf40] sm:$0xff]
        %v3057 = vld [vmem:[%s309 + $0xf48] sm:$0xff]
        %v3058 = vld [vmem:[%s309 + $0xf50] sm:$0xff]
        %v3059 = vld [vmem:[%s309 + $0xf58] sm:$0xff]
        %v3060 = vld [vmem:[%s309 + $0xf60] sm:$0xff]
        %v3061 = vld [vmem:[%s309 + $0xf68] sm:$0xff]
        %v3062 = vld [vmem:[%s309 + $0xf70] sm:$0xff]
        %v3063 = vld [vmem:[%s309 + $0xf78] sm:$0xff]
        %v3064 = vld [vmem:[%s309 + $0xf80] sm:$0xff]
        %v3065 = vld [vmem:[%s309 + $0xf88] sm:$0xff]
        %v3066 = vld [vmem:[%s309 + $0xf90] sm:$0xff]
        %v3067 = vld [vmem:[%s309 + $0xf98] sm:$0xff]
        %v3068 = vld [vmem:[%s309 + $0xfa0] sm:$0xff]
        %v3069 = vld [vmem:[%s309 + $0xfa8] sm:$0xff]
        %v3070 = vld [vmem:[%s309 + $0xfb0] sm:$0xff]
        %v3071 = vld [vmem:[%s309 + $0xfb8] sm:$0xff]
        %v3072 = vld [vmem:[%s309 + $0xfc0] sm:$0xff]
        %v3073 = vld [vmem:[%s309 + $0xfc8] sm:$0xff]
        %v3074 = vld [vmem:[%s309 + $0xfd0] sm:$0xff]
        %v3075 = vld [vmem:[%s309 + $0xfd8] sm:$0xff]
        %v3076 = vld [vmem:[%s309 + $0xfe0] sm:$0xff]
        %v3077 = vld [vmem:[%s309 + $0xfe8] sm:$0xff]
        %v3078 = vld [vmem:[%s309 + $0xff0] sm:$0xff]
        %v3079 = vld [vmem:[%s309 + $0xff8] sm:$0xff]
        %v3080 = vld [vmem:[%s318] sm:$0xff]
        %v3082 = vlaneseq
        %v3083 = vshrl.u32 %v3082, 7
        %v3084 = vsub.s32 0, %v3083
        %v3085 = vrot.slane %v3080, %v3084
        %v3086 = vlaneseq
        %v3087 = vshrl.u32 %v3086, 7
        %v3088 = vsub.s32 1, %v3087
        %v3089 = vrot.slane %v3080, %v3088
        %v3090 = vlaneseq
        %v3091 = vshrl.u32 %v3090, 7
        %v3092 = vsub.s32 2, %v3091
        %v3093 = vrot.slane %v3080, %v3092
        %v3094 = vlaneseq
        %v3095 = vshrl.u32 %v3094, 7
        %v3096 = vsub.s32 3, %v3095
        %v3097 = vrot.slane %v3080, %v3096
        %v3098 = vlaneseq
        %v3099 = vshrl.u32 %v3098, 7
        %v3100 = vsub.s32 4, %v3099
        %v3101 = vrot.slane %v3080, %v3100
        %v3102 = vlaneseq
        %v3103 = vshrl.u32 %v3102, 7
        %v3104 = vsub.s32 5, %v3103
        %v3105 = vrot.slane %v3080, %v3104
        %v3106 = vlaneseq
        %v3107 = vshrl.u32 %v3106, 7
        %v3108 = vsub.s32 6, %v3107
        %v3109 = vrot.slane %v3080, %v3108
        %v3110 = vlaneseq
        %v3111 = vshrl.u32 %v3110, 7
        %v3112 = vsub.s32 7, %v3111
        %v3113 = vrot.slane %v3080, %v3112
        %v3634 = vunpack.c.l.b16 %v2568
        %v3635 = vunpack.c.h.b16 %v2568
        %v3636 = vunpack.c.l.b16 %v2569
        %v3637 = vunpack.c.h.b16 %v2569
        %v3638 = vunpack.c.l.b16 %v2570
        %v3639 = vunpack.c.h.b16 %v2570
        %v3640 = vunpack.c.l.b16 %v2571
        %v3641 = vunpack.c.h.b16 %v2571
        %v3642 = vunpack.c.l.b16 %v2572
        %v3643 = vunpack.c.h.b16 %v2572
        %v3644 = vunpack.c.l.b16 %v2573
        %v3645 = vunpack.c.h.b16 %v2573
        %v3646 = vunpack.c.l.b16 %v2574
        %v3647 = vunpack.c.h.b16 %v2574
        %v3648 = vunpack.c.l.b16 %v2575
        %v3649 = vunpack.c.h.b16 %v2575
        %v3650 = vunpack.c.l.b16 %v2576
        %v3651 = vunpack.c.h.b16 %v2576
        %v3652 = vunpack.c.l.b16 %v2577
        %v3653 = vunpack.c.h.b16 %v2577
        %v3654 = vunpack.c.l.b16 %v2578
        %v3655 = vunpack.c.h.b16 %v2578
        %v3656 = vunpack.c.l.b16 %v2579
        %v3657 = vunpack.c.h.b16 %v2579
        %v3658 = vunpack.c.l.b16 %v2580
        %v3659 = vunpack.c.h.b16 %v2580
        %v3660 = vunpack.c.l.b16 %v2581
        %v3661 = vunpack.c.h.b16 %v2581
        %v3662 = vunpack.c.l.b16 %v2582
        %v3663 = vunpack.c.h.b16 %v2582
        %v3664 = vunpack.c.l.b16 %v2583
        %v3665 = vunpack.c.h.b16 %v2583
        %v3666 = vunpack.c.l.b16 %v2584
        %v3667 = vunpack.c.h.b16 %v2584
        %v3668 = vunpack.c.l.b16 %v2585
        %v3669 = vunpack.c.h.b16 %v2585
        %v3670 = vunpack.c.l.b16 %v2586
        %v3671 = vunpack.c.h.b16 %v2586
        %v3672 = vunpack.c.l.b16 %v2587
        %v3673 = vunpack.c.h.b16 %v2587
        %v3674 = vunpack.c.l.b16 %v2588
        %v3675 = vunpack.c.h.b16 %v2588
        %v3676 = vunpack.c.l.b16 %v2589
        %v3677 = vunpack.c.h.b16 %v2589
        %v3678 = vunpack.c.l.b16 %v2590
        %v3679 = vunpack.c.h.b16 %v2590
        %v3680 = vunpack.c.l.b16 %v2591
        %v3681 = vunpack.c.h.b16 %v2591
        %v3682 = vunpack.c.l.b16 %v2592
        %v3683 = vunpack.c.h.b16 %v2592
        %v3684 = vunpack.c.l.b16 %v2593
        %v3685 = vunpack.c.h.b16 %v2593
        %v3686 = vunpack.c.l.b16 %v2594
        %v3687 = vunpack.c.h.b16 %v2594
        %v3688 = vunpack.c.l.b16 %v2595
        %v3689 = vunpack.c.h.b16 %v2595
        %v3690 = vunpack.c.l.b16 %v2596
        %v3691 = vunpack.c.h.b16 %v2596
        %v3692 = vunpack.c.l.b16 %v2597
        %v3693 = vunpack.c.h.b16 %v2597
        %v3694 = vunpack.c.l.b16 %v2598
        %v3695 = vunpack.c.h.b16 %v2598
        %v3696 = vunpack.c.l.b16 %v2599
        %v3697 = vunpack.c.h.b16 %v2599
        %v3698 = vunpack.c.l.b16 %v2600
        %v3699 = vunpack.c.h.b16 %v2600
        %v3700 = vunpack.c.l.b16 %v2601
        %v3701 = vunpack.c.h.b16 %v2601
        %v3702 = vunpack.c.l.b16 %v2602
        %v3703 = vunpack.c.h.b16 %v2602
        %v3704 = vunpack.c.l.b16 %v2603
        %v3705 = vunpack.c.h.b16 %v2603
        %v3706 = vunpack.c.l.b16 %v2604
        %v3707 = vunpack.c.h.b16 %v2604
        %v3708 = vunpack.c.l.b16 %v2605
        %v3709 = vunpack.c.h.b16 %v2605
        %v3710 = vunpack.c.l.b16 %v2606
        %v3711 = vunpack.c.h.b16 %v2606
        %v3712 = vunpack.c.l.b16 %v2607
        %v3713 = vunpack.c.h.b16 %v2607
        %v3714 = vunpack.c.l.b16 %v2608
        %v3715 = vunpack.c.h.b16 %v2608
        %v3716 = vunpack.c.l.b16 %v2609
        %v3717 = vunpack.c.h.b16 %v2609
        %v3718 = vunpack.c.l.b16 %v2610
        %v3719 = vunpack.c.h.b16 %v2610
        %v3720 = vunpack.c.l.b16 %v2611
        %v3721 = vunpack.c.h.b16 %v2611
        %v3722 = vunpack.c.l.b16 %v2612
        %v3723 = vunpack.c.h.b16 %v2612
        %v3724 = vunpack.c.l.b16 %v2613
        %v3725 = vunpack.c.h.b16 %v2613
        %v3726 = vunpack.c.l.b16 %v2614
        %v3727 = vunpack.c.h.b16 %v2614
        %v3728 = vunpack.c.l.b16 %v2615
        %v3729 = vunpack.c.h.b16 %v2615
        %v3730 = vunpack.c.l.b16 %v2616
        %v3731 = vunpack.c.h.b16 %v2616
        %v3732 = vunpack.c.l.b16 %v2617
        %v3733 = vunpack.c.h.b16 %v2617
        %v3734 = vunpack.c.l.b16 %v2618
        %v3735 = vunpack.c.h.b16 %v2618
        %v3736 = vunpack.c.l.b16 %v2619
        %v3737 = vunpack.c.h.b16 %v2619
        %v3738 = vunpack.c.l.b16 %v2620
        %v3739 = vunpack.c.h.b16 %v2620
        %v3740 = vunpack.c.l.b16 %v2621
        %v3741 = vunpack.c.h.b16 %v2621
        %v3742 = vunpack.c.l.b16 %v2622
        %v3743 = vunpack.c.h.b16 %v2622
        %v3744 = vunpack.c.l.b16 %v2623
        %v3745 = vunpack.c.h.b16 %v2623
        %v3746 = vunpack.c.l.b16 %v2624
        %v3747 = vunpack.c.h.b16 %v2624
        %v3748 = vunpack.c.l.b16 %v2625
        %v3749 = vunpack.c.h.b16 %v2625
        %v3750 = vunpack.c.l.b16 %v2626
        %v3751 = vunpack.c.h.b16 %v2626
        %v3752 = vunpack.c.l.b16 %v2627
        %v3753 = vunpack.c.h.b16 %v2627
        %v3754 = vunpack.c.l.b16 %v2628
        %v3755 = vunpack.c.h.b16 %v2628
        %v3756 = vunpack.c.l.b16 %v2629
        %v3757 = vunpack.c.h.b16 %v2629
        %v3758 = vunpack.c.l.b16 %v2630
        %v3759 = vunpack.c.h.b16 %v2630
        %v3760 = vunpack.c.l.b16 %v2631
        %v3761 = vunpack.c.h.b16 %v2631
        %v3762 = vunpack.c.l.b16 %v2632
        %v3763 = vunpack.c.h.b16 %v2632
        %v3764 = vunpack.c.l.b16 %v2633
        %v3765 = vunpack.c.h.b16 %v2633
        %v3766 = vunpack.c.l.b16 %v2634
        %v3767 = vunpack.c.h.b16 %v2634
        %v3768 = vunpack.c.l.b16 %v2635
        %v3769 = vunpack.c.h.b16 %v2635
        %v3770 = vunpack.c.l.b16 %v2636
        %v3771 = vunpack.c.h.b16 %v2636
        %v3772 = vunpack.c.l.b16 %v2637
        %v3773 = vunpack.c.h.b16 %v2637
        %v3774 = vunpack.c.l.b16 %v2638
        %v3775 = vunpack.c.h.b16 %v2638
        %v3776 = vunpack.c.l.b16 %v2639
        %v3777 = vunpack.c.h.b16 %v2639
        %v3778 = vunpack.c.l.b16 %v2640
        %v3779 = vunpack.c.h.b16 %v2640
        %v3780 = vunpack.c.l.b16 %v2641
        %v3781 = vunpack.c.h.b16 %v2641
        %v3782 = vunpack.c.l.b16 %v2642
        %v3783 = vunpack.c.h.b16 %v2642
        %v3784 = vunpack.c.l.b16 %v2643
        %v3785 = vunpack.c.h.b16 %v2643
        %v3786 = vunpack.c.l.b16 %v2644
        %v3787 = vunpack.c.h.b16 %v2644
        %v3788 = vunpack.c.l.b16 %v2645
        %v3789 = vunpack.c.h.b16 %v2645
        %v3790 = vunpack.c.l.b16 %v2646
        %v3791 = vunpack.c.h.b16 %v2646
        %v3792 = vunpack.c.l.b16 %v2647
        %v3793 = vunpack.c.h.b16 %v2647
        %v3794 = vunpack.c.l.b16 %v2648
        %v3795 = vunpack.c.h.b16 %v2648
        %v3796 = vunpack.c.l.b16 %v2649
        %v3797 = vunpack.c.h.b16 %v2649
        %v3798 = vunpack.c.l.b16 %v2650
        %v3799 = vunpack.c.h.b16 %v2650
        %v3800 = vunpack.c.l.b16 %v2651
        %v3801 = vunpack.c.h.b16 %v2651
        %v3802 = vunpack.c.l.b16 %v2652
        %v3803 = vunpack.c.h.b16 %v2652
        %v3804 = vunpack.c.l.b16 %v2653
        %v3805 = vunpack.c.h.b16 %v2653
        %v3806 = vunpack.c.l.b16 %v2654
        %v3807 = vunpack.c.h.b16 %v2654
        %v3808 = vunpack.c.l.b16 %v2655
        %v3809 = vunpack.c.h.b16 %v2655
        %v3810 = vunpack.c.l.b16 %v2656
        %v3811 = vunpack.c.h.b16 %v2656
        %v3812 = vunpack.c.l.b16 %v2657
        %v3813 = vunpack.c.h.b16 %v2657
        %v3814 = vunpack.c.l.b16 %v2658
        %v3815 = vunpack.c.h.b16 %v2658
        %v3816 = vunpack.c.l.b16 %v2659
        %v3817 = vunpack.c.h.b16 %v2659
        %v3818 = vunpack.c.l.b16 %v2660
        %v3819 = vunpack.c.h.b16 %v2660
        %v3820 = vunpack.c.l.b16 %v2661
        %v3821 = vunpack.c.h.b16 %v2661
        %v3822 = vunpack.c.l.b16 %v2662
        %v3823 = vunpack.c.h.b16 %v2662
        %v3824 = vunpack.c.l.b16 %v2663
        %v3825 = vunpack.c.h.b16 %v2663
        %v3826 = vunpack.c.l.b16 %v2664
        %v3827 = vunpack.c.h.b16 %v2664
        %v3828 = vunpack.c.l.b16 %v2665
        %v3829 = vunpack.c.h.b16 %v2665
        %v3830 = vunpack.c.l.b16 %v2666
        %v3831 = vunpack.c.h.b16 %v2666
        %v3832 = vunpack.c.l.b16 %v2667
        %v3833 = vunpack.c.h.b16 %v2667
        %v3834 = vunpack.c.l.b16 %v2668
        %v3835 = vunpack.c.h.b16 %v2668
        %v3836 = vunpack.c.l.b16 %v2669
        %v3837 = vunpack.c.h.b16 %v2669
        %v3838 = vunpack.c.l.b16 %v2670
        %v3839 = vunpack.c.h.b16 %v2670
        %v3840 = vunpack.c.l.b16 %v2671
        %v3841 = vunpack.c.h.b16 %v2671
        %v3842 = vunpack.c.l.b16 %v2672
        %v3843 = vunpack.c.h.b16 %v2672
        %v3844 = vunpack.c.l.b16 %v2673
        %v3845 = vunpack.c.h.b16 %v2673
        %v3846 = vunpack.c.l.b16 %v2674
        %v3847 = vunpack.c.h.b16 %v2674
        %v3848 = vunpack.c.l.b16 %v2675
        %v3849 = vunpack.c.h.b16 %v2675
        %v3850 = vunpack.c.l.b16 %v2676
        %v3851 = vunpack.c.h.b16 %v2676
        %v3852 = vunpack.c.l.b16 %v2677
        %v3853 = vunpack.c.h.b16 %v2677
        %v3854 = vunpack.c.l.b16 %v2678
        %v3855 = vunpack.c.h.b16 %v2678
        %v3856 = vunpack.c.l.b16 %v2679
        %v3857 = vunpack.c.h.b16 %v2679
        %v3858 = vunpack.c.l.b16 %v2680
        %v3859 = vunpack.c.h.b16 %v2680
        %v3860 = vunpack.c.l.b16 %v2681
        %v3861 = vunpack.c.h.b16 %v2681
        %v3862 = vunpack.c.l.b16 %v2682
        %v3863 = vunpack.c.h.b16 %v2682
        %v3864 = vunpack.c.l.b16 %v2683
        %v3865 = vunpack.c.h.b16 %v2683
        %v3866 = vunpack.c.l.b16 %v2684
        %v3867 = vunpack.c.h.b16 %v2684
        %v3868 = vunpack.c.l.b16 %v2685
        %v3869 = vunpack.c.h.b16 %v2685
        %v3870 = vunpack.c.l.b16 %v2686
        %v3871 = vunpack.c.h.b16 %v2686
        %v3872 = vunpack.c.l.b16 %v2687
        %v3873 = vunpack.c.h.b16 %v2687
        %v3874 = vunpack.c.l.b16 %v2688
        %v3875 = vunpack.c.h.b16 %v2688
        %v3876 = vunpack.c.l.b16 %v2689
        %v3877 = vunpack.c.h.b16 %v2689
        %v3878 = vunpack.c.l.b16 %v2690
        %v3879 = vunpack.c.h.b16 %v2690
        %v3880 = vunpack.c.l.b16 %v2691
        %v3881 = vunpack.c.h.b16 %v2691
        %v3882 = vunpack.c.l.b16 %v2692
        %v3883 = vunpack.c.h.b16 %v2692
        %v3884 = vunpack.c.l.b16 %v2693
        %v3885 = vunpack.c.h.b16 %v2693
        %v3886 = vunpack.c.l.b16 %v2694
        %v3887 = vunpack.c.h.b16 %v2694
        %v3888 = vunpack.c.l.b16 %v2695
        %v3889 = vunpack.c.h.b16 %v2695
        %v3890 = vunpack.c.l.b16 %v2696
        %v3891 = vunpack.c.h.b16 %v2696
        %v3892 = vunpack.c.l.b16 %v2697
        %v3893 = vunpack.c.h.b16 %v2697
        %v3894 = vunpack.c.l.b16 %v2698
        %v3895 = vunpack.c.h.b16 %v2698
        %v3896 = vunpack.c.l.b16 %v2699
        %v3897 = vunpack.c.h.b16 %v2699
        %v3898 = vunpack.c.l.b16 %v2700
        %v3899 = vunpack.c.h.b16 %v2700
        %v3900 = vunpack.c.l.b16 %v2701
        %v3901 = vunpack.c.h.b16 %v2701
        %v3902 = vunpack.c.l.b16 %v2702
        %v3903 = vunpack.c.h.b16 %v2702
        %v3904 = vunpack.c.l.b16 %v2703
        %v3905 = vunpack.c.h.b16 %v2703
        %v3906 = vunpack.c.l.b16 %v2704
        %v3907 = vunpack.c.h.b16 %v2704
        %v3908 = vunpack.c.l.b16 %v2705
        %v3909 = vunpack.c.h.b16 %v2705
        %v3910 = vunpack.c.l.b16 %v2706
        %v3911 = vunpack.c.h.b16 %v2706
        %v3912 = vunpack.c.l.b16 %v2707
        %v3913 = vunpack.c.h.b16 %v2707
        %v3914 = vunpack.c.l.b16 %v2708
        %v3915 = vunpack.c.h.b16 %v2708
        %v3916 = vunpack.c.l.b16 %v2709
        %v3917 = vunpack.c.h.b16 %v2709
        %v3918 = vunpack.c.l.b16 %v2710
        %v3919 = vunpack.c.h.b16 %v2710
        %v3920 = vunpack.c.l.b16 %v2711
        %v3921 = vunpack.c.h.b16 %v2711
        %v3922 = vunpack.c.l.b16 %v2712
        %v3923 = vunpack.c.h.b16 %v2712
        %v3924 = vunpack.c.l.b16 %v2713
        %v3925 = vunpack.c.h.b16 %v2713
        %v3926 = vunpack.c.l.b16 %v2714
        %v3927 = vunpack.c.h.b16 %v2714
        %v3928 = vunpack.c.l.b16 %v2715
        %v3929 = vunpack.c.h.b16 %v2715
        %v3930 = vunpack.c.l.b16 %v2716
        %v3931 = vunpack.c.h.b16 %v2716
        %v3932 = vunpack.c.l.b16 %v2717
        %v3933 = vunpack.c.h.b16 %v2717
        %v3934 = vunpack.c.l.b16 %v2718
        %v3935 = vunpack.c.h.b16 %v2718
        %v3936 = vunpack.c.l.b16 %v2719
        %v3937 = vunpack.c.h.b16 %v2719
        %v3938 = vunpack.c.l.b16 %v2720
        %v3939 = vunpack.c.h.b16 %v2720
        %v3940 = vunpack.c.l.b16 %v2721
        %v3941 = vunpack.c.h.b16 %v2721
        %v3942 = vunpack.c.l.b16 %v2722
        %v3943 = vunpack.c.h.b16 %v2722
        %v3944 = vunpack.c.l.b16 %v2723
        %v3945 = vunpack.c.h.b16 %v2723
        %v3946 = vunpack.c.l.b16 %v2724
        %v3947 = vunpack.c.h.b16 %v2724
        %v3948 = vunpack.c.l.b16 %v2725
        %v3949 = vunpack.c.h.b16 %v2725
        %v3950 = vunpack.c.l.b16 %v2726
        %v3951 = vunpack.c.h.b16 %v2726
        %v3952 = vunpack.c.l.b16 %v2727
        %v3953 = vunpack.c.h.b16 %v2727
        %v3954 = vunpack.c.l.b16 %v2728
        %v3955 = vunpack.c.h.b16 %v2728
        %v3956 = vunpack.c.l.b16 %v2729
        %v3957 = vunpack.c.h.b16 %v2729
        %v3958 = vunpack.c.l.b16 %v2730
        %v3959 = vunpack.c.h.b16 %v2730
        %v3960 = vunpack.c.l.b16 %v2731
        %v3961 = vunpack.c.h.b16 %v2731
        %v3962 = vunpack.c.l.b16 %v2732
        %v3963 = vunpack.c.h.b16 %v2732
        %v3964 = vunpack.c.l.b16 %v2733
        %v3965 = vunpack.c.h.b16 %v2733
        %v3966 = vunpack.c.l.b16 %v2734
        %v3967 = vunpack.c.h.b16 %v2734
        %v3968 = vunpack.c.l.b16 %v2735
        %v3969 = vunpack.c.h.b16 %v2735
        %v3970 = vunpack.c.l.b16 %v2736
        %v3971 = vunpack.c.h.b16 %v2736
        %v3972 = vunpack.c.l.b16 %v2737
        %v3973 = vunpack.c.h.b16 %v2737
        %v3974 = vunpack.c.l.b16 %v2738
        %v3975 = vunpack.c.h.b16 %v2738
        %v3976 = vunpack.c.l.b16 %v2739
        %v3977 = vunpack.c.h.b16 %v2739
        %v3978 = vunpack.c.l.b16 %v2740
        %v3979 = vunpack.c.h.b16 %v2740
        %v3980 = vunpack.c.l.b16 %v2741
        %v3981 = vunpack.c.h.b16 %v2741
        %v3982 = vunpack.c.l.b16 %v2742
        %v3983 = vunpack.c.h.b16 %v2742
        %v3984 = vunpack.c.l.b16 %v2743
        %v3985 = vunpack.c.h.b16 %v2743
        %v3986 = vunpack.c.l.b16 %v2744
        %v3987 = vunpack.c.h.b16 %v2744
        %v3988 = vunpack.c.l.b16 %v2745
        %v3989 = vunpack.c.h.b16 %v2745
        %v3990 = vunpack.c.l.b16 %v2746
        %v3991 = vunpack.c.h.b16 %v2746
        %v3992 = vunpack.c.l.b16 %v2747
        %v3993 = vunpack.c.h.b16 %v2747
        %v3994 = vunpack.c.l.b16 %v2748
        %v3995 = vunpack.c.h.b16 %v2748
        %v3996 = vunpack.c.l.b16 %v2749
        %v3997 = vunpack.c.h.b16 %v2749
        %v3998 = vunpack.c.l.b16 %v2750
        %v3999 = vunpack.c.h.b16 %v2750
        %v4000 = vunpack.c.l.b16 %v2751
        %v4001 = vunpack.c.h.b16 %v2751
        %v4002 = vunpack.c.l.b16 %v2752
        %v4003 = vunpack.c.h.b16 %v2752
        %v4004 = vunpack.c.l.b16 %v2753
        %v4005 = vunpack.c.h.b16 %v2753
        %v4006 = vunpack.c.l.b16 %v2754
        %v4007 = vunpack.c.h.b16 %v2754
        %v4008 = vunpack.c.l.b16 %v2755
        %v4009 = vunpack.c.h.b16 %v2755
        %v4010 = vunpack.c.l.b16 %v2756
        %v4011 = vunpack.c.h.b16 %v2756
        %v4012 = vunpack.c.l.b16 %v2757
        %v4013 = vunpack.c.h.b16 %v2757
        %v4014 = vunpack.c.l.b16 %v2758
        %v4015 = vunpack.c.h.b16 %v2758
        %v4016 = vunpack.c.l.b16 %v2759
        %v4017 = vunpack.c.h.b16 %v2759
        %v4018 = vunpack.c.l.b16 %v2760
        %v4019 = vunpack.c.h.b16 %v2760
        %v4020 = vunpack.c.l.b16 %v2761
        %v4021 = vunpack.c.h.b16 %v2761
        %v4022 = vunpack.c.l.b16 %v2762
        %v4023 = vunpack.c.h.b16 %v2762
        %v4024 = vunpack.c.l.b16 %v2763
        %v4025 = vunpack.c.h.b16 %v2763
        %v4026 = vunpack.c.l.b16 %v2764
        %v4027 = vunpack.c.h.b16 %v2764
        %v4028 = vunpack.c.l.b16 %v2765
        %v4029 = vunpack.c.h.b16 %v2765
        %v4030 = vunpack.c.l.b16 %v2766
        %v4031 = vunpack.c.h.b16 %v2766
        %v4032 = vunpack.c.l.b16 %v2767
        %v4033 = vunpack.c.h.b16 %v2767
        %v4034 = vunpack.c.l.b16 %v2768
        %v4035 = vunpack.c.h.b16 %v2768
        %v4036 = vunpack.c.l.b16 %v2769
        %v4037 = vunpack.c.h.b16 %v2769
        %v4038 = vunpack.c.l.b16 %v2770
        %v4039 = vunpack.c.h.b16 %v2770
        %v4040 = vunpack.c.l.b16 %v2771
        %v4041 = vunpack.c.h.b16 %v2771
        %v4042 = vunpack.c.l.b16 %v2772
        %v4043 = vunpack.c.h.b16 %v2772
        %v4044 = vunpack.c.l.b16 %v2773
        %v4045 = vunpack.c.h.b16 %v2773
        %v4046 = vunpack.c.l.b16 %v2774
        %v4047 = vunpack.c.h.b16 %v2774
        %v4048 = vunpack.c.l.b16 %v2775
        %v4049 = vunpack.c.h.b16 %v2775
        %v4050 = vunpack.c.l.b16 %v2776
        %v4051 = vunpack.c.h.b16 %v2776
        %v4052 = vunpack.c.l.b16 %v2777
        %v4053 = vunpack.c.h.b16 %v2777
        %v4054 = vunpack.c.l.b16 %v2778
        %v4055 = vunpack.c.h.b16 %v2778
        %v4056 = vunpack.c.l.b16 %v2779
        %v4057 = vunpack.c.h.b16 %v2779
        %v4058 = vunpack.c.l.b16 %v2780
        %v4059 = vunpack.c.h.b16 %v2780
        %v4060 = vunpack.c.l.b16 %v2781
        %v4061 = vunpack.c.h.b16 %v2781
        %v4062 = vunpack.c.l.b16 %v2782
        %v4063 = vunpack.c.h.b16 %v2782
        %v4064 = vunpack.c.l.b16 %v2783
        %v4065 = vunpack.c.h.b16 %v2783
        %v4066 = vunpack.c.l.b16 %v2784
        %v4067 = vunpack.c.h.b16 %v2784
        %v4068 = vunpack.c.l.b16 %v2785
        %v4069 = vunpack.c.h.b16 %v2785
        %v4070 = vunpack.c.l.b16 %v2786
        %v4071 = vunpack.c.h.b16 %v2786
        %v4072 = vunpack.c.l.b16 %v2787
        %v4073 = vunpack.c.h.b16 %v2787
        %v4074 = vunpack.c.l.b16 %v2788
        %v4075 = vunpack.c.h.b16 %v2788
        %v4076 = vunpack.c.l.b16 %v2789
        %v4077 = vunpack.c.h.b16 %v2789
        %v4078 = vunpack.c.l.b16 %v2790
        %v4079 = vunpack.c.h.b16 %v2790
        %v4080 = vunpack.c.l.b16 %v2791
        %v4081 = vunpack.c.h.b16 %v2791
        %v4082 = vunpack.c.l.b16 %v2792
        %v4083 = vunpack.c.h.b16 %v2792
        %v4084 = vunpack.c.l.b16 %v2793
        %v4085 = vunpack.c.h.b16 %v2793
        %v4086 = vunpack.c.l.b16 %v2794
        %v4087 = vunpack.c.h.b16 %v2794
        %v4088 = vunpack.c.l.b16 %v2795
        %v4089 = vunpack.c.h.b16 %v2795
        %v4090 = vunpack.c.l.b16 %v2796
        %v4091 = vunpack.c.h.b16 %v2796
        %v4092 = vunpack.c.l.b16 %v2797
        %v4093 = vunpack.c.h.b16 %v2797
        %v4094 = vunpack.c.l.b16 %v2798
        %v4095 = vunpack.c.h.b16 %v2798
        %v4096 = vunpack.c.l.b16 %v2799
        %v4097 = vunpack.c.h.b16 %v2799
        %v4098 = vunpack.c.l.b16 %v2800
        %v4099 = vunpack.c.h.b16 %v2800
        %v4100 = vunpack.c.l.b16 %v2801
        %v4101 = vunpack.c.h.b16 %v2801
        %v4102 = vunpack.c.l.b16 %v2802
        %v4103 = vunpack.c.h.b16 %v2802
        %v4104 = vunpack.c.l.b16 %v2803
        %v4105 = vunpack.c.h.b16 %v2803
        %v4106 = vunpack.c.l.b16 %v2804
        %v4107 = vunpack.c.h.b16 %v2804
        %v4108 = vunpack.c.l.b16 %v2805
        %v4109 = vunpack.c.h.b16 %v2805
        %v4110 = vunpack.c.l.b16 %v2806
        %v4111 = vunpack.c.h.b16 %v2806
        %v4112 = vunpack.c.l.b16 %v2807
        %v4113 = vunpack.c.h.b16 %v2807
        %v4114 = vunpack.c.l.b16 %v2808
        %v4115 = vunpack.c.h.b16 %v2808
        %v4116 = vunpack.c.l.b16 %v2809
        %v4117 = vunpack.c.h.b16 %v2809
        %v4118 = vunpack.c.l.b16 %v2810
        %v4119 = vunpack.c.h.b16 %v2810
        %v4120 = vunpack.c.l.b16 %v2811
        %v4121 = vunpack.c.h.b16 %v2811
        %v4122 = vunpack.c.l.b16 %v2812
        %v4123 = vunpack.c.h.b16 %v2812
        %v4124 = vunpack.c.l.b16 %v2813
        %v4125 = vunpack.c.h.b16 %v2813
        %v4126 = vunpack.c.l.b16 %v2814
        %v4127 = vunpack.c.h.b16 %v2814
        %v4128 = vunpack.c.l.b16 %v2815
        %v4129 = vunpack.c.h.b16 %v2815
        %v4130 = vunpack.c.l.b16 %v2816
        %v4131 = vunpack.c.h.b16 %v2816
        %v4132 = vunpack.c.l.b16 %v2817
        %v4133 = vunpack.c.h.b16 %v2817
        %v4134 = vunpack.c.l.b16 %v2818
        %v4135 = vunpack.c.h.b16 %v2818
        %v4136 = vunpack.c.l.b16 %v2819
        %v4137 = vunpack.c.h.b16 %v2819
        %v4138 = vunpack.c.l.b16 %v2820
        %v4139 = vunpack.c.h.b16 %v2820
        %v4140 = vunpack.c.l.b16 %v2821
        %v4141 = vunpack.c.h.b16 %v2821
        %v4142 = vunpack.c.l.b16 %v2822
        %v4143 = vunpack.c.h.b16 %v2822
        %v4144 = vunpack.c.l.b16 %v2823
        %v4145 = vunpack.c.h.b16 %v2823
        %v4146 = vunpack.c.l.b16 %v2824
        %v4147 = vunpack.c.h.b16 %v2824
        %v4148 = vunpack.c.l.b16 %v2825
        %v4149 = vunpack.c.h.b16 %v2825
        %v4150 = vunpack.c.l.b16 %v2826
        %v4151 = vunpack.c.h.b16 %v2826
        %v4152 = vunpack.c.l.b16 %v2827
        %v4153 = vunpack.c.h.b16 %v2827
        %v4154 = vunpack.c.l.b16 %v2828
        %v4155 = vunpack.c.h.b16 %v2828
        %v4156 = vunpack.c.l.b16 %v2829
        %v4157 = vunpack.c.h.b16 %v2829
        %v4158 = vunpack.c.l.b16 %v2830
        %v4159 = vunpack.c.h.b16 %v2830
        %v4160 = vunpack.c.l.b16 %v2831
        %v4161 = vunpack.c.h.b16 %v2831
        %v4162 = vunpack.c.l.b16 %v2832
        %v4163 = vunpack.c.h.b16 %v2832
        %v4164 = vunpack.c.l.b16 %v2833
        %v4165 = vunpack.c.h.b16 %v2833
        %v4166 = vunpack.c.l.b16 %v2834
        %v4167 = vunpack.c.h.b16 %v2834
        %v4168 = vunpack.c.l.b16 %v2835
        %v4169 = vunpack.c.h.b16 %v2835
        %v4170 = vunpack.c.l.b16 %v2836
        %v4171 = vunpack.c.h.b16 %v2836
        %v4172 = vunpack.c.l.b16 %v2837
        %v4173 = vunpack.c.h.b16 %v2837
        %v4174 = vunpack.c.l.b16 %v2838
        %v4175 = vunpack.c.h.b16 %v2838
        %v4176 = vunpack.c.l.b16 %v2839
        %v4177 = vunpack.c.h.b16 %v2839
        %v4178 = vunpack.c.l.b16 %v2840
        %v4179 = vunpack.c.h.b16 %v2840
        %v4180 = vunpack.c.l.b16 %v2841
        %v4181 = vunpack.c.h.b16 %v2841
        %v4182 = vunpack.c.l.b16 %v2842
        %v4183 = vunpack.c.h.b16 %v2842
        %v4184 = vunpack.c.l.b16 %v2843
        %v4185 = vunpack.c.h.b16 %v2843
        %v4186 = vunpack.c.l.b16 %v2844
        %v4187 = vunpack.c.h.b16 %v2844
        %v4188 = vunpack.c.l.b16 %v2845
        %v4189 = vunpack.c.h.b16 %v2845
        %v4190 = vunpack.c.l.b16 %v2846
        %v4191 = vunpack.c.h.b16 %v2846
        %v4192 = vunpack.c.l.b16 %v2847
        %v4193 = vunpack.c.h.b16 %v2847
        %v4194 = vunpack.c.l.b16 %v2848
        %v4195 = vunpack.c.h.b16 %v2848
        %v4196 = vunpack.c.l.b16 %v2849
        %v4197 = vunpack.c.h.b16 %v2849
        %v4198 = vunpack.c.l.b16 %v2850
        %v4199 = vunpack.c.h.b16 %v2850
        %v4200 = vunpack.c.l.b16 %v2851
        %v4201 = vunpack.c.h.b16 %v2851
        %v4202 = vunpack.c.l.b16 %v2852
        %v4203 = vunpack.c.h.b16 %v2852
        %v4204 = vunpack.c.l.b16 %v2853
        %v4205 = vunpack.c.h.b16 %v2853
        %v4206 = vunpack.c.l.b16 %v2854
        %v4207 = vunpack.c.h.b16 %v2854
        %v4208 = vunpack.c.l.b16 %v2855
        %v4209 = vunpack.c.h.b16 %v2855
        %v4210 = vunpack.c.l.b16 %v2856
        %v4211 = vunpack.c.h.b16 %v2856
        %v4212 = vunpack.c.l.b16 %v2857
        %v4213 = vunpack.c.h.b16 %v2857
        %v4214 = vunpack.c.l.b16 %v2858
        %v4215 = vunpack.c.h.b16 %v2858
        %v4216 = vunpack.c.l.b16 %v2859
        %v4217 = vunpack.c.h.b16 %v2859
        %v4218 = vunpack.c.l.b16 %v2860
        %v4219 = vunpack.c.h.b16 %v2860
        %v4220 = vunpack.c.l.b16 %v2861
        %v4221 = vunpack.c.h.b16 %v2861
        %v4222 = vunpack.c.l.b16 %v2862
        %v4223 = vunpack.c.h.b16 %v2862
        %v4224 = vunpack.c.l.b16 %v2863
        %v4225 = vunpack.c.h.b16 %v2863
        %v4226 = vunpack.c.l.b16 %v2864
        %v4227 = vunpack.c.h.b16 %v2864
        %v4228 = vunpack.c.l.b16 %v2865
        %v4229 = vunpack.c.h.b16 %v2865
        %v4230 = vunpack.c.l.b16 %v2866
        %v4231 = vunpack.c.h.b16 %v2866
        %v4232 = vunpack.c.l.b16 %v2867
        %v4233 = vunpack.c.h.b16 %v2867
        %v4234 = vunpack.c.l.b16 %v2868
        %v4235 = vunpack.c.h.b16 %v2868
        %v4236 = vunpack.c.l.b16 %v2869
        %v4237 = vunpack.c.h.b16 %v2869
        %v4238 = vunpack.c.l.b16 %v2870
        %v4239 = vunpack.c.h.b16 %v2870
        %v4240 = vunpack.c.l.b16 %v2871
        %v4241 = vunpack.c.h.b16 %v2871
        %v4242 = vunpack.c.l.b16 %v2872
        %v4243 = vunpack.c.h.b16 %v2872
        %v4244 = vunpack.c.l.b16 %v2873
        %v4245 = vunpack.c.h.b16 %v2873
        %v4246 = vunpack.c.l.b16 %v2874
        %v4247 = vunpack.c.h.b16 %v2874
        %v4248 = vunpack.c.l.b16 %v2875
        %v4249 = vunpack.c.h.b16 %v2875
        %v4250 = vunpack.c.l.b16 %v2876
        %v4251 = vunpack.c.h.b16 %v2876
        %v4252 = vunpack.c.l.b16 %v2877
        %v4253 = vunpack.c.h.b16 %v2877
        %v4254 = vunpack.c.l.b16 %v2878
        %v4255 = vunpack.c.h.b16 %v2878
        %v4256 = vunpack.c.l.b16 %v2879
        %v4257 = vunpack.c.h.b16 %v2879
        %v4258 = vunpack.c.l.b16 %v2880
        %v4259 = vunpack.c.h.b16 %v2880
        %v4260 = vunpack.c.l.b16 %v2881
        %v4261 = vunpack.c.h.b16 %v2881
        %v4262 = vunpack.c.l.b16 %v2882
        %v4263 = vunpack.c.h.b16 %v2882
        %v4264 = vunpack.c.l.b16 %v2883
        %v4265 = vunpack.c.h.b16 %v2883
        %v4266 = vunpack.c.l.b16 %v2884
        %v4267 = vunpack.c.h.b16 %v2884
        %v4268 = vunpack.c.l.b16 %v2885
        %v4269 = vunpack.c.h.b16 %v2885
        %v4270 = vunpack.c.l.b16 %v2886
        %v4271 = vunpack.c.h.b16 %v2886
        %v4272 = vunpack.c.l.b16 %v2887
        %v4273 = vunpack.c.h.b16 %v2887
        %v4274 = vunpack.c.l.b16 %v2888
        %v4275 = vunpack.c.h.b16 %v2888
        %v4276 = vunpack.c.l.b16 %v2889
        %v4277 = vunpack.c.h.b16 %v2889
        %v4278 = vunpack.c.l.b16 %v2890
        %v4279 = vunpack.c.h.b16 %v2890
        %v4280 = vunpack.c.l.b16 %v2891
        %v4281 = vunpack.c.h.b16 %v2891
        %v4282 = vunpack.c.l.b16 %v2892
        %v4283 = vunpack.c.h.b16 %v2892
        %v4284 = vunpack.c.l.b16 %v2893
        %v4285 = vunpack.c.h.b16 %v2893
        %v4286 = vunpack.c.l.b16 %v2894
        %v4287 = vunpack.c.h.b16 %v2894
        %v4288 = vunpack.c.l.b16 %v2895
        %v4289 = vunpack.c.h.b16 %v2895
        %v4290 = vunpack.c.l.b16 %v2896
        %v4291 = vunpack.c.h.b16 %v2896
        %v4292 = vunpack.c.l.b16 %v2897
        %v4293 = vunpack.c.h.b16 %v2897
        %v4294 = vunpack.c.l.b16 %v2898
        %v4295 = vunpack.c.h.b16 %v2898
        %v4296 = vunpack.c.l.b16 %v2899
        %v4297 = vunpack.c.h.b16 %v2899
        %v4298 = vunpack.c.l.b16 %v2900
        %v4299 = vunpack.c.h.b16 %v2900
        %v4300 = vunpack.c.l.b16 %v2901
        %v4301 = vunpack.c.h.b16 %v2901
        %v4302 = vunpack.c.l.b16 %v2902
        %v4303 = vunpack.c.h.b16 %v2902
        %v4304 = vunpack.c.l.b16 %v2903
        %v4305 = vunpack.c.h.b16 %v2903
        %v4306 = vunpack.c.l.b16 %v2904
        %v4307 = vunpack.c.h.b16 %v2904
        %v4308 = vunpack.c.l.b16 %v2905
        %v4309 = vunpack.c.h.b16 %v2905
        %v4310 = vunpack.c.l.b16 %v2906
        %v4311 = vunpack.c.h.b16 %v2906
        %v4312 = vunpack.c.l.b16 %v2907
        %v4313 = vunpack.c.h.b16 %v2907
        %v4314 = vunpack.c.l.b16 %v2908
        %v4315 = vunpack.c.h.b16 %v2908
        %v4316 = vunpack.c.l.b16 %v2909
        %v4317 = vunpack.c.h.b16 %v2909
        %v4318 = vunpack.c.l.b16 %v2910
        %v4319 = vunpack.c.h.b16 %v2910
        %v4320 = vunpack.c.l.b16 %v2911
        %v4321 = vunpack.c.h.b16 %v2911
        %v4322 = vunpack.c.l.b16 %v2912
        %v4323 = vunpack.c.h.b16 %v2912
        %v4324 = vunpack.c.l.b16 %v2913
        %v4325 = vunpack.c.h.b16 %v2913
        %v4326 = vunpack.c.l.b16 %v2914
        %v4327 = vunpack.c.h.b16 %v2914
        %v4328 = vunpack.c.l.b16 %v2915
        %v4329 = vunpack.c.h.b16 %v2915
        %v4330 = vunpack.c.l.b16 %v2916
        %v4331 = vunpack.c.h.b16 %v2916
        %v4332 = vunpack.c.l.b16 %v2917
        %v4333 = vunpack.c.h.b16 %v2917
        %v4334 = vunpack.c.l.b16 %v2918
        %v4335 = vunpack.c.h.b16 %v2918
        %v4336 = vunpack.c.l.b16 %v2919
        %v4337 = vunpack.c.h.b16 %v2919
        %v4338 = vunpack.c.l.b16 %v2920
        %v4339 = vunpack.c.h.b16 %v2920
        %v4340 = vunpack.c.l.b16 %v2921
        %v4341 = vunpack.c.h.b16 %v2921
        %v4342 = vunpack.c.l.b16 %v2922
        %v4343 = vunpack.c.h.b16 %v2922
        %v4344 = vunpack.c.l.b16 %v2923
        %v4345 = vunpack.c.h.b16 %v2923
        %v4346 = vunpack.c.l.b16 %v2924
        %v4347 = vunpack.c.h.b16 %v2924
        %v4348 = vunpack.c.l.b16 %v2925
        %v4349 = vunpack.c.h.b16 %v2925
        %v4350 = vunpack.c.l.b16 %v2926
        %v4351 = vunpack.c.h.b16 %v2926
        %v4352 = vunpack.c.l.b16 %v2927
        %v4353 = vunpack.c.h.b16 %v2927
        %v4354 = vunpack.c.l.b16 %v2928
        %v4355 = vunpack.c.h.b16 %v2928
        %v4356 = vunpack.c.l.b16 %v2929
        %v4357 = vunpack.c.h.b16 %v2929
        %v4358 = vunpack.c.l.b16 %v2930
        %v4359 = vunpack.c.h.b16 %v2930
        %v4360 = vunpack.c.l.b16 %v2931
        %v4361 = vunpack.c.h.b16 %v2931
        %v4362 = vunpack.c.l.b16 %v2932
        %v4363 = vunpack.c.h.b16 %v2932
        %v4364 = vunpack.c.l.b16 %v2933
        %v4365 = vunpack.c.h.b16 %v2933
        %v4366 = vunpack.c.l.b16 %v2934
        %v4367 = vunpack.c.h.b16 %v2934
        %v4368 = vunpack.c.l.b16 %v2935
        %v4369 = vunpack.c.h.b16 %v2935
        %v4370 = vunpack.c.l.b16 %v2936
        %v4371 = vunpack.c.h.b16 %v2936
        %v4372 = vunpack.c.l.b16 %v2937
        %v4373 = vunpack.c.h.b16 %v2937
        %v4374 = vunpack.c.l.b16 %v2938
        %v4375 = vunpack.c.h.b16 %v2938
        %v4376 = vunpack.c.l.b16 %v2939
        %v4377 = vunpack.c.h.b16 %v2939
        %v4378 = vunpack.c.l.b16 %v2940
        %v4379 = vunpack.c.h.b16 %v2940
        %v4380 = vunpack.c.l.b16 %v2941
        %v4381 = vunpack.c.h.b16 %v2941
        %v4382 = vunpack.c.l.b16 %v2942
        %v4383 = vunpack.c.h.b16 %v2942
        %v4384 = vunpack.c.l.b16 %v2943
        %v4385 = vunpack.c.h.b16 %v2943
        %v4386 = vunpack.c.l.b16 %v2944
        %v4387 = vunpack.c.h.b16 %v2944
        %v4388 = vunpack.c.l.b16 %v2945
        %v4389 = vunpack.c.h.b16 %v2945
        %v4390 = vunpack.c.l.b16 %v2946
        %v4391 = vunpack.c.h.b16 %v2946
        %v4392 = vunpack.c.l.b16 %v2947
        %v4393 = vunpack.c.h.b16 %v2947
        %v4394 = vunpack.c.l.b16 %v2948
        %v4395 = vunpack.c.h.b16 %v2948
        %v4396 = vunpack.c.l.b16 %v2949
        %v4397 = vunpack.c.h.b16 %v2949
        %v4398 = vunpack.c.l.b16 %v2950
        %v4399 = vunpack.c.h.b16 %v2950
        %v4400 = vunpack.c.l.b16 %v2951
        %v4401 = vunpack.c.h.b16 %v2951
        %v4402 = vunpack.c.l.b16 %v2952
        %v4403 = vunpack.c.h.b16 %v2952
        %v4404 = vunpack.c.l.b16 %v2953
        %v4405 = vunpack.c.h.b16 %v2953
        %v4406 = vunpack.c.l.b16 %v2954
        %v4407 = vunpack.c.h.b16 %v2954
        %v4408 = vunpack.c.l.b16 %v2955
        %v4409 = vunpack.c.h.b16 %v2955
        %v4410 = vunpack.c.l.b16 %v2956
        %v4411 = vunpack.c.h.b16 %v2956
        %v4412 = vunpack.c.l.b16 %v2957
        %v4413 = vunpack.c.h.b16 %v2957
        %v4414 = vunpack.c.l.b16 %v2958
        %v4415 = vunpack.c.h.b16 %v2958
        %v4416 = vunpack.c.l.b16 %v2959
        %v4417 = vunpack.c.h.b16 %v2959
        %v4418 = vunpack.c.l.b16 %v2960
        %v4419 = vunpack.c.h.b16 %v2960
        %v4420 = vunpack.c.l.b16 %v2961
        %v4421 = vunpack.c.h.b16 %v2961
        %v4422 = vunpack.c.l.b16 %v2962
        %v4423 = vunpack.c.h.b16 %v2962
        %v4424 = vunpack.c.l.b16 %v2963
        %v4425 = vunpack.c.h.b16 %v2963
        %v4426 = vunpack.c.l.b16 %v2964
        %v4427 = vunpack.c.h.b16 %v2964
        %v4428 = vunpack.c.l.b16 %v2965
        %v4429 = vunpack.c.h.b16 %v2965
        %v4430 = vunpack.c.l.b16 %v2966
        %v4431 = vunpack.c.h.b16 %v2966
        %v4432 = vunpack.c.l.b16 %v2967
        %v4433 = vunpack.c.h.b16 %v2967
        %v4434 = vunpack.c.l.b16 %v2968
        %v4435 = vunpack.c.h.b16 %v2968
        %v4436 = vunpack.c.l.b16 %v2969
        %v4437 = vunpack.c.h.b16 %v2969
        %v4438 = vunpack.c.l.b16 %v2970
        %v4439 = vunpack.c.h.b16 %v2970
        %v4440 = vunpack.c.l.b16 %v2971
        %v4441 = vunpack.c.h.b16 %v2971
        %v4442 = vunpack.c.l.b16 %v2972
        %v4443 = vunpack.c.h.b16 %v2972
        %v4444 = vunpack.c.l.b16 %v2973
        %v4445 = vunpack.c.h.b16 %v2973
        %v4446 = vunpack.c.l.b16 %v2974
        %v4447 = vunpack.c.h.b16 %v2974
        %v4448 = vunpack.c.l.b16 %v2975
        %v4449 = vunpack.c.h.b16 %v2975
        %v4450 = vunpack.c.l.b16 %v2976
        %v4451 = vunpack.c.h.b16 %v2976
        %v4452 = vunpack.c.l.b16 %v2977
        %v4453 = vunpack.c.h.b16 %v2977
        %v4454 = vunpack.c.l.b16 %v2978
        %v4455 = vunpack.c.h.b16 %v2978
        %v4456 = vunpack.c.l.b16 %v2979
        %v4457 = vunpack.c.h.b16 %v2979
        %v4458 = vunpack.c.l.b16 %v2980
        %v4459 = vunpack.c.h.b16 %v2980
        %v4460 = vunpack.c.l.b16 %v2981
        %v4461 = vunpack.c.h.b16 %v2981
        %v4462 = vunpack.c.l.b16 %v2982
        %v4463 = vunpack.c.h.b16 %v2982
        %v4464 = vunpack.c.l.b16 %v2983
        %v4465 = vunpack.c.h.b16 %v2983
        %v4466 = vunpack.c.l.b16 %v2984
        %v4467 = vunpack.c.h.b16 %v2984
        %v4468 = vunpack.c.l.b16 %v2985
        %v4469 = vunpack.c.h.b16 %v2985
        %v4470 = vunpack.c.l.b16 %v2986
        %v4471 = vunpack.c.h.b16 %v2986
        %v4472 = vunpack.c.l.b16 %v2987
        %v4473 = vunpack.c.h.b16 %v2987
        %v4474 = vunpack.c.l.b16 %v2988
        %v4475 = vunpack.c.h.b16 %v2988
        %v4476 = vunpack.c.l.b16 %v2989
        %v4477 = vunpack.c.h.b16 %v2989
        %v4478 = vunpack.c.l.b16 %v2990
        %v4479 = vunpack.c.h.b16 %v2990
        %v4480 = vunpack.c.l.b16 %v2991
        %v4481 = vunpack.c.h.b16 %v2991
        %v4482 = vunpack.c.l.b16 %v2992
        %v4483 = vunpack.c.h.b16 %v2992
        %v4484 = vunpack.c.l.b16 %v2993
        %v4485 = vunpack.c.h.b16 %v2993
        %v4486 = vunpack.c.l.b16 %v2994
        %v4487 = vunpack.c.h.b16 %v2994
        %v4488 = vunpack.c.l.b16 %v2995
        %v4489 = vunpack.c.h.b16 %v2995
        %v4490 = vunpack.c.l.b16 %v2996
        %v4491 = vunpack.c.h.b16 %v2996
        %v4492 = vunpack.c.l.b16 %v2997
        %v4493 = vunpack.c.h.b16 %v2997
        %v4494 = vunpack.c.l.b16 %v2998
        %v4495 = vunpack.c.h.b16 %v2998
        %v4496 = vunpack.c.l.b16 %v2999
        %v4497 = vunpack.c.h.b16 %v2999
        %v4498 = vunpack.c.l.b16 %v3000
        %v4499 = vunpack.c.h.b16 %v3000
        %v4500 = vunpack.c.l.b16 %v3001
        %v4501 = vunpack.c.h.b16 %v3001
        %v4502 = vunpack.c.l.b16 %v3002
        %v4503 = vunpack.c.h.b16 %v3002
        %v4504 = vunpack.c.l.b16 %v3003
        %v4505 = vunpack.c.h.b16 %v3003
        %v4506 = vunpack.c.l.b16 %v3004
        %v4507 = vunpack.c.h.b16 %v3004
        %v4508 = vunpack.c.l.b16 %v3005
        %v4509 = vunpack.c.h.b16 %v3005
        %v4510 = vunpack.c.l.b16 %v3006
        %v4511 = vunpack.c.h.b16 %v3006
        %v4512 = vunpack.c.l.b16 %v3007
        %v4513 = vunpack.c.h.b16 %v3007
        %v4514 = vunpack.c.l.b16 %v3008
        %v4515 = vunpack.c.h.b16 %v3008
        %v4516 = vunpack.c.l.b16 %v3009
        %v4517 = vunpack.c.h.b16 %v3009
        %v4518 = vunpack.c.l.b16 %v3010
        %v4519 = vunpack.c.h.b16 %v3010
        %v4520 = vunpack.c.l.b16 %v3011
        %v4521 = vunpack.c.h.b16 %v3011
        %v4522 = vunpack.c.l.b16 %v3012
        %v4523 = vunpack.c.h.b16 %v3012
        %v4524 = vunpack.c.l.b16 %v3013
        %v4525 = vunpack.c.h.b16 %v3013
        %v4526 = vunpack.c.l.b16 %v3014
        %v4527 = vunpack.c.h.b16 %v3014
        %v4528 = vunpack.c.l.b16 %v3015
        %v4529 = vunpack.c.h.b16 %v3015
        %v4530 = vunpack.c.l.b16 %v3016
        %v4531 = vunpack.c.h.b16 %v3016
        %v4532 = vunpack.c.l.b16 %v3017
        %v4533 = vunpack.c.h.b16 %v3017
        %v4534 = vunpack.c.l.b16 %v3018
        %v4535 = vunpack.c.h.b16 %v3018
        %v4536 = vunpack.c.l.b16 %v3019
        %v4537 = vunpack.c.h.b16 %v3019
        %v4538 = vunpack.c.l.b16 %v3020
        %v4539 = vunpack.c.h.b16 %v3020
        %v4540 = vunpack.c.l.b16 %v3021
        %v4541 = vunpack.c.h.b16 %v3021
        %v4542 = vunpack.c.l.b16 %v3022
        %v4543 = vunpack.c.h.b16 %v3022
        %v4544 = vunpack.c.l.b16 %v3023
        %v4545 = vunpack.c.h.b16 %v3023
        %v4546 = vunpack.c.l.b16 %v3024
        %v4547 = vunpack.c.h.b16 %v3024
        %v4548 = vunpack.c.l.b16 %v3025
        %v4549 = vunpack.c.h.b16 %v3025
        %v4550 = vunpack.c.l.b16 %v3026
        %v4551 = vunpack.c.h.b16 %v3026
        %v4552 = vunpack.c.l.b16 %v3027
        %v4553 = vunpack.c.h.b16 %v3027
        %v4554 = vunpack.c.l.b16 %v3028
        %v4555 = vunpack.c.h.b16 %v3028
        %v4556 = vunpack.c.l.b16 %v3029
        %v4557 = vunpack.c.h.b16 %v3029
        %v4558 = vunpack.c.l.b16 %v3030
        %v4559 = vunpack.c.h.b16 %v3030
        %v4560 = vunpack.c.l.b16 %v3031
        %v4561 = vunpack.c.h.b16 %v3031
        %v4562 = vunpack.c.l.b16 %v3032
        %v4563 = vunpack.c.h.b16 %v3032
        %v4564 = vunpack.c.l.b16 %v3033
        %v4565 = vunpack.c.h.b16 %v3033
        %v4566 = vunpack.c.l.b16 %v3034
        %v4567 = vunpack.c.h.b16 %v3034
        %v4568 = vunpack.c.l.b16 %v3035
        %v4569 = vunpack.c.h.b16 %v3035
        %v4570 = vunpack.c.l.b16 %v3036
        %v4571 = vunpack.c.h.b16 %v3036
        %v4572 = vunpack.c.l.b16 %v3037
        %v4573 = vunpack.c.h.b16 %v3037
        %v4574 = vunpack.c.l.b16 %v3038
        %v4575 = vunpack.c.h.b16 %v3038
        %v4576 = vunpack.c.l.b16 %v3039
        %v4577 = vunpack.c.h.b16 %v3039
        %v4578 = vunpack.c.l.b16 %v3040
        %v4579 = vunpack.c.h.b16 %v3040
        %v4580 = vunpack.c.l.b16 %v3041
        %v4581 = vunpack.c.h.b16 %v3041
        %v4582 = vunpack.c.l.b16 %v3042
        %v4583 = vunpack.c.h.b16 %v3042
        %v4584 = vunpack.c.l.b16 %v3043
        %v4585 = vunpack.c.h.b16 %v3043
        %v4586 = vunpack.c.l.b16 %v3044
        %v4587 = vunpack.c.h.b16 %v3044
        %v4588 = vunpack.c.l.b16 %v3045
        %v4589 = vunpack.c.h.b16 %v3045
        %v4590 = vunpack.c.l.b16 %v3046
        %v4591 = vunpack.c.h.b16 %v3046
        %v4592 = vunpack.c.l.b16 %v3047
        %v4593 = vunpack.c.h.b16 %v3047
        %v4594 = vunpack.c.l.b16 %v3048
        %v4595 = vunpack.c.h.b16 %v3048
        %v4596 = vunpack.c.l.b16 %v3049
        %v4597 = vunpack.c.h.b16 %v3049
        %v4598 = vunpack.c.l.b16 %v3050
        %v4599 = vunpack.c.h.b16 %v3050
        %v4600 = vunpack.c.l.b16 %v3051
        %v4601 = vunpack.c.h.b16 %v3051
        %v4602 = vunpack.c.l.b16 %v3052
        %v4603 = vunpack.c.h.b16 %v3052
        %v4604 = vunpack.c.l.b16 %v3053
        %v4605 = vunpack.c.h.b16 %v3053
        %v4606 = vunpack.c.l.b16 %v3054
        %v4607 = vunpack.c.h.b16 %v3054
        %v4608 = vunpack.c.l.b16 %v3055
        %v4609 = vunpack.c.h.b16 %v3055
        %v4610 = vunpack.c.l.b16 %v3056
        %v4611 = vunpack.c.h.b16 %v3056
        %v4612 = vunpack.c.l.b16 %v3057
        %v4613 = vunpack.c.h.b16 %v3057
        %v4614 = vunpack.c.l.b16 %v3058
        %v4615 = vunpack.c.h.b16 %v3058
        %v4616 = vunpack.c.l.b16 %v3059
        %v4617 = vunpack.c.h.b16 %v3059
        %v4618 = vunpack.c.l.b16 %v3060
        %v4619 = vunpack.c.h.b16 %v3060
        %v4620 = vunpack.c.l.b16 %v3061
        %v4621 = vunpack.c.h.b16 %v3061
        %v4622 = vunpack.c.l.b16 %v3062
        %v4623 = vunpack.c.h.b16 %v3062
        %v4624 = vunpack.c.l.b16 %v3063
        %v4625 = vunpack.c.h.b16 %v3063
        %v4626 = vunpack.c.l.b16 %v3064
        %v4627 = vunpack.c.h.b16 %v3064
        %v4628 = vunpack.c.l.b16 %v3065
        %v4629 = vunpack.c.h.b16 %v3065
        %v4630 = vunpack.c.l.b16 %v3066
        %v4631 = vunpack.c.h.b16 %v3066
        %v4632 = vunpack.c.l.b16 %v3067
        %v4633 = vunpack.c.h.b16 %v3067
        %v4634 = vunpack.c.l.b16 %v3068
        %v4635 = vunpack.c.h.b16 %v3068
        %v4636 = vunpack.c.l.b16 %v3069
        %v4637 = vunpack.c.h.b16 %v3069
        %v4638 = vunpack.c.l.b16 %v3070
        %v4639 = vunpack.c.h.b16 %v3070
        %v4640 = vunpack.c.l.b16 %v3071
        %v4641 = vunpack.c.h.b16 %v3071
        %v4642 = vunpack.c.l.b16 %v3072
        %v4643 = vunpack.c.h.b16 %v3072
        %v4644 = vunpack.c.l.b16 %v3073
        %v4645 = vunpack.c.h.b16 %v3073
        %v4646 = vunpack.c.l.b16 %v3074
        %v4647 = vunpack.c.h.b16 %v3074
        %v4648 = vunpack.c.l.b16 %v3075
        %v4649 = vunpack.c.h.b16 %v3075
        %v4650 = vunpack.c.l.b16 %v3076
        %v4651 = vunpack.c.h.b16 %v3076
        %v4652 = vunpack.c.l.b16 %v3077
        %v4653 = vunpack.c.h.b16 %v3077
        %v4654 = vunpack.c.l.b16 %v3078
        %v4655 = vunpack.c.h.b16 %v3078
        %v4656 = vunpack.c.l.b16 %v3079
        %v4657 = vunpack.c.h.b16 %v3079
        %v4658 = vpack.c.b16 %v3642, %v3634
        %v4659 = vpack.c.b16 %v3643, %v3635
        %v4660 = vpack.c.b16 %v3644, %v3636
        %v4661 = vpack.c.b16 %v3645, %v3637
        %v4662 = vpack.c.b16 %v3646, %v3638
        %v4663 = vpack.c.b16 %v3647, %v3639
        %v4664 = vpack.c.b16 %v3648, %v3640
        %v4665 = vpack.c.b16 %v3649, %v3641
        %v4666 = vpack.c.b16 %v3658, %v3650
        %v4667 = vpack.c.b16 %v3659, %v3651
        %v4668 = vpack.c.b16 %v3660, %v3652
        %v4669 = vpack.c.b16 %v3661, %v3653
        %v4670 = vpack.c.b16 %v3662, %v3654
        %v4671 = vpack.c.b16 %v3663, %v3655
        %v4672 = vpack.c.b16 %v3664, %v3656
        %v4673 = vpack.c.b16 %v3665, %v3657
        %v4674 = vpack.c.b16 %v3674, %v3666
        %v4675 = vpack.c.b16 %v3675, %v3667
        %v4676 = vpack.c.b16 %v3676, %v3668
        %v4677 = vpack.c.b16 %v3677, %v3669
        %v4678 = vpack.c.b16 %v3678, %v3670
        %v4679 = vpack.c.b16 %v3679, %v3671
        %v4680 = vpack.c.b16 %v3680, %v3672
        %v4681 = vpack.c.b16 %v3681, %v3673
        %v4682 = vpack.c.b16 %v3690, %v3682
        %v4683 = vpack.c.b16 %v3691, %v3683
        %v4684 = vpack.c.b16 %v3692, %v3684
        %v4685 = vpack.c.b16 %v3693, %v3685
        %v4686 = vpack.c.b16 %v3694, %v3686
        %v4687 = vpack.c.b16 %v3695, %v3687
        %v4688 = vpack.c.b16 %v3696, %v3688
        %v4689 = vpack.c.b16 %v3697, %v3689
        %v4690 = vpack.c.b16 %v3706, %v3698
        %v4691 = vpack.c.b16 %v3707, %v3699
        %v4692 = vpack.c.b16 %v3708, %v3700
        %v4693 = vpack.c.b16 %v3709, %v3701
        %v4694 = vpack.c.b16 %v3710, %v3702
        %v4695 = vpack.c.b16 %v3711, %v3703
        %v4696 = vpack.c.b16 %v3712, %v3704
        %v4697 = vpack.c.b16 %v3713, %v3705
        %v4698 = vpack.c.b16 %v3722, %v3714
        %v4699 = vpack.c.b16 %v3723, %v3715
        %v4700 = vpack.c.b16 %v3724, %v3716
        %v4701 = vpack.c.b16 %v3725, %v3717
        %v4702 = vpack.c.b16 %v3726, %v3718
        %v4703 = vpack.c.b16 %v3727, %v3719
        %v4704 = vpack.c.b16 %v3728, %v3720
        %v4705 = vpack.c.b16 %v3729, %v3721
        %v4706 = vpack.c.b16 %v3738, %v3730
        %v4707 = vpack.c.b16 %v3739, %v3731
        %v4708 = vpack.c.b16 %v3740, %v3732
        %v4709 = vpack.c.b16 %v3741, %v3733
        %v4710 = vpack.c.b16 %v3742, %v3734
        %v4711 = vpack.c.b16 %v3743, %v3735
        %v4712 = vpack.c.b16 %v3744, %v3736
        %v4713 = vpack.c.b16 %v3745, %v3737
        %v4714 = vpack.c.b16 %v3754, %v3746
        %v4715 = vpack.c.b16 %v3755, %v3747
        %v4716 = vpack.c.b16 %v3756, %v3748
        %v4717 = vpack.c.b16 %v3757, %v3749
        %v4718 = vpack.c.b16 %v3758, %v3750
        %v4719 = vpack.c.b16 %v3759, %v3751
        %v4720 = vpack.c.b16 %v3760, %v3752
        %v4721 = vpack.c.b16 %v3761, %v3753
        %v4722 = vpack.c.b16 %v3770, %v3762
        %v4723 = vpack.c.b16 %v3771, %v3763
        %v4724 = vpack.c.b16 %v3772, %v3764
        %v4725 = vpack.c.b16 %v3773, %v3765
        %v4726 = vpack.c.b16 %v3774, %v3766
        %v4727 = vpack.c.b16 %v3775, %v3767
        %v4728 = vpack.c.b16 %v3776, %v3768
        %v4729 = vpack.c.b16 %v3777, %v3769
        %v4730 = vpack.c.b16 %v3786, %v3778
        %v4731 = vpack.c.b16 %v3787, %v3779
        %v4732 = vpack.c.b16 %v3788, %v3780
        %v4733 = vpack.c.b16 %v3789, %v3781
        %v4734 = vpack.c.b16 %v3790, %v3782
        %v4735 = vpack.c.b16 %v3791, %v3783
        %v4736 = vpack.c.b16 %v3792, %v3784
        %v4737 = vpack.c.b16 %v3793, %v3785
        %v4738 = vpack.c.b16 %v3802, %v3794
        %v4739 = vpack.c.b16 %v3803, %v3795
        %v4740 = vpack.c.b16 %v3804, %v3796
        %v4741 = vpack.c.b16 %v3805, %v3797
        %v4742 = vpack.c.b16 %v3806, %v3798
        %v4743 = vpack.c.b16 %v3807, %v3799
        %v4744 = vpack.c.b16 %v3808, %v3800
        %v4745 = vpack.c.b16 %v3809, %v3801
        %v4746 = vpack.c.b16 %v3818, %v3810
        %v4747 = vpack.c.b16 %v3819, %v3811
        %v4748 = vpack.c.b16 %v3820, %v3812
        %v4749 = vpack.c.b16 %v3821, %v3813
        %v4750 = vpack.c.b16 %v3822, %v3814
        %v4751 = vpack.c.b16 %v3823, %v3815
        %v4752 = vpack.c.b16 %v3824, %v3816
        %v4753 = vpack.c.b16 %v3825, %v3817
        %v4754 = vpack.c.b16 %v3834, %v3826
        %v4755 = vpack.c.b16 %v3835, %v3827
        %v4756 = vpack.c.b16 %v3836, %v3828
        %v4757 = vpack.c.b16 %v3837, %v3829
        %v4758 = vpack.c.b16 %v3838, %v3830
        %v4759 = vpack.c.b16 %v3839, %v3831
        %v4760 = vpack.c.b16 %v3840, %v3832
        %v4761 = vpack.c.b16 %v3841, %v3833
        %v4762 = vpack.c.b16 %v3850, %v3842
        %v4763 = vpack.c.b16 %v3851, %v3843
        %v4764 = vpack.c.b16 %v3852, %v3844
        %v4765 = vpack.c.b16 %v3853, %v3845
        %v4766 = vpack.c.b16 %v3854, %v3846
        %v4767 = vpack.c.b16 %v3855, %v3847
        %v4768 = vpack.c.b16 %v3856, %v3848
        %v4769 = vpack.c.b16 %v3857, %v3849
        %v4770 = vpack.c.b16 %v3866, %v3858
        %v4771 = vpack.c.b16 %v3867, %v3859
        %v4772 = vpack.c.b16 %v3868, %v3860
        %v4773 = vpack.c.b16 %v3869, %v3861
        %v4774 = vpack.c.b16 %v3870, %v3862
        %v4775 = vpack.c.b16 %v3871, %v3863
        %v4776 = vpack.c.b16 %v3872, %v3864
        %v4777 = vpack.c.b16 %v3873, %v3865
        %v4778 = vpack.c.b16 %v3882, %v3874
        %v4779 = vpack.c.b16 %v3883, %v3875
        %v4780 = vpack.c.b16 %v3884, %v3876
        %v4781 = vpack.c.b16 %v3885, %v3877
        %v4782 = vpack.c.b16 %v3886, %v3878
        %v4783 = vpack.c.b16 %v3887, %v3879
        %v4784 = vpack.c.b16 %v3888, %v3880
        %v4785 = vpack.c.b16 %v3889, %v3881
        %v4786 = vpack.c.b16 %v3898, %v3890
        %v4787 = vpack.c.b16 %v3899, %v3891
        %v4788 = vpack.c.b16 %v3900, %v3892
        %v4789 = vpack.c.b16 %v3901, %v3893
        %v4790 = vpack.c.b16 %v3902, %v3894
        %v4791 = vpack.c.b16 %v3903, %v3895
        %v4792 = vpack.c.b16 %v3904, %v3896
        %v4793 = vpack.c.b16 %v3905, %v3897
        %v4794 = vpack.c.b16 %v3914, %v3906
        %v4795 = vpack.c.b16 %v3915, %v3907
        %v4796 = vpack.c.b16 %v3916, %v3908
        %v4797 = vpack.c.b16 %v3917, %v3909
        %v4798 = vpack.c.b16 %v3918, %v3910
        %v4799 = vpack.c.b16 %v3919, %v3911
        %v4800 = vpack.c.b16 %v3920, %v3912
        %v4801 = vpack.c.b16 %v3921, %v3913
        %v4802 = vpack.c.b16 %v3930, %v3922
        %v4803 = vpack.c.b16 %v3931, %v3923
        %v4804 = vpack.c.b16 %v3932, %v3924
        %v4805 = vpack.c.b16 %v3933, %v3925
        %v4806 = vpack.c.b16 %v3934, %v3926
        %v4807 = vpack.c.b16 %v3935, %v3927
        %v4808 = vpack.c.b16 %v3936, %v3928
        %v4809 = vpack.c.b16 %v3937, %v3929
        %v4810 = vpack.c.b16 %v3946, %v3938
        %v4811 = vpack.c.b16 %v3947, %v3939
        %v4812 = vpack.c.b16 %v3948, %v3940
        %v4813 = vpack.c.b16 %v3949, %v3941
        %v4814 = vpack.c.b16 %v3950, %v3942
        %v4815 = vpack.c.b16 %v3951, %v3943
        %v4816 = vpack.c.b16 %v3952, %v3944
        %v4817 = vpack.c.b16 %v3953, %v3945
        %v4818 = vpack.c.b16 %v3962, %v3954
        %v4819 = vpack.c.b16 %v3963, %v3955
        %v4820 = vpack.c.b16 %v3964, %v3956
        %v4821 = vpack.c.b16 %v3965, %v3957
        %v4822 = vpack.c.b16 %v3966, %v3958
        %v4823 = vpack.c.b16 %v3967, %v3959
        %v4824 = vpack.c.b16 %v3968, %v3960
        %v4825 = vpack.c.b16 %v3969, %v3961
        %v4826 = vpack.c.b16 %v3978, %v3970
        %v4827 = vpack.c.b16 %v3979, %v3971
        %v4828 = vpack.c.b16 %v3980, %v3972
        %v4829 = vpack.c.b16 %v3981, %v3973
        %v4830 = vpack.c.b16 %v3982, %v3974
        %v4831 = vpack.c.b16 %v3983, %v3975
        %v4832 = vpack.c.b16 %v3984, %v3976
        %v4833 = vpack.c.b16 %v3985, %v3977
        %v4834 = vpack.c.b16 %v3994, %v3986
        %v4835 = vpack.c.b16 %v3995, %v3987
        %v4836 = vpack.c.b16 %v3996, %v3988
        %v4837 = vpack.c.b16 %v3997, %v3989
        %v4838 = vpack.c.b16 %v3998, %v3990
        %v4839 = vpack.c.b16 %v3999, %v3991
        %v4840 = vpack.c.b16 %v4000, %v3992
        %v4841 = vpack.c.b16 %v4001, %v3993
        %v4842 = vpack.c.b16 %v4010, %v4002
        %v4843 = vpack.c.b16 %v4011, %v4003
        %v4844 = vpack.c.b16 %v4012, %v4004
        %v4845 = vpack.c.b16 %v4013, %v4005
        %v4846 = vpack.c.b16 %v4014, %v4006
        %v4847 = vpack.c.b16 %v4015, %v4007
        %v4848 = vpack.c.b16 %v4016, %v4008
        %v4849 = vpack.c.b16 %v4017, %v4009
        %v4850 = vpack.c.b16 %v4026, %v4018
        %v4851 = vpack.c.b16 %v4027, %v4019
        %v4852 = vpack.c.b16 %v4028, %v4020
        %v4853 = vpack.c.b16 %v4029, %v4021
        %v4854 = vpack.c.b16 %v4030, %v4022
        %v4855 = vpack.c.b16 %v4031, %v4023
        %v4856 = vpack.c.b16 %v4032, %v4024
        %v4857 = vpack.c.b16 %v4033, %v4025
        %v4858 = vpack.c.b16 %v4042, %v4034
        %v4859 = vpack.c.b16 %v4043, %v4035
        %v4860 = vpack.c.b16 %v4044, %v4036
        %v4861 = vpack.c.b16 %v4045, %v4037
        %v4862 = vpack.c.b16 %v4046, %v4038
        %v4863 = vpack.c.b16 %v4047, %v4039
        %v4864 = vpack.c.b16 %v4048, %v4040
        %v4865 = vpack.c.b16 %v4049, %v4041
        %v4866 = vpack.c.b16 %v4058, %v4050
        %v4867 = vpack.c.b16 %v4059, %v4051
        %v4868 = vpack.c.b16 %v4060, %v4052
        %v4869 = vpack.c.b16 %v4061, %v4053
        %v4870 = vpack.c.b16 %v4062, %v4054
        %v4871 = vpack.c.b16 %v4063, %v4055
        %v4872 = vpack.c.b16 %v4064, %v4056
        %v4873 = vpack.c.b16 %v4065, %v4057
        %v4874 = vpack.c.b16 %v4074, %v4066
        %v4875 = vpack.c.b16 %v4075, %v4067
        %v4876 = vpack.c.b16 %v4076, %v4068
        %v4877 = vpack.c.b16 %v4077, %v4069
        %v4878 = vpack.c.b16 %v4078, %v4070
        %v4879 = vpack.c.b16 %v4079, %v4071
        %v4880 = vpack.c.b16 %v4080, %v4072
        %v4881 = vpack.c.b16 %v4081, %v4073
        %v4882 = vpack.c.b16 %v4090, %v4082
        %v4883 = vpack.c.b16 %v4091, %v4083
        %v4884 = vpack.c.b16 %v4092, %v4084
        %v4885 = vpack.c.b16 %v4093, %v4085
        %v4886 = vpack.c.b16 %v4094, %v4086
        %v4887 = vpack.c.b16 %v4095, %v4087
        %v4888 = vpack.c.b16 %v4096, %v4088
        %v4889 = vpack.c.b16 %v4097, %v4089
        %v4890 = vpack.c.b16 %v4106, %v4098
        %v4891 = vpack.c.b16 %v4107, %v4099
        %v4892 = vpack.c.b16 %v4108, %v4100
        %v4893 = vpack.c.b16 %v4109, %v4101
        %v4894 = vpack.c.b16 %v4110, %v4102
        %v4895 = vpack.c.b16 %v4111, %v4103
        %v4896 = vpack.c.b16 %v4112, %v4104
        %v4897 = vpack.c.b16 %v4113, %v4105
        %v4898 = vpack.c.b16 %v4122, %v4114
        %v4899 = vpack.c.b16 %v4123, %v4115
        %v4900 = vpack.c.b16 %v4124, %v4116
        %v4901 = vpack.c.b16 %v4125, %v4117
        %v4902 = vpack.c.b16 %v4126, %v4118
        %v4903 = vpack.c.b16 %v4127, %v4119
        %v4904 = vpack.c.b16 %v4128, %v4120
        %v4905 = vpack.c.b16 %v4129, %v4121
        %v4906 = vpack.c.b16 %v4138, %v4130
        %v4907 = vpack.c.b16 %v4139, %v4131
        %v4908 = vpack.c.b16 %v4140, %v4132
        %v4909 = vpack.c.b16 %v4141, %v4133
        %v4910 = vpack.c.b16 %v4142, %v4134
        %v4911 = vpack.c.b16 %v4143, %v4135
        %v4912 = vpack.c.b16 %v4144, %v4136
        %v4913 = vpack.c.b16 %v4145, %v4137
        %v4914 = vpack.c.b16 %v4154, %v4146
        %v4915 = vpack.c.b16 %v4155, %v4147
        %v4916 = vpack.c.b16 %v4156, %v4148
        %v4917 = vpack.c.b16 %v4157, %v4149
        %v4918 = vpack.c.b16 %v4158, %v4150
        %v4919 = vpack.c.b16 %v4159, %v4151
        %v4920 = vpack.c.b16 %v4160, %v4152
        %v4921 = vpack.c.b16 %v4161, %v4153
        %v4922 = vpack.c.b16 %v4170, %v4162
        %v4923 = vpack.c.b16 %v4171, %v4163
        %v4924 = vpack.c.b16 %v4172, %v4164
        %v4925 = vpack.c.b16 %v4173, %v4165
        %v4926 = vpack.c.b16 %v4174, %v4166
        %v4927 = vpack.c.b16 %v4175, %v4167
        %v4928 = vpack.c.b16 %v4176, %v4168
        %v4929 = vpack.c.b16 %v4177, %v4169
        %v4930 = vpack.c.b16 %v4186, %v4178
        %v4931 = vpack.c.b16 %v4187, %v4179
        %v4932 = vpack.c.b16 %v4188, %v4180
        %v4933 = vpack.c.b16 %v4189, %v4181
        %v4934 = vpack.c.b16 %v4190, %v4182
        %v4935 = vpack.c.b16 %v4191, %v4183
        %v4936 = vpack.c.b16 %v4192, %v4184
        %v4937 = vpack.c.b16 %v4193, %v4185
        %v4938 = vpack.c.b16 %v4202, %v4194
        %v4939 = vpack.c.b16 %v4203, %v4195
        %v4940 = vpack.c.b16 %v4204, %v4196
        %v4941 = vpack.c.b16 %v4205, %v4197
        %v4942 = vpack.c.b16 %v4206, %v4198
        %v4943 = vpack.c.b16 %v4207, %v4199
        %v4944 = vpack.c.b16 %v4208, %v4200
        %v4945 = vpack.c.b16 %v4209, %v4201
        %v4946 = vpack.c.b16 %v4218, %v4210
        %v4947 = vpack.c.b16 %v4219, %v4211
        %v4948 = vpack.c.b16 %v4220, %v4212
        %v4949 = vpack.c.b16 %v4221, %v4213
        %v4950 = vpack.c.b16 %v4222, %v4214
        %v4951 = vpack.c.b16 %v4223, %v4215
        %v4952 = vpack.c.b16 %v4224, %v4216
        %v4953 = vpack.c.b16 %v4225, %v4217
        %v4954 = vpack.c.b16 %v4234, %v4226
        %v4955 = vpack.c.b16 %v4235, %v4227
        %v4956 = vpack.c.b16 %v4236, %v4228
        %v4957 = vpack.c.b16 %v4237, %v4229
        %v4958 = vpack.c.b16 %v4238, %v4230
        %v4959 = vpack.c.b16 %v4239, %v4231
        %v4960 = vpack.c.b16 %v4240, %v4232
        %v4961 = vpack.c.b16 %v4241, %v4233
        %v4962 = vpack.c.b16 %v4250, %v4242
        %v4963 = vpack.c.b16 %v4251, %v4243
        %v4964 = vpack.c.b16 %v4252, %v4244
        %v4965 = vpack.c.b16 %v4253, %v4245
        %v4966 = vpack.c.b16 %v4254, %v4246
        %v4967 = vpack.c.b16 %v4255, %v4247
        %v4968 = vpack.c.b16 %v4256, %v4248
        %v4969 = vpack.c.b16 %v4257, %v4249
        %v4970 = vpack.c.b16 %v4266, %v4258
        %v4971 = vpack.c.b16 %v4267, %v4259
        %v4972 = vpack.c.b16 %v4268, %v4260
        %v4973 = vpack.c.b16 %v4269, %v4261
        %v4974 = vpack.c.b16 %v4270, %v4262
        %v4975 = vpack.c.b16 %v4271, %v4263
        %v4976 = vpack.c.b16 %v4272, %v4264
        %v4977 = vpack.c.b16 %v4273, %v4265
        %v4978 = vpack.c.b16 %v4282, %v4274
        %v4979 = vpack.c.b16 %v4283, %v4275
        %v4980 = vpack.c.b16 %v4284, %v4276
        %v4981 = vpack.c.b16 %v4285, %v4277
        %v4982 = vpack.c.b16 %v4286, %v4278
        %v4983 = vpack.c.b16 %v4287, %v4279
        %v4984 = vpack.c.b16 %v4288, %v4280
        %v4985 = vpack.c.b16 %v4289, %v4281
        %v4986 = vpack.c.b16 %v4298, %v4290
        %v4987 = vpack.c.b16 %v4299, %v4291
        %v4988 = vpack.c.b16 %v4300, %v4292
        %v4989 = vpack.c.b16 %v4301, %v4293
        %v4990 = vpack.c.b16 %v4302, %v4294
        %v4991 = vpack.c.b16 %v4303, %v4295
        %v4992 = vpack.c.b16 %v4304, %v4296
        %v4993 = vpack.c.b16 %v4305, %v4297
        %v4994 = vpack.c.b16 %v4314, %v4306
        %v4995 = vpack.c.b16 %v4315, %v4307
        %v4996 = vpack.c.b16 %v4316, %v4308
        %v4997 = vpack.c.b16 %v4317, %v4309
        %v4998 = vpack.c.b16 %v4318, %v4310
        %v4999 = vpack.c.b16 %v4319, %v4311
        %v5000 = vpack.c.b16 %v4320, %v4312
        %v5001 = vpack.c.b16 %v4321, %v4313
        %v5002 = vpack.c.b16 %v4330, %v4322
        %v5003 = vpack.c.b16 %v4331, %v4323
        %v5004 = vpack.c.b16 %v4332, %v4324
        %v5005 = vpack.c.b16 %v4333, %v4325
        %v5006 = vpack.c.b16 %v4334, %v4326
        %v5007 = vpack.c.b16 %v4335, %v4327
        %v5008 = vpack.c.b16 %v4336, %v4328
        %v5009 = vpack.c.b16 %v4337, %v4329
        %v5010 = vpack.c.b16 %v4346, %v4338
        %v5011 = vpack.c.b16 %v4347, %v4339
        %v5012 = vpack.c.b16 %v4348, %v4340
        %v5013 = vpack.c.b16 %v4349, %v4341
        %v5014 = vpack.c.b16 %v4350, %v4342
        %v5015 = vpack.c.b16 %v4351, %v4343
        %v5016 = vpack.c.b16 %v4352, %v4344
        %v5017 = vpack.c.b16 %v4353, %v4345
        %v5018 = vpack.c.b16 %v4362, %v4354
        %v5019 = vpack.c.b16 %v4363, %v4355
        %v5020 = vpack.c.b16 %v4364, %v4356
        %v5021 = vpack.c.b16 %v4365, %v4357
        %v5022 = vpack.c.b16 %v4366, %v4358
        %v5023 = vpack.c.b16 %v4367, %v4359
        %v5024 = vpack.c.b16 %v4368, %v4360
        %v5025 = vpack.c.b16 %v4369, %v4361
        %v5026 = vpack.c.b16 %v4378, %v4370
        %v5027 = vpack.c.b16 %v4379, %v4371
        %v5028 = vpack.c.b16 %v4380, %v4372
        %v5029 = vpack.c.b16 %v4381, %v4373
        %v5030 = vpack.c.b16 %v4382, %v4374
        %v5031 = vpack.c.b16 %v4383, %v4375
        %v5032 = vpack.c.b16 %v4384, %v4376
        %v5033 = vpack.c.b16 %v4385, %v4377
        %v5034 = vpack.c.b16 %v4394, %v4386
        %v5035 = vpack.c.b16 %v4395, %v4387
        %v5036 = vpack.c.b16 %v4396, %v4388
        %v5037 = vpack.c.b16 %v4397, %v4389
        %v5038 = vpack.c.b16 %v4398, %v4390
        %v5039 = vpack.c.b16 %v4399, %v4391
        %v5040 = vpack.c.b16 %v4400, %v4392
        %v5041 = vpack.c.b16 %v4401, %v4393
        %v5042 = vpack.c.b16 %v4410, %v4402
        %v5043 = vpack.c.b16 %v4411, %v4403
        %v5044 = vpack.c.b16 %v4412, %v4404
        %v5045 = vpack.c.b16 %v4413, %v4405
        %v5046 = vpack.c.b16 %v4414, %v4406
        %v5047 = vpack.c.b16 %v4415, %v4407
        %v5048 = vpack.c.b16 %v4416, %v4408
        %v5049 = vpack.c.b16 %v4417, %v4409
        %v5050 = vpack.c.b16 %v4426, %v4418
        %v5051 = vpack.c.b16 %v4427, %v4419
        %v5052 = vpack.c.b16 %v4428, %v4420
        %v5053 = vpack.c.b16 %v4429, %v4421
        %v5054 = vpack.c.b16 %v4430, %v4422
        %v5055 = vpack.c.b16 %v4431, %v4423
        %v5056 = vpack.c.b16 %v4432, %v4424
        %v5057 = vpack.c.b16 %v4433, %v4425
        %v5058 = vpack.c.b16 %v4442, %v4434
        %v5059 = vpack.c.b16 %v4443, %v4435
        %v5060 = vpack.c.b16 %v4444, %v4436
        %v5061 = vpack.c.b16 %v4445, %v4437
        %v5062 = vpack.c.b16 %v4446, %v4438
        %v5063 = vpack.c.b16 %v4447, %v4439
        %v5064 = vpack.c.b16 %v4448, %v4440
        %v5065 = vpack.c.b16 %v4449, %v4441
        %v5066 = vpack.c.b16 %v4458, %v4450
        %v5067 = vpack.c.b16 %v4459, %v4451
        %v5068 = vpack.c.b16 %v4460, %v4452
        %v5069 = vpack.c.b16 %v4461, %v4453
        %v5070 = vpack.c.b16 %v4462, %v4454
        %v5071 = vpack.c.b16 %v4463, %v4455
        %v5072 = vpack.c.b16 %v4464, %v4456
        %v5073 = vpack.c.b16 %v4465, %v4457
        %v5074 = vpack.c.b16 %v4474, %v4466
        %v5075 = vpack.c.b16 %v4475, %v4467
        %v5076 = vpack.c.b16 %v4476, %v4468
        %v5077 = vpack.c.b16 %v4477, %v4469
        %v5078 = vpack.c.b16 %v4478, %v4470
        %v5079 = vpack.c.b16 %v4479, %v4471
        %v5080 = vpack.c.b16 %v4480, %v4472
        %v5081 = vpack.c.b16 %v4481, %v4473
        %v5082 = vpack.c.b16 %v4490, %v4482
        %v5083 = vpack.c.b16 %v4491, %v4483
        %v5084 = vpack.c.b16 %v4492, %v4484
        %v5085 = vpack.c.b16 %v4493, %v4485
        %v5086 = vpack.c.b16 %v4494, %v4486
        %v5087 = vpack.c.b16 %v4495, %v4487
        %v5088 = vpack.c.b16 %v4496, %v4488
        %v5089 = vpack.c.b16 %v4497, %v4489
        %v5090 = vpack.c.b16 %v4506, %v4498
        %v5091 = vpack.c.b16 %v4507, %v4499
        %v5092 = vpack.c.b16 %v4508, %v4500
        %v5093 = vpack.c.b16 %v4509, %v4501
        %v5094 = vpack.c.b16 %v4510, %v4502
        %v5095 = vpack.c.b16 %v4511, %v4503
        %v5096 = vpack.c.b16 %v4512, %v4504
        %v5097 = vpack.c.b16 %v4513, %v4505
        %v5098 = vpack.c.b16 %v4522, %v4514
        %v5099 = vpack.c.b16 %v4523, %v4515
        %v5100 = vpack.c.b16 %v4524, %v4516
        %v5101 = vpack.c.b16 %v4525, %v4517
        %v5102 = vpack.c.b16 %v4526, %v4518
        %v5103 = vpack.c.b16 %v4527, %v4519
        %v5104 = vpack.c.b16 %v4528, %v4520
        %v5105 = vpack.c.b16 %v4529, %v4521
        %v5106 = vpack.c.b16 %v4538, %v4530
        %v5107 = vpack.c.b16 %v4539, %v4531
        %v5108 = vpack.c.b16 %v4540, %v4532
        %v5109 = vpack.c.b16 %v4541, %v4533
        %v5110 = vpack.c.b16 %v4542, %v4534
        %v5111 = vpack.c.b16 %v4543, %v4535
        %v5112 = vpack.c.b16 %v4544, %v4536
        %v5113 = vpack.c.b16 %v4545, %v4537
        %v5114 = vpack.c.b16 %v4554, %v4546
        %v5115 = vpack.c.b16 %v4555, %v4547
        %v5116 = vpack.c.b16 %v4556, %v4548
        %v5117 = vpack.c.b16 %v4557, %v4549
        %v5118 = vpack.c.b16 %v4558, %v4550
        %v5119 = vpack.c.b16 %v4559, %v4551
        %v5120 = vpack.c.b16 %v4560, %v4552
        %v5121 = vpack.c.b16 %v4561, %v4553
        %v5122 = vpack.c.b16 %v4570, %v4562
        %v5123 = vpack.c.b16 %v4571, %v4563
        %v5124 = vpack.c.b16 %v4572, %v4564
        %v5125 = vpack.c.b16 %v4573, %v4565
        %v5126 = vpack.c.b16 %v4574, %v4566
        %v5127 = vpack.c.b16 %v4575, %v4567
        %v5128 = vpack.c.b16 %v4576, %v4568
        %v5129 = vpack.c.b16 %v4577, %v4569
        %v5130 = vpack.c.b16 %v4586, %v4578
        %v5131 = vpack.c.b16 %v4587, %v4579
        %v5132 = vpack.c.b16 %v4588, %v4580
        %v5133 = vpack.c.b16 %v4589, %v4581
        %v5134 = vpack.c.b16 %v4590, %v4582
        %v5135 = vpack.c.b16 %v4591, %v4583
        %v5136 = vpack.c.b16 %v4592, %v4584
        %v5137 = vpack.c.b16 %v4593, %v4585
        %v5138 = vpack.c.b16 %v4602, %v4594
        %v5139 = vpack.c.b16 %v4603, %v4595
        %v5140 = vpack.c.b16 %v4604, %v4596
        %v5141 = vpack.c.b16 %v4605, %v4597
        %v5142 = vpack.c.b16 %v4606, %v4598
        %v5143 = vpack.c.b16 %v4607, %v4599
        %v5144 = vpack.c.b16 %v4608, %v4600
        %v5145 = vpack.c.b16 %v4609, %v4601
        %v5146 = vpack.c.b16 %v4618, %v4610
        %v5147 = vpack.c.b16 %v4619, %v4611
        %v5148 = vpack.c.b16 %v4620, %v4612
        %v5149 = vpack.c.b16 %v4621, %v4613
        %v5150 = vpack.c.b16 %v4622, %v4614
        %v5151 = vpack.c.b16 %v4623, %v4615
        %v5152 = vpack.c.b16 %v4624, %v4616
        %v5153 = vpack.c.b16 %v4625, %v4617
        %v5154 = vpack.c.b16 %v4634, %v4626
        %v5155 = vpack.c.b16 %v4635, %v4627
        %v5156 = vpack.c.b16 %v4636, %v4628
        %v5157 = vpack.c.b16 %v4637, %v4629
        %v5158 = vpack.c.b16 %v4638, %v4630
        %v5159 = vpack.c.b16 %v4639, %v4631
        %v5160 = vpack.c.b16 %v4640, %v4632
        %v5161 = vpack.c.b16 %v4641, %v4633
        %v5162 = vpack.c.b16 %v4650, %v4642
        %v5163 = vpack.c.b16 %v4651, %v4643
        %v5164 = vpack.c.b16 %v4652, %v4644
        %v5165 = vpack.c.b16 %v4653, %v4645
        %v5166 = vpack.c.b16 %v4654, %v4646
        %v5167 = vpack.c.b16 %v4655, %v4647
        %v5168 = vpack.c.b16 %v4656, %v4648
        %v5169 = vpack.c.b16 %v4657, %v4649
        %5682 = vmatprep.subr.bf16.mxu0 %v4715
        %5683 = vmatpush1.bf16.msra.mxu0 %v4714
        %5684 = vmatprep.subr.bf16.mxu0 %v4707
        %5685 = vmatpush1.bf16.msra.mxu0 %v4706
        %5686 = vmatprep.subr.bf16.mxu0 %v4699
        %5687 = vmatpush1.bf16.msra.mxu0 %v4698
        %5688 = vmatprep.subr.bf16.mxu0 %v4691
        %5689 = vmatpush1.bf16.msra.mxu0 %v4690
        %5690 = vmatprep.subr.bf16.mxu0 %v4683
        %5691 = vmatpush1.bf16.msra.mxu0 %v4682
        %5692 = vmatprep.subr.bf16.mxu0 %v4675
        %5693 = vmatpush1.bf16.msra.mxu0 %v4674
        %5694 = vmatprep.subr.bf16.mxu0 %v4667
        %5695 = vmatpush1.bf16.msra.mxu0 %v4666
        %5696 = vmatprep.subr.bf16.mxu0 %v4659
        %5697 = vmatpush1.bf16.msra.mxu0 %v4658
        %5698 = vmatprep.subr.bf16.mxu0 %v4779
        %5699 = vmatpush2.bf16.msra.mxu0 %v4778
        %5700 = vmatprep.subr.bf16.mxu0 %v4771
        %5701 = vmatpush2.bf16.msra.mxu0 %v4770
        %5702 = vmatprep.subr.bf16.mxu0 %v4763
        %5703 = vmatpush2.bf16.msra.mxu0 %v4762
        %5704 = vmatprep.subr.bf16.mxu0 %v4755
        %5705 = vmatpush2.bf16.msra.mxu0 %v4754
        %5706 = vmatprep.subr.bf16.mxu0 %v4747
        %5707 = vmatpush2.bf16.msra.mxu0 %v4746
        %5708 = vmatprep.subr.bf16.mxu0 %v4739
        %5709 = vmatpush2.bf16.msra.mxu0 %v4738
        %5710 = vmatprep.subr.bf16.mxu0 %v4731
        %5711 = vmatpush2.bf16.msra.mxu0 %v4730
        %5712 = vmatprep.subr.bf16.mxu0 %v4723
        %5713 = vmatpush2.bf16.msra.mxu0 %v4722
        %5714 = vmatprep.mubr.bf16.mxu0 %v2561
        %5715 = vmatmul.mubr.bf16.gmra.mxu0 %v2560
        %v5716 = vpop.f32.mrf.mxu0
        %v5717 = vadd.f32 %v3085, %v5716
        %v5718 = vpop.f32.mrf.mxu0
        %v5719 = vadd.f32 %v3089, %v5718
        %v5720 = vpop.f32.mrf.mxu0
        %v5721 = vpop.f32.mrf.mxu0
        %5722 = vdwg.mxu0
        %5723 = vmatprep.subr.bf16.mxu0 %v4843
        %5724 = vmatpush1.bf16.msra.mxu0 %v4842
        %5725 = vmatprep.subr.bf16.mxu0 %v4835
        %5726 = vmatpush1.bf16.msra.mxu0 %v4834
        %5727 = vmatprep.subr.bf16.mxu0 %v4827
        %5728 = vmatpush1.bf16.msra.mxu0 %v4826
        %5729 = vmatprep.subr.bf16.mxu0 %v4819
        %5730 = vmatpush1.bf16.msra.mxu0 %v4818
        %5731 = vmatprep.subr.bf16.mxu0 %v4811
        %5732 = vmatpush1.bf16.msra.mxu0 %v4810
        %5733 = vmatprep.subr.bf16.mxu0 %v4803
        %5734 = vmatpush1.bf16.msra.mxu0 %v4802
        %5735 = vmatprep.subr.bf16.mxu0 %v4795
        %5736 = vmatpush1.bf16.msra.mxu0 %v4794
        %5737 = vmatprep.subr.bf16.mxu0 %v4787
        %5738 = vmatpush1.bf16.msra.mxu0 %v4786
        %5739 = vmatprep.subr.bf16.mxu0 %v4907
        %5740 = vmatpush2.bf16.msra.mxu0 %v4906
        %5741 = vmatprep.subr.bf16.mxu0 %v4899
        %5742 = vmatpush2.bf16.msra.mxu0 %v4898
        %5743 = vmatprep.subr.bf16.mxu0 %v4891
        %5744 = vmatpush2.bf16.msra.mxu0 %v4890
        %5745 = vmatprep.subr.bf16.mxu0 %v4883
        %5746 = vmatpush2.bf16.msra.mxu0 %v4882
        %5747 = vmatprep.subr.bf16.mxu0 %v4875
        %5748 = vmatpush2.bf16.msra.mxu0 %v4874
        %5749 = vmatprep.subr.bf16.mxu0 %v4867
        %5750 = vmatpush2.bf16.msra.mxu0 %v4866
        %5751 = vmatprep.subr.bf16.mxu0 %v4859
        %5752 = vmatpush2.bf16.msra.mxu0 %v4858
        %5753 = vmatprep.subr.bf16.mxu0 %v4851
        %5754 = vmatpush2.bf16.msra.mxu0 %v4850
        %5755 = vmatprep.mubr.bf16.mxu0 %v2563
        %5756 = vmatmul.mubr.bf16.gmra.mxu0 %v2562
        %v5757 = vpop.f32.mrf.mxu0
        %v5758 = vadd.f32 %v5717, %v5757
        %v5759 = vpop.f32.mrf.mxu0
        %v5760 = vadd.f32 %v5719, %v5759
        %v5761 = vpop.f32.mrf.mxu0
        %v5762 = vpop.f32.mrf.mxu0
        %5763 = vdwg.mxu0
        %5764 = vmatprep.subr.bf16.mxu0 %v4971
        %5765 = vmatpush1.bf16.msra.mxu0 %v4970
        %5766 = vmatprep.subr.bf16.mxu0 %v4963
        %5767 = vmatpush1.bf16.msra.mxu0 %v4962
        %5768 = vmatprep.subr.bf16.mxu0 %v4955
        %5769 = vmatpush1.bf16.msra.mxu0 %v4954
        %5770 = vmatprep.subr.bf16.mxu0 %v4947
        %5771 = vmatpush1.bf16.msra.mxu0 %v4946
        %5772 = vmatprep.subr.bf16.mxu0 %v4939
        %5773 = vmatpush1.bf16.msra.mxu0 %v4938
        %5774 = vmatprep.subr.bf16.mxu0 %v4931
        %5775 = vmatpush1.bf16.msra.mxu0 %v4930
        %5776 = vmatprep.subr.bf16.mxu0 %v4923
        %5777 = vmatpush1.bf16.msra.mxu0 %v4922
        %5778 = vmatprep.subr.bf16.mxu0 %v4915
        %5779 = vmatpush1.bf16.msra.mxu0 %v4914
        %5780 = vmatprep.subr.bf16.mxu0 %v5035
        %5781 = vmatpush2.bf16.msra.mxu0 %v5034
        %5782 = vmatprep.subr.bf16.mxu0 %v5027
        %5783 = vmatpush2.bf16.msra.mxu0 %v5026
        %5784 = vmatprep.subr.bf16.mxu0 %v5019
        %5785 = vmatpush2.bf16.msra.mxu0 %v5018
        %5786 = vmatprep.subr.bf16.mxu0 %v5011
        %5787 = vmatpush2.bf16.msra.mxu0 %v5010
        %5788 = vmatprep.subr.bf16.mxu0 %v5003
        %5789 = vmatpush2.bf16.msra.mxu0 %v5002
        %5790 = vmatprep.subr.bf16.mxu0 %v4995
        %5791 = vmatpush2.bf16.msra.mxu0 %v4994
        %5792 = vmatprep.subr.bf16.mxu0 %v4987
        %5793 = vmatpush2.bf16.msra.mxu0 %v4986
        %5794 = vmatprep.subr.bf16.mxu0 %v4979
        %5795 = vmatpush2.bf16.msra.mxu0 %v4978
        %5796 = vmatprep.mubr.bf16.mxu0 %v2565
        %5797 = vmatmul.mubr.bf16.gmra.mxu0 %v2564
        %v5798 = vpop.f32.mrf.mxu0
        %v5799 = vadd.f32 %v5758, %v5798
        %v5800 = vpop.f32.mrf.mxu0
        %v5801 = vadd.f32 %v5760, %v5800
        %v5802 = vpop.f32.mrf.mxu0
        %v5803 = vpop.f32.mrf.mxu0
        %5804 = vdwg.mxu0
        %5805 = vmatprep.subr.bf16.mxu0 %v5099
        %5806 = vmatpush1.bf16.msra.mxu0 %v5098
        %5807 = vmatprep.subr.bf16.mxu0 %v5091
        %5808 = vmatpush1.bf16.msra.mxu0 %v5090
        %5809 = vmatprep.subr.bf16.mxu0 %v5083
        %5810 = vmatpush1.bf16.msra.mxu0 %v5082
        %5811 = vmatprep.subr.bf16.mxu0 %v5075
        %5812 = vmatpush1.bf16.msra.mxu0 %v5074
        %5813 = vmatprep.subr.bf16.mxu0 %v5067
        %5814 = vmatpush1.bf16.msra.mxu0 %v5066
        %5815 = vmatprep.subr.bf16.mxu0 %v5059
        %5816 = vmatpush1.bf16.msra.mxu0 %v5058
        %5817 = vmatprep.subr.bf16.mxu0 %v5051
        %5818 = vmatpush1.bf16.msra.mxu0 %v5050
        %5819 = vmatprep.subr.bf16.mxu0 %v5043
        %5820 = vmatpush1.bf16.msra.mxu0 %v5042
        %5821 = vmatprep.subr.bf16.mxu0 %v5163
        %5822 = vmatpush2.bf16.msra.mxu0 %v5162
        %5823 = vmatprep.subr.bf16.mxu0 %v5155
        %5824 = vmatpush2.bf16.msra.mxu0 %v5154
        %5825 = vmatprep.subr.bf16.mxu0 %v5147
        %5826 = vmatpush2.bf16.msra.mxu0 %v5146
        %5827 = vmatprep.subr.bf16.mxu0 %v5139
        %5828 = vmatpush2.bf16.msra.mxu0 %v5138
        %5829 = vmatprep.subr.bf16.mxu0 %v5131
        %5830 = vmatpush2.bf16.msra.mxu0 %v5130
        %5831 = vmatprep.subr.bf16.mxu0 %v5123
        %5832 = vmatpush2.bf16.msra.mxu0 %v5122
        %5833 = vmatprep.subr.bf16.mxu0 %v5115
        %5834 = vmatpush2.bf16.msra.mxu0 %v5114
        %5835 = vmatprep.subr.bf16.mxu0 %v5107
        %5836 = vmatpush2.bf16.msra.mxu0 %v5106
        %5837 = vmatprep.mubr.bf16.mxu0 %v2567
        %5838 = vmatmul.mubr.bf16.gmra.mxu0 %v2566
        %v5839 = vpop.f32.mrf.mxu0
        %v5840 = vadd.f32 %v5799, %v5839
        %v5841 = vpop.f32.mrf.mxu0
        %v5842 = vadd.f32 %v5801, %v5841
        %v5843 = vpop.f32.mrf.mxu0
        %v5844 = vpop.f32.mrf.mxu0
        %5845 = vdwg.mxu0
        %5846 = vmatprep.subr.bf16.mxu0 %v4717
        %5847 = vmatpush1.bf16.msra.mxu0 %v4716
        %5848 = vmatprep.subr.bf16.mxu0 %v4709
        %5849 = vmatpush1.bf16.msra.mxu0 %v4708
        %5850 = vmatprep.subr.bf16.mxu0 %v4701
        %5851 = vmatpush1.bf16.msra.mxu0 %v4700
        %5852 = vmatprep.subr.bf16.mxu0 %v4693
        %5853 = vmatpush1.bf16.msra.mxu0 %v4692
        %5854 = vmatprep.subr.bf16.mxu0 %v4685
        %5855 = vmatpush1.bf16.msra.mxu0 %v4684
        %5856 = vmatprep.subr.bf16.mxu0 %v4677
        %5857 = vmatpush1.bf16.msra.mxu0 %v4676
        %5858 = vmatprep.subr.bf16.mxu0 %v4669
        %5859 = vmatpush1.bf16.msra.mxu0 %v4668
        %5860 = vmatprep.subr.bf16.mxu0 %v4661
        %5861 = vmatpush1.bf16.msra.mxu0 %v4660
        %5862 = vmatprep.subr.bf16.mxu0 %v4781
        %5863 = vmatpush2.bf16.msra.mxu0 %v4780
        %5864 = vmatprep.subr.bf16.mxu0 %v4773
        %5865 = vmatpush2.bf16.msra.mxu0 %v4772
        %5866 = vmatprep.subr.bf16.mxu0 %v4765
        %5867 = vmatpush2.bf16.msra.mxu0 %v4764
        %5868 = vmatprep.subr.bf16.mxu0 %v4757
        %5869 = vmatpush2.bf16.msra.mxu0 %v4756
        %5870 = vmatprep.subr.bf16.mxu0 %v4749
        %5871 = vmatpush2.bf16.msra.mxu0 %v4748
        %5872 = vmatprep.subr.bf16.mxu0 %v4741
        %5873 = vmatpush2.bf16.msra.mxu0 %v4740
        %5874 = vmatprep.subr.bf16.mxu0 %v4733
        %5875 = vmatpush2.bf16.msra.mxu0 %v4732
        %5876 = vmatprep.subr.bf16.mxu0 %v4725
        %5877 = vmatpush2.bf16.msra.mxu0 %v4724
        %5878 = vmatprep.mubr.bf16.mxu0 %v2561
        %5879 = vmatmul.mubr.bf16.gmra.mxu0 %v2560
        %v5880 = vpop.f32.mrf.mxu0
        %v5881 = vadd.f32 %v3093, %v5880
        %v5882 = vpop.f32.mrf.mxu0
        %v5883 = vadd.f32 %v3097, %v5882
        %v5884 = vpop.f32.mrf.mxu0
        %v5885 = vpop.f32.mrf.mxu0
        %5886 = vdwg.mxu0
        %5887 = vmatprep.subr.bf16.mxu0 %v4845
        %5888 = vmatpush1.bf16.msra.mxu0 %v4844
        %5889 = vmatprep.subr.bf16.mxu0 %v4837
        %5890 = vmatpush1.bf16.msra.mxu0 %v4836
        %5891 = vmatprep.subr.bf16.mxu0 %v4829
        %5892 = vmatpush1.bf16.msra.mxu0 %v4828
        %5893 = vmatprep.subr.bf16.mxu0 %v4821
        %5894 = vmatpush1.bf16.msra.mxu0 %v4820
        %5895 = vmatprep.subr.bf16.mxu0 %v4813
        %5896 = vmatpush1.bf16.msra.mxu0 %v4812
        %5897 = vmatprep.subr.bf16.mxu0 %v4805
        %5898 = vmatpush1.bf16.msra.mxu0 %v4804
        %5899 = vmatprep.subr.bf16.mxu0 %v4797
        %5900 = vmatpush1.bf16.msra.mxu0 %v4796
        %5901 = vmatprep.subr.bf16.mxu0 %v4789
        %5902 = vmatpush1.bf16.msra.mxu0 %v4788
        %5903 = vmatprep.subr.bf16.mxu0 %v4909
        %5904 = vmatpush2.bf16.msra.mxu0 %v4908
        %5905 = vmatprep.subr.bf16.mxu0 %v4901
        %5906 = vmatpush2.bf16.msra.mxu0 %v4900
        %5907 = vmatprep.subr.bf16.mxu0 %v4893
        %5908 = vmatpush2.bf16.msra.mxu0 %v4892
        %5909 = vmatprep.subr.bf16.mxu0 %v4885
        %5910 = vmatpush2.bf16.msra.mxu0 %v4884
        %5911 = vmatprep.subr.bf16.mxu0 %v4877
        %5912 = vmatpush2.bf16.msra.mxu0 %v4876
        %5913 = vmatprep.subr.bf16.mxu0 %v4869
        %5914 = vmatpush2.bf16.msra.mxu0 %v4868
        %5915 = vmatprep.subr.bf16.mxu0 %v4861
        %5916 = vmatpush2.bf16.msra.mxu0 %v4860
        %5917 = vmatprep.subr.bf16.mxu0 %v4853
        %5918 = vmatpush2.bf16.msra.mxu0 %v4852
        %5919 = vmatprep.mubr.bf16.mxu0 %v2563
        %5920 = vmatmul.mubr.bf16.gmra.mxu0 %v2562
        %v5921 = vpop.f32.mrf.mxu0
        %v5922 = vadd.f32 %v5881, %v5921
        %v5923 = vpop.f32.mrf.mxu0
        %v5924 = vadd.f32 %v5883, %v5923
        %v5925 = vpop.f32.mrf.mxu0
        %v5926 = vpop.f32.mrf.mxu0
        %5927 = vdwg.mxu0
        %5928 = vmatprep.subr.bf16.mxu0 %v4973
        %5929 = vmatpush1.bf16.msra.mxu0 %v4972
        %5930 = vmatprep.subr.bf16.mxu0 %v4965
        %5931 = vmatpush1.bf16.msra.mxu0 %v4964
        %5932 = vmatprep.subr.bf16.mxu0 %v4957
        %5933 = vmatpush1.bf16.msra.mxu0 %v4956
        %5934 = vmatprep.subr.bf16.mxu0 %v4949
        %5935 = vmatpush1.bf16.msra.mxu0 %v4948
        %5936 = vmatprep.subr.bf16.mxu0 %v4941
        %5937 = vmatpush1.bf16.msra.mxu0 %v4940
        %5938 = vmatprep.subr.bf16.mxu0 %v4933
        %5939 = vmatpush1.bf16.msra.mxu0 %v4932
        %5940 = vmatprep.subr.bf16.mxu0 %v4925
        %5941 = vmatpush1.bf16.msra.mxu0 %v4924
        %5942 = vmatprep.subr.bf16.mxu0 %v4917
        %5943 = vmatpush1.bf16.msra.mxu0 %v4916
        %5944 = vmatprep.subr.bf16.mxu0 %v5037
        %5945 = vmatpush2.bf16.msra.mxu0 %v5036
        %5946 = vmatprep.subr.bf16.mxu0 %v5029
        %5947 = vmatpush2.bf16.msra.mxu0 %v5028
        %5948 = vmatprep.subr.bf16.mxu0 %v5021
        %5949 = vmatpush2.bf16.msra.mxu0 %v5020
        %5950 = vmatprep.subr.bf16.mxu0 %v5013
        %5951 = vmatpush2.bf16.msra.mxu0 %v5012
        %5952 = vmatprep.subr.bf16.mxu0 %v5005
        %5953 = vmatpush2.bf16.msra.mxu0 %v5004
        %5954 = vmatprep.subr.bf16.mxu0 %v4997
        %5955 = vmatpush2.bf16.msra.mxu0 %v4996
        %5956 = vmatprep.subr.bf16.mxu0 %v4989
        %5957 = vmatpush2.bf16.msra.mxu0 %v4988
        %5958 = vmatprep.subr.bf16.mxu0 %v4981
        %5959 = vmatpush2.bf16.msra.mxu0 %v4980
        %5960 = vmatprep.mubr.bf16.mxu0 %v2565
        %5961 = vmatmul.mubr.bf16.gmra.mxu0 %v2564
        %v5962 = vpop.f32.mrf.mxu0
        %v5963 = vadd.f32 %v5922, %v5962
        %v5964 = vpop.f32.mrf.mxu0
        %v5965 = vadd.f32 %v5924, %v5964
        %v5966 = vpop.f32.mrf.mxu0
        %v5967 = vpop.f32.mrf.mxu0
        %5968 = vdwg.mxu0
        %5969 = vmatprep.subr.bf16.mxu0 %v5101
        %5970 = vmatpush1.bf16.msra.mxu0 %v5100
        %5971 = vmatprep.subr.bf16.mxu0 %v5093
        %5972 = vmatpush1.bf16.msra.mxu0 %v5092
        %5973 = vmatprep.subr.bf16.mxu0 %v5085
        %5974 = vmatpush1.bf16.msra.mxu0 %v5084
        %5975 = vmatprep.subr.bf16.mxu0 %v5077
        %5976 = vmatpush1.bf16.msra.mxu0 %v5076
        %5977 = vmatprep.subr.bf16.mxu0 %v5069
        %5978 = vmatpush1.bf16.msra.mxu0 %v5068
        %5979 = vmatprep.subr.bf16.mxu0 %v5061
        %5980 = vmatpush1.bf16.msra.mxu0 %v5060
        %5981 = vmatprep.subr.bf16.mxu0 %v5053
        %5982 = vmatpush1.bf16.msra.mxu0 %v5052
        %5983 = vmatprep.subr.bf16.mxu0 %v5045
        %5984 = vmatpush1.bf16.msra.mxu0 %v5044
        %5985 = vmatprep.subr.bf16.mxu0 %v5165
        %5986 = vmatpush2.bf16.msra.mxu0 %v5164
        %5987 = vmatprep.subr.bf16.mxu0 %v5157
        %5988 = vmatpush2.bf16.msra.mxu0 %v5156
        %5989 = vmatprep.subr.bf16.mxu0 %v5149
        %5990 = vmatpush2.bf16.msra.mxu0 %v5148
        %5991 = vmatprep.subr.bf16.mxu0 %v5141
        %5992 = vmatpush2.bf16.msra.mxu0 %v5140
        %5993 = vmatprep.subr.bf16.mxu0 %v5133
        %5994 = vmatpush2.bf16.msra.mxu0 %v5132
        %5995 = vmatprep.subr.bf16.mxu0 %v5125
        %5996 = vmatpush2.bf16.msra.mxu0 %v5124
        %5997 = vmatprep.subr.bf16.mxu0 %v5117
        %5998 = vmatpush2.bf16.msra.mxu0 %v5116
        %5999 = vmatprep.subr.bf16.mxu0 %v5109
        %6000 = vmatpush2.bf16.msra.mxu0 %v5108
        %6001 = vmatprep.mubr.bf16.mxu0 %v2567
        %6002 = vmatmul.mubr.bf16.gmra.mxu0 %v2566
        %v6003 = vpop.f32.mrf.mxu0
        %v6004 = vadd.f32 %v5963, %v6003
        %v6005 = vpop.f32.mrf.mxu0
        %v6006 = vadd.f32 %v5965, %v6005
        %v6007 = vpop.f32.mrf.mxu0
        %v6008 = vpop.f32.mrf.mxu0
        %6009 = vdwg.mxu0
        %6010 = vmatprep.subr.bf16.mxu0 %v4719
        %6011 = vmatpush1.bf16.msra.mxu0 %v4718
        %6012 = vmatprep.subr.bf16.mxu0 %v4711
        %6013 = vmatpush1.bf16.msra.mxu0 %v4710
        %6014 = vmatprep.subr.bf16.mxu0 %v4703
        %6015 = vmatpush1.bf16.msra.mxu0 %v4702
        %6016 = vmatprep.subr.bf16.mxu0 %v4695
        %6017 = vmatpush1.bf16.msra.mxu0 %v4694
        %6018 = vmatprep.subr.bf16.mxu0 %v4687
        %6019 = vmatpush1.bf16.msra.mxu0 %v4686
        %6020 = vmatprep.subr.bf16.mxu0 %v4679
        %6021 = vmatpush1.bf16.msra.mxu0 %v4678
        %6022 = vmatprep.subr.bf16.mxu0 %v4671
        %6023 = vmatpush1.bf16.msra.mxu0 %v4670
        %6024 = vmatprep.subr.bf16.mxu0 %v4663
        %6025 = vmatpush1.bf16.msra.mxu0 %v4662
        %6026 = vmatprep.subr.bf16.mxu0 %v4783
        %6027 = vmatpush2.bf16.msra.mxu0 %v4782
        %6028 = vmatprep.subr.bf16.mxu0 %v4775
        %6029 = vmatpush2.bf16.msra.mxu0 %v4774
        %6030 = vmatprep.subr.bf16.mxu0 %v4767
        %6031 = vmatpush2.bf16.msra.mxu0 %v4766
        %6032 = vmatprep.subr.bf16.mxu0 %v4759
        %6033 = vmatpush2.bf16.msra.mxu0 %v4758
        %6034 = vmatprep.subr.bf16.mxu0 %v4751
        %6035 = vmatpush2.bf16.msra.mxu0 %v4750
        %6036 = vmatprep.subr.bf16.mxu0 %v4743
        %6037 = vmatpush2.bf16.msra.mxu0 %v4742
        %6038 = vmatprep.subr.bf16.mxu0 %v4735
        %6039 = vmatpush2.bf16.msra.mxu0 %v4734
        %6040 = vmatprep.subr.bf16.mxu0 %v4727
        %6041 = vmatpush2.bf16.msra.mxu0 %v4726
        %6042 = vmatprep.mubr.bf16.mxu0 %v2561
        %6043 = vmatmul.mubr.bf16.gmra.mxu0 %v2560
        %v6044 = vpop.f32.mrf.mxu0
        %v6045 = vadd.f32 %v3101, %v6044
        %v6046 = vpop.f32.mrf.mxu0
        %v6047 = vadd.f32 %v3105, %v6046
        %v6048 = vpop.f32.mrf.mxu0
        %v6049 = vpop.f32.mrf.mxu0
        %6050 = vdwg.mxu0
        %6051 = vmatprep.subr.bf16.mxu0 %v4847
        %6052 = vmatpush1.bf16.msra.mxu0 %v4846
        %6053 = vmatprep.subr.bf16.mxu0 %v4839
        %6054 = vmatpush1.bf16.msra.mxu0 %v4838
        %6055 = vmatprep.subr.bf16.mxu0 %v4831
        %6056 = vmatpush1.bf16.msra.mxu0 %v4830
        %6057 = vmatprep.subr.bf16.mxu0 %v4823
        %6058 = vmatpush1.bf16.msra.mxu0 %v4822
        %6059 = vmatprep.subr.bf16.mxu0 %v4815
        %6060 = vmatpush1.bf16.msra.mxu0 %v4814
        %6061 = vmatprep.subr.bf16.mxu0 %v4807
        %6062 = vmatpush1.bf16.msra.mxu0 %v4806
        %6063 = vmatprep.subr.bf16.mxu0 %v4799
        %6064 = vmatpush1.bf16.msra.mxu0 %v4798
        %6065 = vmatprep.subr.bf16.mxu0 %v4791
        %6066 = vmatpush1.bf16.msra.mxu0 %v4790
        %6067 = vmatprep.subr.bf16.mxu0 %v4911
        %6068 = vmatpush2.bf16.msra.mxu0 %v4910
        %6069 = vmatprep.subr.bf16.mxu0 %v4903
        %6070 = vmatpush2.bf16.msra.mxu0 %v4902
        %6071 = vmatprep.subr.bf16.mxu0 %v4895
        %6072 = vmatpush2.bf16.msra.mxu0 %v4894
        %6073 = vmatprep.subr.bf16.mxu0 %v4887
        %6074 = vmatpush2.bf16.msra.mxu0 %v4886
        %6075 = vmatprep.subr.bf16.mxu0 %v4879
        %6076 = vmatpush2.bf16.msra.mxu0 %v4878
        %6077 = vmatprep.subr.bf16.mxu0 %v4871
        %6078 = vmatpush2.bf16.msra.mxu0 %v4870
        %6079 = vmatprep.subr.bf16.mxu0 %v4863
        %6080 = vmatpush2.bf16.msra.mxu0 %v4862
        %6081 = vmatprep.subr.bf16.mxu0 %v4855
        %6082 = vmatpush2.bf16.msra.mxu0 %v4854
        %6083 = vmatprep.mubr.bf16.mxu0 %v2563
        %6084 = vmatmul.mubr.bf16.gmra.mxu0 %v2562
        %v6085 = vpop.f32.mrf.mxu0
        %v6086 = vadd.f32 %v6045, %v6085
        %v6087 = vpop.f32.mrf.mxu0
        %v6088 = vadd.f32 %v6047, %v6087
        %v6089 = vpop.f32.mrf.mxu0
        %v6090 = vpop.f32.mrf.mxu0
        %6091 = vdwg.mxu0
        %6092 = vmatprep.subr.bf16.mxu0 %v4975
        %6093 = vmatpush1.bf16.msra.mxu0 %v4974
        %6094 = vmatprep.subr.bf16.mxu0 %v4967
        %6095 = vmatpush1.bf16.msra.mxu0 %v4966
        %6096 = vmatprep.subr.bf16.mxu0 %v4959
        %6097 = vmatpush1.bf16.msra.mxu0 %v4958
        %6098 = vmatprep.subr.bf16.mxu0 %v4951
        %6099 = vmatpush1.bf16.msra.mxu0 %v4950
        %6100 = vmatprep.subr.bf16.mxu0 %v4943
        %6101 = vmatpush1.bf16.msra.mxu0 %v4942
        %6102 = vmatprep.subr.bf16.mxu0 %v4935
        %6103 = vmatpush1.bf16.msra.mxu0 %v4934
        %6104 = vmatprep.subr.bf16.mxu0 %v4927
        %6105 = vmatpush1.bf16.msra.mxu0 %v4926
        %6106 = vmatprep.subr.bf16.mxu0 %v4919
        %6107 = vmatpush1.bf16.msra.mxu0 %v4918
        %6108 = vmatprep.subr.bf16.mxu0 %v5039
        %6109 = vmatpush2.bf16.msra.mxu0 %v5038
        %6110 = vmatprep.subr.bf16.mxu0 %v5031
        %6111 = vmatpush2.bf16.msra.mxu0 %v5030
        %6112 = vmatprep.subr.bf16.mxu0 %v5023
        %6113 = vmatpush2.bf16.msra.mxu0 %v5022
        %6114 = vmatprep.subr.bf16.mxu0 %v5015
        %6115 = vmatpush2.bf16.msra.mxu0 %v5014
        %6116 = vmatprep.subr.bf16.mxu0 %v5007
        %6117 = vmatpush2.bf16.msra.mxu0 %v5006
        %6118 = vmatprep.subr.bf16.mxu0 %v4999
        %6119 = vmatpush2.bf16.msra.mxu0 %v4998
        %6120 = vmatprep.subr.bf16.mxu0 %v4991
        %6121 = vmatpush2.bf16.msra.mxu0 %v4990
        %6122 = vmatprep.subr.bf16.mxu0 %v4983
        %6123 = vmatpush2.bf16.msra.mxu0 %v4982
        %6124 = vmatprep.mubr.bf16.mxu0 %v2565
        %6125 = vmatmul.mubr.bf16.gmra.mxu0 %v2564
        %v6126 = vpop.f32.mrf.mxu0
        %v6127 = vadd.f32 %v6086, %v6126
        %v6128 = vpop.f32.mrf.mxu0
        %v6129 = vadd.f32 %v6088, %v6128
        %v6130 = vpop.f32.mrf.mxu0
        %v6131 = vpop.f32.mrf.mxu0
        %6132 = vdwg.mxu0
        %6133 = vmatprep.subr.bf16.mxu0 %v5103
        %6134 = vmatpush1.bf16.msra.mxu0 %v5102
        %6135 = vmatprep.subr.bf16.mxu0 %v5095
        %6136 = vmatpush1.bf16.msra.mxu0 %v5094
        %6137 = vmatprep.subr.bf16.mxu0 %v5087
        %6138 = vmatpush1.bf16.msra.mxu0 %v5086
        %6139 = vmatprep.subr.bf16.mxu0 %v5079
        %6140 = vmatpush1.bf16.msra.mxu0 %v5078
        %6141 = vmatprep.subr.bf16.mxu0 %v5071
        %6142 = vmatpush1.bf16.msra.mxu0 %v5070
        %6143 = vmatprep.subr.bf16.mxu0 %v5063
        %6144 = vmatpush1.bf16.msra.mxu0 %v5062
        %6145 = vmatprep.subr.bf16.mxu0 %v5055
        %6146 = vmatpush1.bf16.msra.mxu0 %v5054
        %6147 = vmatprep.subr.bf16.mxu0 %v5047
        %6148 = vmatpush1.bf16.msra.mxu0 %v5046
        %6149 = vmatprep.subr.bf16.mxu0 %v5167
        %6150 = vmatpush2.bf16.msra.mxu0 %v5166
        %6151 = vmatprep.subr.bf16.mxu0 %v5159
        %6152 = vmatpush2.bf16.msra.mxu0 %v5158
        %6153 = vmatprep.subr.bf16.mxu0 %v5151
        %6154 = vmatpush2.bf16.msra.mxu0 %v5150
        %6155 = vmatprep.subr.bf16.mxu0 %v5143
        %6156 = vmatpush2.bf16.msra.mxu0 %v5142
        %6157 = vmatprep.subr.bf16.mxu0 %v5135
        %6158 = vmatpush2.bf16.msra.mxu0 %v5134
        %6159 = vmatprep.subr.bf16.mxu0 %v5127
        %6160 = vmatpush2.bf16.msra.mxu0 %v5126
        %6161 = vmatprep.subr.bf16.mxu0 %v5119
        %6162 = vmatpush2.bf16.msra.mxu0 %v5118
        %6163 = vmatprep.subr.bf16.mxu0 %v5111
        %6164 = vmatpush2.bf16.msra.mxu0 %v5110
        %6165 = vmatprep.mubr.bf16.mxu0 %v2567
        %6166 = vmatmul.mubr.bf16.gmra.mxu0 %v2566
        %v6167 = vpop.f32.mrf.mxu0
        %v6168 = vadd.f32 %v6127, %v6167
        %v6169 = vpop.f32.mrf.mxu0
        %v6170 = vadd.f32 %v6129, %v6169
        %v6171 = vpop.f32.mrf.mxu0
        %v6172 = vpop.f32.mrf.mxu0
        %6173 = vdwg.mxu0
        %6174 = vmatprep.subr.bf16.mxu0 %v4721
        %6175 = vmatpush1.bf16.msra.mxu0 %v4720
        %6176 = vmatprep.subr.bf16.mxu0 %v4713
        %6177 = vmatpush1.bf16.msra.mxu0 %v4712
        %6178 = vmatprep.subr.bf16.mxu0 %v4705
        %6179 = vmatpush1.bf16.msra.mxu0 %v4704
        %6180 = vmatprep.subr.bf16.mxu0 %v4697
        %6181 = vmatpush1.bf16.msra.mxu0 %v4696
        %6182 = vmatprep.subr.bf16.mxu0 %v4689
        %6183 = vmatpush1.bf16.msra.mxu0 %v4688
        %6184 = vmatprep.subr.bf16.mxu0 %v4681
        %6185 = vmatpush1.bf16.msra.mxu0 %v4680
        %6186 = vmatprep.subr.bf16.mxu0 %v4673
        %6187 = vmatpush1.bf16.msra.mxu0 %v4672
        %6188 = vmatprep.subr.bf16.mxu0 %v4665
        %6189 = vmatpush1.bf16.msra.mxu0 %v4664
        %6190 = vmatprep.subr.bf16.mxu0 %v4785
        %6191 = vmatpush2.bf16.msra.mxu0 %v4784
        %6192 = vmatprep.subr.bf16.mxu0 %v4777
        %6193 = vmatpush2.bf16.msra.mxu0 %v4776
        %6194 = vmatprep.subr.bf16.mxu0 %v4769
        %6195 = vmatpush2.bf16.msra.mxu0 %v4768
        %6196 = vmatprep.subr.bf16.mxu0 %v4761
        %6197 = vmatpush2.bf16.msra.mxu0 %v4760
        %6198 = vmatprep.subr.bf16.mxu0 %v4753
        %6199 = vmatpush2.bf16.msra.mxu0 %v4752
        %6200 = vmatprep.subr.bf16.mxu0 %v4745
        %6201 = vmatpush2.bf16.msra.mxu0 %v4744
        %6202 = vmatprep.subr.bf16.mxu0 %v4737
        %6203 = vmatpush2.bf16.msra.mxu0 %v4736
        %6204 = vmatprep.subr.bf16.mxu0 %v4729
        %6205 = vmatpush2.bf16.msra.mxu0 %v4728
        %6206 = vmatprep.mubr.bf16.mxu0 %v2561
        %6207 = vmatmul.mubr.bf16.gmra.mxu0 %v2560
        %v6208 = vpop.f32.mrf.mxu0
        %v6209 = vadd.f32 %v3109, %v6208
        %v6210 = vpop.f32.mrf.mxu0
        %v6211 = vadd.f32 %v3113, %v6210
        %v6212 = vpop.f32.mrf.mxu0
        %v6213 = vpop.f32.mrf.mxu0
        %6214 = vdwg.mxu0
        %6215 = vmatprep.subr.bf16.mxu0 %v4849
        %6216 = vmatpush1.bf16.msra.mxu0 %v4848
        %6217 = vmatprep.subr.bf16.mxu0 %v4841
        %6218 = vmatpush1.bf16.msra.mxu0 %v4840
        %6219 = vmatprep.subr.bf16.mxu0 %v4833
        %6220 = vmatpush1.bf16.msra.mxu0 %v4832
        %6221 = vmatprep.subr.bf16.mxu0 %v4825
        %6222 = vmatpush1.bf16.msra.mxu0 %v4824
        %6223 = vmatprep.subr.bf16.mxu0 %v4817
        %6224 = vmatpush1.bf16.msra.mxu0 %v4816
        %6225 = vmatprep.subr.bf16.mxu0 %v4809
        %6226 = vmatpush1.bf16.msra.mxu0 %v4808
        %6227 = vmatprep.subr.bf16.mxu0 %v4801
        %6228 = vmatpush1.bf16.msra.mxu0 %v4800
        %6229 = vmatprep.subr.bf16.mxu0 %v4793
        %6230 = vmatpush1.bf16.msra.mxu0 %v4792
        %6231 = vmatprep.subr.bf16.mxu0 %v4913
        %6232 = vmatpush2.bf16.msra.mxu0 %v4912
        %6233 = vmatprep.subr.bf16.mxu0 %v4905
        %6234 = vmatpush2.bf16.msra.mxu0 %v4904
        %6235 = vmatprep.subr.bf16.mxu0 %v4897
        %6236 = vmatpush2.bf16.msra.mxu0 %v4896
        %6237 = vmatprep.subr.bf16.mxu0 %v4889
        %6238 = vmatpush2.bf16.msra.mxu0 %v4888
        %6239 = vmatprep.subr.bf16.mxu0 %v4881
        %6240 = vmatpush2.bf16.msra.mxu0 %v4880
        %6241 = vmatprep.subr.bf16.mxu0 %v4873
        %6242 = vmatpush2.bf16.msra.mxu0 %v4872
        %6243 = vmatprep.subr.bf16.mxu0 %v4865
        %6244 = vmatpush2.bf16.msra.mxu0 %v4864
        %6245 = vmatprep.subr.bf16.mxu0 %v4857
        %6246 = vmatpush2.bf16.msra.mxu0 %v4856
        %6247 = vmatprep.mubr.bf16.mxu0 %v2563
        %6248 = vmatmul.mubr.bf16.gmra.mxu0 %v2562
        %v6249 = vpop.f32.mrf.mxu0
        %v6250 = vadd.f32 %v6209, %v6249
        %v6251 = vpop.f32.mrf.mxu0
        %v6252 = vadd.f32 %v6211, %v6251
        %v6253 = vpop.f32.mrf.mxu0
        %v6254 = vpop.f32.mrf.mxu0
        %6255 = vdwg.mxu0
        %6256 = vmatprep.subr.bf16.mxu0 %v4977
        %6257 = vmatpush1.bf16.msra.mxu0 %v4976
        %6258 = vmatprep.subr.bf16.mxu0 %v4969
        %6259 = vmatpush1.bf16.msra.mxu0 %v4968
        %6260 = vmatprep.subr.bf16.mxu0 %v4961
        %6261 = vmatpush1.bf16.msra.mxu0 %v4960
        %6262 = vmatprep.subr.bf16.mxu0 %v4953
        %6263 = vmatpush1.bf16.msra.mxu0 %v4952
        %6264 = vmatprep.subr.bf16.mxu0 %v4945
        %6265 = vmatpush1.bf16.msra.mxu0 %v4944
        %6266 = vmatprep.subr.bf16.mxu0 %v4937
        %6267 = vmatpush1.bf16.msra.mxu0 %v4936
        %6268 = vmatprep.subr.bf16.mxu0 %v4929
        %6269 = vmatpush1.bf16.msra.mxu0 %v4928
        %6270 = vmatprep.subr.bf16.mxu0 %v4921
        %6271 = vmatpush1.bf16.msra.mxu0 %v4920
        %6272 = vmatprep.subr.bf16.mxu0 %v5041
        %6273 = vmatpush2.bf16.msra.mxu0 %v5040
        %6274 = vmatprep.subr.bf16.mxu0 %v5033
        %6275 = vmatpush2.bf16.msra.mxu0 %v5032
        %6276 = vmatprep.subr.bf16.mxu0 %v5025
        %6277 = vmatpush2.bf16.msra.mxu0 %v5024
        %6278 = vmatprep.subr.bf16.mxu0 %v5017
        %6279 = vmatpush2.bf16.msra.mxu0 %v5016
        %6280 = vmatprep.subr.bf16.mxu0 %v5009
        %6281 = vmatpush2.bf16.msra.mxu0 %v5008
        %6282 = vmatprep.subr.bf16.mxu0 %v5001
        %6283 = vmatpush2.bf16.msra.mxu0 %v5000
        %6284 = vmatprep.subr.bf16.mxu0 %v4993
        %6285 = vmatpush2.bf16.msra.mxu0 %v4992
        %6286 = vmatprep.subr.bf16.mxu0 %v4985
        %6287 = vmatpush2.bf16.msra.mxu0 %v4984
        %6288 = vmatprep.mubr.bf16.mxu0 %v2565
        %6289 = vmatmul.mubr.bf16.gmra.mxu0 %v2564
        %v6290 = vpop.f32.mrf.mxu0
        %v6291 = vadd.f32 %v6250, %v6290
        %v6292 = vpop.f32.mrf.mxu0
        %v6293 = vadd.f32 %v6252, %v6292
        %v6294 = vpop.f32.mrf.mxu0
        %v6295 = vpop.f32.mrf.mxu0
        %6296 = vdwg.mxu0
        %6297 = vmatprep.subr.bf16.mxu0 %v5105
        %6298 = vmatpush1.bf16.msra.mxu0 %v5104
        %6299 = vmatprep.subr.bf16.mxu0 %v5097
        %6300 = vmatpush1.bf16.msra.mxu0 %v5096
        %6301 = vmatprep.subr.bf16.mxu0 %v5089
        %6302 = vmatpush1.bf16.msra.mxu0 %v5088
        %6303 = vmatprep.subr.bf16.mxu0 %v5081
        %6304 = vmatpush1.bf16.msra.mxu0 %v5080
        %6305 = vmatprep.subr.bf16.mxu0 %v5073
        %6306 = vmatpush1.bf16.msra.mxu0 %v5072
        %6307 = vmatprep.subr.bf16.mxu0 %v5065
        %6308 = vmatpush1.bf16.msra.mxu0 %v5064
        %6309 = vmatprep.subr.bf16.mxu0 %v5057
        %6310 = vmatpush1.bf16.msra.mxu0 %v5056
        %6311 = vmatprep.subr.bf16.mxu0 %v5049
        %6312 = vmatpush1.bf16.msra.mxu0 %v5048
        %6313 = vmatprep.subr.bf16.mxu0 %v5169
        %6314 = vmatpush2.bf16.msra.mxu0 %v5168
        %6315 = vmatprep.subr.bf16.mxu0 %v5161
        %6316 = vmatpush2.bf16.msra.mxu0 %v5160
        %6317 = vmatprep.subr.bf16.mxu0 %v5153
        %6318 = vmatpush2.bf16.msra.mxu0 %v5152
        %6319 = vmatprep.subr.bf16.mxu0 %v5145
        %6320 = vmatpush2.bf16.msra.mxu0 %v5144
        %6321 = vmatprep.subr.bf16.mxu0 %v5137
        %6322 = vmatpush2.bf16.msra.mxu0 %v5136
        %6323 = vmatprep.subr.bf16.mxu0 %v5129
        %6324 = vmatpush2.bf16.msra.mxu0 %v5128
        %6325 = vmatprep.subr.bf16.mxu0 %v5121
        %6326 = vmatpush2.bf16.msra.mxu0 %v5120
        %6327 = vmatprep.subr.bf16.mxu0 %v5113
        %6328 = vmatpush2.bf16.msra.mxu0 %v5112
        %6329 = vmatprep.mubr.bf16.mxu0 %v2567
        %6330 = vmatmul.mubr.bf16.gmra.mxu0 %v2566
        %v6331 = vpop.f32.mrf.mxu0
        %v6332 = vadd.f32 %v6291, %v6331
        %v6333 = vpop.f32.mrf.mxu0
        %v6334 = vadd.f32 %v6293, %v6333
        %v6335 = vpop.f32.mrf.mxu0
        %v6336 = vpop.f32.mrf.mxu0
        %6337 = vdwg.mxu0
        %v6338 = vxor.u32 %v5840, 2147483648
        %v6339 = vxor.u32 %v5842, 2147483648
        %v6340 = vxor.u32 %v6004, 2147483648
        %v6341 = vxor.u32 %v6006, 2147483648
        %v6342 = vxor.u32 %v6168, 2147483648
        %v6343 = vxor.u32 %v6170, 2147483648
        %v6344 = vxor.u32 %v6332, 2147483648
        %v6345 = vxor.u32 %v6334, 2147483648
        %v6346 = vmul.f32 %v6338, 1.442695
        %v6347 = vpow.pop %v6346
        %v6348 = vmul.f32 %v6339, 1.442695
        %v6349 = vpow.pop %v6348
        %v6350 = vmul.f32 %v6340, 1.442695
        %v6351 = vpow.pop %v6350
        %v6352 = vmul.f32 %v6341, 1.442695
        %v6353 = vpow.pop %v6352
        %v6354 = vmul.f32 %v6342, 1.442695
        %v6355 = vpow.pop %v6354
        %v6356 = vmul.f32 %v6343, 1.442695
        %v6357 = vpow.pop %v6356
        %v6358 = vmul.f32 %v6344, 1.442695
        %v6359 = vpow.pop %v6358
        %v6360 = vmul.f32 %v6345, 1.442695
        %v6361 = vpow.pop %v6360
        %v6362 = vadd.f32 %v6347, 1.0
        %v6363 = vadd.f32 %v6349, 1.0
        %v6364 = vadd.f32 %v6351, 1.0
        %v6365 = vadd.f32 %v6353, 1.0
        %v6366 = vadd.f32 %v6355, 1.0
        %v6367 = vadd.f32 %v6357, 1.0
        %v6368 = vadd.f32 %v6359, 1.0
        %v6369 = vadd.f32 %v6361, 1.0
        %v6370 = vrcp.pop %v6362
        %v6371 = vmul.f32 1.0, %v6370
        %v6372 = vrcp.pop %v6363
        %v6373 = vmul.f32 1.0, %v6372
        %v6374 = vrcp.pop %v6364
        %v6375 = vmul.f32 1.0, %v6374
        %v6376 = vrcp.pop %v6365
        %v6377 = vmul.f32 1.0, %v6376
        %v6378 = vrcp.pop %v6366
        %v6379 = vmul.f32 1.0, %v6378
        %v6380 = vrcp.pop %v6367
        %v6381 = vmul.f32 1.0, %v6380
        %v6382 = vrcp.pop %v6368
        %v6383 = vmul.f32 1.0, %v6382
        %v6384 = vrcp.pop %v6369
        %v6385 = vmul.f32 1.0, %v6384
        %6386 = vst [vmem:[%s358] sm:$0xff] %v6371
        %6387 = vst [vmem:[%s358 + $0x8] sm:$0xff] %v6373
        %6388 = vst [vmem:[%s358 + $0x10] sm:$0xff] %v6375
        %6389 = vst [vmem:[%s358 + $0x18] sm:$0xff] %v6377
        %6390 = vst [vmem:[%s358 + $0x20] sm:$0xff] %v6379
        %6391 = vst [vmem:[%s358 + $0x28] sm:$0xff] %v6381
        %6392 = vst [vmem:[%s358 + $0x30] sm:$0xff] %v6383
        %6393 = vst [vmem:[%s358 + $0x38] sm:$0xff] %v6385
        %s6394 = smul.u32 8, %s20
        %p6395 = scmp.lt.s32.totalorder %s6394, 15
        %s6396 = scalar_select %p6395, %s6394, 15
        %s6397 = smul.addr %s6396, 8
        %s6398 = scalar_lea.vmem %s6, %s6397
        // Predicated region
        $region69: #{color_forward.1} parent=43 // pred_check
          %p6399 = pneg %p174
        $region70: #{color_forward.1} parent=43 // pred_check_branch
          %6401 = sbr.rel (%p6399) target = $region72
        $region71: #{color_forward.1} parent=43 // pred_region
          %s6402 = smul.u32 8, %s20
        $region72: #{color_forward.1} parent=43 // pred_fallthru
          _
      $region44: #{color_forward.1} parent=5 // pred_fallthru
        _
      %p6403 = scmp.le.s32.totalorder 2, %s15
      // Predicated region
      $region73: #{color_forward.1} parent=5 // pred_check
        %p6404 = pneg %p6403
      $region74: #{color_forward.1} parent=5 // pred_check_branch
        %6406 = sbr.rel (%p6404) target = $region76
      $region75: #{color_forward.1} parent=5 // pred_region
        %s6407 = ssub.s32 %s15, 2
        // Predicated region
        $region77: #{color_forward.1} parent=75 // pred_check
          %p6408 = pneg %p180
        $region78: #{color_forward.1} parent=75 // pred_check_branch
          %6410 = sbr.rel (%p6408) target = $region80
        $region79: #{color_forward.1} parent=75 // pred_region
          %s6411 = smul.u32 8, %s21
          %p6412 = scmp.lt.s32.totalorder %s6411, 15
          %s6413 = scalar_select %p6412, %s6411, 15
          %s6414 = smul.addr %s6413, 8
          %s6415 = scalar_lea.vmem %s6, %s6414
        $region80: #{color_forward.1} parent=75 // pred_fallthru
          _
      $region76: #{color_forward.1} parent=5 // pred_fallthru
        _
    $region6: #{color_forward.1} parent=1 // loop_footer
      %s19 = sadd.s32 1, %s15
    $region7: #{color_forward.1} parent=1 // loop_footer_branch
      %14 = sbr.rel target = $region3
    $region8: #{color_forward.1} parent=1 // loop_exit
      _
    %6416 = vsyncpa [#allocation3], 1
    %s6417 = scalar_lea.sflag [#allocation3], 1
    %6418 = vsyncpa %s6417, 1
    %6419 = vsyncpa [#allocation5], 1
    %6420 = vsyncpa [#allocation8], 1

</llo_original>
